<compile_context>
chip_gen: v5e
topology: v5e:2x2
jax: 0.10.0
libtpu: 0.0.40
codegen_flags: <defaults>
</compile_context>

<pallas_src>
import functools

import numpy as np
import jax
import jax.numpy as jnp
from jax import lax
from jax.experimental import pallas as pl
from jax.experimental.pallas import tpu as pltpu

_BN_EPS = 1e-5
_K = 5  # kernel_size of every conv in the model


# ---------------------------------------------------------------------------
# Trace-time constant builders: 0/1 gather matrices that turn a conv /
# transposed conv into   Y = sum_k G[k] @ X @ W[k]   (rows = (batch, position),
# cols = channels).  Zero rows implement the zero padding exactly.
# ---------------------------------------------------------------------------
def _conv_gather(B, L_in, L_out, stride, pad, *, in_pos_major=False, out_pos_major=False):
    g = np.zeros((_K, B * L_out, B * L_in), np.float32)
    for k in range(_K):
        for b in range(B):
            for lo in range(L_out):
                li = stride * lo + k - pad
                if 0 <= li < L_in:
                    r = lo * B + b if out_pos_major else b * L_out + lo
                    c = li * B + b if in_pos_major else b * L_in + li
                    g[k, r, c] = 1.0
    return jnp.asarray(g)


def _tconv_gather(B, L_in, L_out, stride, pad, *, in_pos_major=False, out_pos_major=False):
    # ConvTranspose1d: output position lo receives x[li]*w[k] whenever
    # stride*li - pad + k == lo.
    g = np.zeros((_K, B * L_out, B * L_in), np.float32)
    for k in range(_K):
        for b in range(B):
            for lo in range(L_out):
                num = lo + pad - k
                if num % stride:
                    continue
                li = num // stride
                if 0 <= li < L_in:
                    r = lo * B + b if out_pos_major else b * L_out + lo
                    c = li * B + b if in_pos_major else b * L_in + li
                    g[k, r, c] = 1.0
    return jnp.asarray(g)


# ---------------------------------------------------------------------------
# The single fused kernel
# ---------------------------------------------------------------------------
def _vae_kernel(cols1_ref, eps_ref,
                we1_ref, be1_ref,
                ge2_ref, we2_ref, be2_ref,
                ge3_ref, we3_ref, be3_ref,
                wh_ref, bh_ref,
                wd_ref, xdb_ref,
                gd1_ref, wd1_ref, bd1_ref,
                gd2_ref, wd2_ref, bd2_ref,
                gd3_ref, wd3_ref, bd3_ref,
                xrec_ref, mulv_ref,
                y3_s, xd_s,
                *, batch, latent, enc_len):
    f32 = jnp.float32
    c3 = wh_ref.shape[1]  # channels of the last encoder layer (128)

    def conv_block(x, g_ref, w_ref, b_ref, act):
        acc = None
        for k in range(g_ref.shape[0]):
            t = jnp.dot(g_ref[k], x, preferred_element_type=f32)       # spatial gather
            t = jnp.dot(t, w_ref[k], preferred_element_type=f32)       # channel mix
            acc = t if acc is None else acc + t
        acc = acc + b_ref[...]
        if act == "relu":
            acc = jnp.maximum(acc, 0.0)
        elif act == "tanh":
            acc = jnp.tanh(acc)
        return acc

    # ----------------------- encoder ---------------------------------------
    # Layer 1 input arrives pre-gathered (single-channel 5-tap im2col of the
    # raw input) so it is one fused matmul + bias + ReLU.
    h = jnp.dot(cols1_ref[...], we1_ref[...], preferred_element_type=f32)
    h = jnp.maximum(h + be1_ref[...], 0.0)                      # (B*L/2, 32)
    h = conv_block(h, ge2_ref, we2_ref, be2_ref, "relu")        # (B*L/4, 64)
    h = conv_block(h, ge3_ref, we3_ref, be3_ref, "relu")        # (B*L/8, 128) position-major rows
    y3_s[...] = h

    # ----------------------- latent heads (mu || logvar) -------------------
    ml = jnp.zeros((batch, 2 * latent), f32)
    for l in range(enc_len):
        ml = ml + jnp.dot(y3_s[l * batch:(l + 1) * batch, :], wh_ref[l],
                          preferred_element_type=f32)
    ml = ml + bh_ref[...]
    mu = ml[:, :latent]
    lv = jnp.clip(ml[:, latent:], -10.0, 10.0)         # torch.clamp(logvar, -10, 10)
    std = jnp.exp(0.5 * lv) + 1e-6
    z = mu + eps_ref[...] * std

    col = lax.broadcasted_iota(jnp.int32, ml.shape, 1)
    mulv_ref[...] = jnp.where(col < latent, ml, jnp.clip(ml, -10.0, 10.0))

    # ----------------------- fc_decode + Unflatten --------------------------
    # Column block l of the rearranged weight corresponds to spatial position l,
    # so the unflattened (position-major) activation is written block-by-block.
    zd = jnp.dot(z, wd_ref[...], preferred_element_type=f32)    # (B, enc_len*128)
    for l in range(enc_len):
        xd_s[l * batch:(l + 1) * batch, :] = (
            zd[:, l * c3:(l + 1) * c3] + xdb_ref[l * batch:(l + 1) * batch, :])

    # ----------------------- decoder ----------------------------------------
    h = conv_block(xd_s[...], gd1_ref, wd1_ref, bd1_ref, "relu")   # (B*L/4, 64)
    h = conv_block(h, gd2_ref, wd2_ref, bd2_ref, "relu")           # (B*L/2, 32)
    h = conv_block(h, gd3_ref, wd3_ref, bd3_ref, "tanh")           # (B*L, 1)
    xrec_ref[...] = h


# ---------------------------------------------------------------------------
# Wrapper: builds trace-time constants, calls the fused kernel once.
# ---------------------------------------------------------------------------
def vae_forward(params, x, eps):
    B, _, L = x.shape
    latent = eps.shape[1]
    L1, L2, L3 = L // 2, L // 4, L // 8
    c3 = params["enc3_w"].shape[0]                     # 128
    s = float(1.0 / np.sqrt(1.0 + _BN_EPS))            # eval-BN scale; shift is exactly 0
    f32 = jnp.float32

    # encoder layer 1: im2col of the single-channel raw input (tiny JAX glue)
    xp = jnp.pad(x[:, 0, :], ((0, 0), (2, 2)))
    cols1 = jnp.stack([xp[:, k:k + 2 * (L1 - 1) + 1:2] for k in range(_K)], axis=-1)
    cols1 = cols1.reshape(B * L1, _K).astype(f32)
    w_e1 = (params["enc1_w"].reshape(-1, _K).T * s).astype(f32)          # (5, 32)
    b_e1 = (params["enc1_b"] * s).reshape(1, -1).astype(f32)

    # encoder layers 2-3 (BN scale folded into weights/biases)
    g_e2 = _conv_gather(B, L1, L2, 2, 2)
    w_e2 = (params["enc2_w"].transpose(2, 1, 0) * s).astype(f32)         # (5, 32, 64)
    b_e2 = (params["enc2_b"] * s).reshape(1, -1).astype(f32)
    g_e3 = _conv_gather(B, L2, L3, 2, 2, out_pos_major=True)
    w_e3 = (params["enc3_w"].transpose(2, 1, 0) * s).astype(f32)         # (5, 64, 128)
    b_e3 = (params["enc3_b"] * s).reshape(1, -1).astype(f32)

    # merged mu/logvar heads; rows rearranged so slice l matches spatial pos l
    w_cat = jnp.concatenate([params["fc_mu_w"], params["fc_lv_w"]], axis=1)
    w_heads = w_cat.reshape(c3, L3, 2 * latent).transpose(1, 0, 2).astype(f32)   # (L3, 128, 2*lat)
    b_heads = jnp.concatenate([params["fc_mu_b"], params["fc_lv_b"]]).reshape(1, -1).astype(f32)

    # fc_decode rearranged so lane block l == spatial position l
    w_dec = (params["fc_dec_w"].reshape(latent, c3, L3).transpose(0, 2, 1)
             .reshape(latent, L3 * c3).astype(f32))
    xd_bias = jnp.repeat(params["fc_dec_b"].reshape(c3, L3).T, B, axis=0).astype(f32)  # (B*L3,128)

    # decoder transposed convs
    g_d1 = _tconv_gather(B, L3, L2, 2, 2, in_pos_major=True)
    w_d1 = (params["dec1_w"].transpose(2, 0, 1) * s).astype(f32)         # (5, 128, 64)
    b_d1 = (params["dec1_b"] * s).reshape(1, -1).astype(f32)
    g_d2 = _tconv_gather(B, L2, L1, 2, 2)
    w_d2 = (params["dec2_w"].transpose(2, 0, 1) * s).astype(f32)         # (5, 64, 32)
    b_d2 = (params["dec2_b"] * s).reshape(1, -1).astype(f32)
    g_d3 = _tconv_gather(B, L1, L, 2, 2)
    w_d3 = params["dec3_w"].transpose(2, 0, 1).astype(f32)               # (5, 32, 1) (no BN)
    b_d3 = params["dec3_b"].reshape(1, -1).astype(f32)

    inputs = (cols1, eps.astype(f32),
              w_e1, b_e1, g_e2, w_e2, b_e2, g_e3, w_e3, b_e3,
              w_heads, b_heads, w_dec, xd_bias,
              g_d1, w_d1, b_d1, g_d2, w_d2, b_d2, g_d3, w_d3, b_d3)

    def whole(shape):
        nd = len(shape)
        return pl.BlockSpec(shape, lambda i, _n=nd: (0,) * _n)

    kernel = functools.partial(_vae_kernel, batch=B, latent=latent, enc_len=L3)
    x_rec_col, mu_lv = pl.pallas_call(
        kernel,
        out_shape=(jax.ShapeDtypeStruct((B * L, 1), f32),
                   jax.ShapeDtypeStruct((B, 2 * latent), f32)),
        grid=(1,),
        in_specs=[whole(a.shape) for a in inputs],
        out_specs=(whole((B * L, 1)), whole((B, 2 * latent))),
        scratch_shapes=[pltpu.VMEM((B * L3, c3), f32),    # encoder stage-3 activations
                        pltpu.VMEM((B * L3, c3), f32)],   # unflattened decoder input
        compiler_params=pltpu.CompilerParams(
            dimension_semantics=("arbitrary",),
            vmem_limit_bytes=32 * 1024 * 1024),
    )(*inputs)

    x_rec = x_rec_col.reshape(B, 1, L)
    mu = mu_lv[:, :latent]
    logvar = mu_lv[:, latent:]
    return x_rec, mu, logvar


# ---------------------------------------------------------------------------
# Parameter init (PyTorch-style uniform bounds; layouts match nn.Conv1d /
# nn.ConvTranspose1d / nn.Linear with Linear weights stored as (in, out)).
# ---------------------------------------------------------------------------
def init_vae_params(key, input_length, latent_dim):
    enc_len = input_length // 8
    enc_out_size = 128 * enc_len
    keys = jax.random.split(key, 18)

    def u(k, shape, fan_in):
        bound = 1.0 / np.sqrt(float(fan_in))
        return jax.random.uniform(k, shape, jnp.float32, -bound, bound)

    return {
        "enc1_w": u(keys[0], (32, 1, 5), 5),      "enc1_b": u(keys[1], (32,), 5),
        "enc2_w": u(keys[2], (64, 32, 5), 160),   "enc2_b": u(keys[3], (64,), 160),
        "enc3_w": u(keys[4], (128, 64, 5), 320),  "enc3_b": u(keys[5], (128,), 320),
        "fc_mu_w": u(keys[6], (enc_out_size, latent_dim), enc_out_size),
        "fc_mu_b": u(keys[7], (latent_dim,), enc_out_size),
        "fc_lv_w": u(keys[8], (enc_out_size, latent_dim), enc_out_size),
        "fc_lv_b": u(keys[9], (latent_dim,), enc_out_size),
        "fc_dec_w": u(keys[10], (latent_dim, enc_out_size), latent_dim),
        "fc_dec_b": u(keys[11], (enc_out_size,), latent_dim),
        "dec1_w": u(keys[12], (128, 64, 5), 640), "dec1_b": u(keys[13], (64,), 640),
        "dec2_w": u(keys[14], (64, 32, 5), 320),  "dec2_b": u(keys[15], (32,), 320),
        "dec3_w": u(keys[16], (32, 1, 5), 160),   "dec3_b": u(keys[17], (1,), 160),
    }


# ---------------------------------------------------------------------------
# Pure-JAX reference (mirrors the PyTorch module) for a sanity check.
# ---------------------------------------------------------------------------
def vae_reference(params, x, eps):
    s = 1.0 / jnp.sqrt(1.0 + _BN_EPS)
    dn = ("NCH", "OIH", "NCH")
    hp = lax.Precision.HIGHEST

    def conv(h, w, b, stride, pad):
        y = lax.conv_general_dilated(h, w, (stride,), [(pad, pad)],
                                     dimension_numbers=dn, precision=hp)
        return y + b[None, :, None]

    def tconv(h, w, b, stride, pad, out_pad):
        k = w.shape[-1]
        w2 = jnp.flip(w, -1).transpose(1, 0, 2)
        y = lax.conv_general_dilated(h, w2, (1,),
                                     [(k - 1 - pad, k - 1 - pad + out_pad)],
                                     lhs_dilation=(stride,),
                                     dimension_numbers=dn, precision=hp)
        return y + b[None, :, None]

    h = jnp.maximum(conv(x, params["enc1_w"], params["enc1_b"], 2, 2), 0.0) * s
    h = jnp.maximum(conv(h, params["enc2_w"], params["enc2_b"], 2, 2), 0.0) * s
    h = jnp.maximum(conv(h, params["enc3_w"], params["enc3_b"], 2, 2), 0.0) * s
    enc = h.reshape(x.shape[0], -1)
    mu = jnp.dot(enc, params["fc_mu_w"], precision=hp) + params["fc_mu_b"]
    logvar = jnp.clip(jnp.dot(enc, params["fc_lv_w"], precision=hp) + params["fc_lv_b"],
                      -10.0, 10.0)
    z = mu + eps * (jnp.exp(0.5 * logvar) + 1e-6)
    zd = jnp.dot(z, params["fc_dec_w"], precision=hp) + params["fc_dec_b"]
    h = zd.reshape(x.shape[0], 128, -1)
    h = jnp.maximum(tconv(h, params["dec1_w"], params["dec1_b"], 2, 2, 1), 0.0) * s
    h = jnp.maximum(tconv(h, params["dec2_w"], params["dec2_b"], 2, 2, 1), 0.0) * s
    x_rec = jnp.tanh(tconv(h, params["dec3_w"], params["dec3_b"], 2, 2, 1))
    return x_rec, mu, logvar


# ---------------------------------------------------------------------------
if __name__ == "__main__":
    key = jax.random.PRNGKey(0)
    pkey, xkey, ekey = jax.random.split(key, 3)

    B = 2
    input_length = 64
    latent_dim = 32

    params = init_vae_params(pkey, input_length, latent_dim)
    x = jax.random.normal(xkey, (B, 1, input_length), jnp.float32)   # NCL
    eps = jax.random.normal(ekey, (B, latent_dim), jnp.float32)      # reparam noise

    fwd = jax.jit(vae_forward)
    x_rec, mu, logvar = fwd(params, x, eps)
    jax.block_until_ready((x_rec, mu, logvar))

    assert x_rec.shape == (B, 1, input_length), x_rec.shape
    assert mu.shape == (B, latent_dim), mu.shape
    assert logvar.shape == (B, latent_dim), logvar.shape
    assert bool(jnp.all(jnp.isfinite(x_rec)))
    assert bool(jnp.all(jnp.isfinite(mu)))
    assert bool(jnp.all(jnp.isfinite(logvar)))

    # sanity check against a pure-JAX reference of the PyTorch module
    xr_ref, mu_ref, lv_ref = vae_reference(params, x, eps)
    assert float(jnp.max(jnp.abs(x_rec - xr_ref))) < 5e-2
    assert float(jnp.max(jnp.abs(mu - mu_ref))) < 5e-2
    assert float(jnp.max(jnp.abs(logvar - lv_ref))) < 5e-2

    print("KERNEL_OK")
</pallas_src>

<mosaic_0001>
module attributes {stable_mosaic.version = 11 : i64} {
  func.func @_vae_kernel(%arg0: i32, %arg1: memref<64x5xf32, #tpu.memory_space<vmem>>, %arg2: memref<2x32xf32, #tpu.memory_space<vmem>>, %arg3: memref<5x32xf32, #tpu.memory_space<vmem>>, %arg4: memref<1x32xf32, #tpu.memory_space<vmem>>, %arg5: memref<5x32x64xf32, #tpu.memory_space<vmem>>, %arg6: memref<5x32x64xf32, #tpu.memory_space<vmem>>, %arg7: memref<1x64xf32, #tpu.memory_space<vmem>>, %arg8: memref<5x16x32xf32, #tpu.memory_space<vmem>>, %arg9: memref<5x64x128xf32, #tpu.memory_space<vmem>>, %arg10: memref<1x128xf32, #tpu.memory_space<vmem>>, %arg11: memref<8x128x64xf32, #tpu.memory_space<vmem>>, %arg12: memref<1x64xf32, #tpu.memory_space<vmem>>, %arg13: memref<32x1024xf32, #tpu.memory_space<vmem>>, %arg14: memref<16x128xf32, #tpu.memory_space<vmem>>, %arg15: memref<5x32x16xf32, #tpu.memory_space<vmem>>, %arg16: memref<5x128x64xf32, #tpu.memory_space<vmem>>, %arg17: memref<1x64xf32, #tpu.memory_space<vmem>>, %arg18: memref<5x64x32xf32, #tpu.memory_space<vmem>>, %arg19: memref<5x64x32xf32, #tpu.memory_space<vmem>>, %arg20: memref<1x32xf32, #tpu.memory_space<vmem>>, %arg21: memref<5x128x64xf32, #tpu.memory_space<vmem>>, %arg22: memref<5x32x1xf32, #tpu.memory_space<vmem>>, %arg23: memref<1x1xf32, #tpu.memory_space<vmem>>, %arg24: memref<128x1xf32, #tpu.memory_space<vmem>>, %arg25: memref<2x64xf32, #tpu.memory_space<vmem>>, %arg26: memref<16x128xf32, #tpu.memory_space<vmem>>, %arg27: memref<16x128xf32, #tpu.memory_space<vmem>>) attributes {dimension_semantics = [#tpu.dimension_semantics<arbitrary>], iteration_bounds = array<i64: 1>, scalar_prefetch = 0 : i64, scratch_operands = 2 : i64, tpu.core_type = #tpu.core_type<tc>, window_params = [{pipeline_mode = #tpu.pipeline_mode<synchronous>, transform_indices = @transform_0, window_bounds = array<i64: 64, 5>}, {pipeline_mode = #tpu.pipeline_mode<synchronous>, transform_indices = @transform_1, window_bounds = array<i64: 2, 32>}, {pipeline_mode = #tpu.pipeline_mode<synchronous>, transform_indices = @transform_2, window_bounds = array<i64: 5, 32>}, {pipeline_mode = #tpu.pipeline_mode<synchronous>, transform_indices = @transform_3, window_bounds = array<i64: 1, 32>}, {pipeline_mode = #tpu.pipeline_mode<synchronous>, transform_indices = @transform_4, window_bounds = array<i64: 5, 32, 64>}, {pipeline_mode = #tpu.pipeline_mode<synchronous>, transform_indices = @transform_5, window_bounds = array<i64: 5, 32, 64>}, {pipeline_mode = #tpu.pipeline_mode<synchronous>, transform_indices = @transform_6, window_bounds = array<i64: 1, 64>}, {pipeline_mode = #tpu.pipeline_mode<synchronous>, transform_indices = @transform_7, window_bounds = array<i64: 5, 16, 32>}, {pipeline_mode = #tpu.pipeline_mode<synchronous>, transform_indices = @transform_8, window_bounds = array<i64: 5, 64, 128>}, {pipeline_mode = #tpu.pipeline_mode<synchronous>, transform_indices = @transform_9, window_bounds = array<i64: 1, 128>}, {pipeline_mode = #tpu.pipeline_mode<synchronous>, transform_indices = @transform_10, window_bounds = array<i64: 8, 128, 64>}, {pipeline_mode = #tpu.pipeline_mode<synchronous>, transform_indices = @transform_11, window_bounds = array<i64: 1, 64>}, {pipeline_mode = #tpu.pipeline_mode<synchronous>, transform_indices = @transform_12, window_bounds = array<i64: 32, 1024>}, {pipeline_mode = #tpu.pipeline_mode<synchronous>, transform_indices = @transform_13, window_bounds = array<i64: 16, 128>}, {pipeline_mode = #tpu.pipeline_mode<synchronous>, transform_indices = @transform_14, window_bounds = array<i64: 5, 32, 16>}, {pipeline_mode = #tpu.pipeline_mode<synchronous>, transform_indices = @transform_15, window_bounds = array<i64: 5, 128, 64>}, {pipeline_mode = #tpu.pipeline_mode<synchronous>, transform_indices = @transform_16, window_bounds = array<i64: 1, 64>}, {pipeline_mode = #tpu.pipeline_mode<synchronous>, transform_indices = @transform_17, window_bounds = array<i64: 5, 64, 32>}, {pipeline_mode = #tpu.pipeline_mode<synchronous>, transform_indices = @transform_18, window_bounds = array<i64: 5, 64, 32>}, {pipeline_mode = #tpu.pipeline_mode<synchronous>, transform_indices = @transform_19, window_bounds = array<i64: 1, 32>}, {pipeline_mode = #tpu.pipeline_mode<synchronous>, transform_indices = @transform_20, window_bounds = array<i64: 5, 128, 64>}, {pipeline_mode = #tpu.pipeline_mode<synchronous>, transform_indices = @transform_21, window_bounds = array<i64: 5, 32, 1>}, {pipeline_mode = #tpu.pipeline_mode<synchronous>, transform_indices = @transform_22, window_bounds = array<i64: 1, 1>}, {pipeline_mode = #tpu.pipeline_mode<synchronous>, transform_indices = @transform_23, window_bounds = array<i64: 128, 1>}, {pipeline_mode = #tpu.pipeline_mode<synchronous>, transform_indices = @transform_24, window_bounds = array<i64: 2, 64>}]} {
    %c0 = arith.constant 0 : index
    %c0_0 = arith.constant 0 : index
    %0 = vector.load %arg1[%c0, %c0_0] : memref<64x5xf32, #tpu.memory_space<vmem>>, vector<64x5xf32>
    %c0_1 = arith.constant 0 : index
    %c0_2 = arith.constant 0 : index
    %1 = vector.load %arg3[%c0_1, %c0_2] : memref<5x32xf32, #tpu.memory_space<vmem>>, vector<5x32xf32>
    %cst = arith.constant dense<0.000000e+00> : vector<64x32xf32>
    %2 = tpu.matmul %0, %1, %cst {dimension_numbers = #tpu.dot_dimension_numbers<[1], [0], [0], [1], [0, 0, 1, 1], [], []>} : vector<64x5xf32>, vector<5x32xf32>, vector<64x32xf32> -> vector<64x32xf32>
    %c0_3 = arith.constant 0 : index
    %c0_4 = arith.constant 0 : index
    %3 = vector.load %arg4[%c0_3, %c0_4] : memref<1x32xf32, #tpu.memory_space<vmem>>, vector<1x32xf32>
    %4 = vector.broadcast %3 : vector<1x32xf32> to vector<64x32xf32>
    %5 = arith.addf %2, %4 : vector<64x32xf32>
    %cst_5 = arith.constant 0.000000e+00 : f32
    %6 = vector.broadcast %cst_5 : f32 to vector<64x32xf32>
    %7 = arith.maximumf %5, %6 : vector<64x32xf32>
    %c0_6 = arith.constant 0 : index
    %c0_7 = arith.constant 0 : index
    %c0_8 = arith.constant 0 : index
    %8 = vector.load %arg5[%c0_6, %c0_7, %c0_8] : memref<5x32x64xf32, #tpu.memory_space<vmem>>, vector<1x32x64xf32>
    %9 = vector.shape_cast %8 : vector<1x32x64xf32> to vector<32x64xf32>
    %cst_9 = arith.constant dense<0.000000e+00> : vector<32x32xf32>
    %10 = tpu.matmul %9, %7, %cst_9 {dimension_numbers = #tpu.dot_dimension_numbers<[1], [0], [0], [1], [0, 0, 1, 1], [], []>} : vector<32x64xf32>, vector<64x32xf32>, vector<32x32xf32> -> vector<32x32xf32>
    %c0_10 = arith.constant 0 : index
    %c0_11 = arith.constant 0 : index
    %c0_12 = arith.constant 0 : index
    %11 = vector.load %arg6[%c0_10, %c0_11, %c0_12] : memref<5x32x64xf32, #tpu.memory_space<vmem>>, vector<1x32x64xf32>
    %12 = vector.shape_cast %11 : vector<1x32x64xf32> to vector<32x64xf32>
    %cst_13 = arith.constant dense<0.000000e+00> : vector<32x64xf32>
    %13 = tpu.matmul %10, %12, %cst_13 {dimension_numbers = #tpu.dot_dimension_numbers<[1], [0], [0], [1], [0, 0, 1, 1], [], []>} : vector<32x32xf32>, vector<32x64xf32>, vector<32x64xf32> -> vector<32x64xf32>
    %c1 = arith.constant 1 : index
    %c0_14 = arith.constant 0 : index
    %c0_15 = arith.constant 0 : index
    %14 = vector.load %arg5[%c1, %c0_14, %c0_15] : memref<5x32x64xf32, #tpu.memory_space<vmem>>, vector<1x32x64xf32>
    %15 = vector.shape_cast %14 : vector<1x32x64xf32> to vector<32x64xf32>
    %cst_16 = arith.constant dense<0.000000e+00> : vector<32x32xf32>
    %16 = tpu.matmul %15, %7, %cst_16 {dimension_numbers = #tpu.dot_dimension_numbers<[1], [0], [0], [1], [0, 0, 1, 1], [], []>} : vector<32x64xf32>, vector<64x32xf32>, vector<32x32xf32> -> vector<32x32xf32>
    %c1_17 = arith.constant 1 : index
    %c0_18 = arith.constant 0 : index
    %c0_19 = arith.constant 0 : index
    %17 = vector.load %arg6[%c1_17, %c0_18, %c0_19] : memref<5x32x64xf32, #tpu.memory_space<vmem>>, vector<1x32x64xf32>
    %18 = vector.shape_cast %17 : vector<1x32x64xf32> to vector<32x64xf32>
    %cst_20 = arith.constant dense<0.000000e+00> : vector<32x64xf32>
    %19 = tpu.matmul %16, %18, %cst_20 {dimension_numbers = #tpu.dot_dimension_numbers<[1], [0], [0], [1], [0, 0, 1, 1], [], []>} : vector<32x32xf32>, vector<32x64xf32>, vector<32x64xf32> -> vector<32x64xf32>
    %20 = arith.addf %13, %19 : vector<32x64xf32>
    %c2 = arith.constant 2 : index
    %c0_21 = arith.constant 0 : index
    %c0_22 = arith.constant 0 : index
    %21 = vector.load %arg5[%c2, %c0_21, %c0_22] : memref<5x32x64xf32, #tpu.memory_space<vmem>>, vector<1x32x64xf32>
    %22 = vector.shape_cast %21 : vector<1x32x64xf32> to vector<32x64xf32>
    %cst_23 = arith.constant dense<0.000000e+00> : vector<32x32xf32>
    %23 = tpu.matmul %22, %7, %cst_23 {dimension_numbers = #tpu.dot_dimension_numbers<[1], [0], [0], [1], [0, 0, 1, 1], [], []>} : vector<32x64xf32>, vector<64x32xf32>, vector<32x32xf32> -> vector<32x32xf32>
    %c2_24 = arith.constant 2 : index
    %c0_25 = arith.constant 0 : index
    %c0_26 = arith.constant 0 : index
    %24 = vector.load %arg6[%c2_24, %c0_25, %c0_26] : memref<5x32x64xf32, #tpu.memory_space<vmem>>, vector<1x32x64xf32>
    %25 = vector.shape_cast %24 : vector<1x32x64xf32> to vector<32x64xf32>
    %cst_27 = arith.constant dense<0.000000e+00> : vector<32x64xf32>
    %26 = tpu.matmul %23, %25, %cst_27 {dimension_numbers = #tpu.dot_dimension_numbers<[1], [0], [0], [1], [0, 0, 1, 1], [], []>} : vector<32x32xf32>, vector<32x64xf32>, vector<32x64xf32> -> vector<32x64xf32>
    %27 = arith.addf %20, %26 : vector<32x64xf32>
    %c3 = arith.constant 3 : index
    %c0_28 = arith.constant 0 : index
    %c0_29 = arith.constant 0 : index
    %28 = vector.load %arg5[%c3, %c0_28, %c0_29] : memref<5x32x64xf32, #tpu.memory_space<vmem>>, vector<1x32x64xf32>
    %29 = vector.shape_cast %28 : vector<1x32x64xf32> to vector<32x64xf32>
    %cst_30 = arith.constant dense<0.000000e+00> : vector<32x32xf32>
    %30 = tpu.matmul %29, %7, %cst_30 {dimension_numbers = #tpu.dot_dimension_numbers<[1], [0], [0], [1], [0, 0, 1, 1], [], []>} : vector<32x64xf32>, vector<64x32xf32>, vector<32x32xf32> -> vector<32x32xf32>
    %c3_31 = arith.constant 3 : index
    %c0_32 = arith.constant 0 : index
    %c0_33 = arith.constant 0 : index
    %31 = vector.load %arg6[%c3_31, %c0_32, %c0_33] : memref<5x32x64xf32, #tpu.memory_space<vmem>>, vector<1x32x64xf32>
    %32 = vector.shape_cast %31 : vector<1x32x64xf32> to vector<32x64xf32>
    %cst_34 = arith.constant dense<0.000000e+00> : vector<32x64xf32>
    %33 = tpu.matmul %30, %32, %cst_34 {dimension_numbers = #tpu.dot_dimension_numbers<[1], [0], [0], [1], [0, 0, 1, 1], [], []>} : vector<32x32xf32>, vector<32x64xf32>, vector<32x64xf32> -> vector<32x64xf32>
    %34 = arith.addf %27, %33 : vector<32x64xf32>
    %c4 = arith.constant 4 : index
    %c0_35 = arith.constant 0 : index
    %c0_36 = arith.constant 0 : index
    %35 = vector.load %arg5[%c4, %c0_35, %c0_36] : memref<5x32x64xf32, #tpu.memory_space<vmem>>, vector<1x32x64xf32>
    %36 = vector.shape_cast %35 : vector<1x32x64xf32> to vector<32x64xf32>
    %cst_37 = arith.constant dense<0.000000e+00> : vector<32x32xf32>
    %37 = tpu.matmul %36, %7, %cst_37 {dimension_numbers = #tpu.dot_dimension_numbers<[1], [0], [0], [1], [0, 0, 1, 1], [], []>} : vector<32x64xf32>, vector<64x32xf32>, vector<32x32xf32> -> vector<32x32xf32>
    %c4_38 = arith.constant 4 : index
    %c0_39 = arith.constant 0 : index
    %c0_40 = arith.constant 0 : index
    %38 = vector.load %arg6[%c4_38, %c0_39, %c0_40] : memref<5x32x64xf32, #tpu.memory_space<vmem>>, vector<1x32x64xf32>
    %39 = vector.shape_cast %38 : vector<1x32x64xf32> to vector<32x64xf32>
    %cst_41 = arith.constant dense<0.000000e+00> : vector<32x64xf32>
    %40 = tpu.matmul %37, %39, %cst_41 {dimension_numbers = #tpu.dot_dimension_numbers<[1], [0], [0], [1], [0, 0, 1, 1], [], []>} : vector<32x32xf32>, vector<32x64xf32>, vector<32x64xf32> -> vector<32x64xf32>
    %41 = arith.addf %34, %40 : vector<32x64xf32>
    %c0_42 = arith.constant 0 : index
    %c0_43 = arith.constant 0 : index
    %42 = vector.load %arg7[%c0_42, %c0_43] : memref<1x64xf32, #tpu.memory_space<vmem>>, vector<1x64xf32>
    %43 = vector.broadcast %42 : vector<1x64xf32> to vector<32x64xf32>
    %44 = arith.addf %41, %43 : vector<32x64xf32>
    %cst_44 = arith.constant 0.000000e+00 : f32
    %45 = vector.broadcast %cst_44 : f32 to vector<32x64xf32>
    %46 = arith.maximumf %44, %45 : vector<32x64xf32>
    %c0_45 = arith.constant 0 : index
    %c0_46 = arith.constant 0 : index
    %c0_47 = arith.constant 0 : index
    %47 = vector.load %arg8[%c0_45, %c0_46, %c0_47] : memref<5x16x32xf32, #tpu.memory_space<vmem>>, vector<1x16x32xf32>
    %48 = vector.shape_cast %47 : vector<1x16x32xf32> to vector<16x32xf32>
    %cst_48 = arith.constant dense<0.000000e+00> : vector<16x64xf32>
    %49 = tpu.matmul %48, %46, %cst_48 {dimension_numbers = #tpu.dot_dimension_numbers<[1], [0], [0], [1], [0, 0, 1, 1], [], []>} : vector<16x32xf32>, vector<32x64xf32>, vector<16x64xf32> -> vector<16x64xf32>
    %c0_49 = arith.constant 0 : index
    %c0_50 = arith.constant 0 : index
    %c0_51 = arith.constant 0 : index
    %50 = vector.load %arg9[%c0_49, %c0_50, %c0_51] : memref<5x64x128xf32, #tpu.memory_space<vmem>>, vector<1x64x128xf32>
    %51 = vector.shape_cast %50 : vector<1x64x128xf32> to vector<64x128xf32>
    %cst_52 = arith.constant dense<0.000000e+00> : vector<16x128xf32>
    %52 = tpu.matmul %49, %51, %cst_52 {dimension_numbers = #tpu.dot_dimension_numbers<[1], [0], [0], [1], [0, 0, 1, 1], [], []>} : vector<16x64xf32>, vector<64x128xf32>, vector<16x128xf32> -> vector<16x128xf32>
    %c1_53 = arith.constant 1 : index
    %c0_54 = arith.constant 0 : index
    %c0_55 = arith.constant 0 : index
    %53 = vector.load %arg8[%c1_53, %c0_54, %c0_55] : memref<5x16x32xf32, #tpu.memory_space<vmem>>, vector<1x16x32xf32>
    %54 = vector.shape_cast %53 : vector<1x16x32xf32> to vector<16x32xf32>
    %cst_56 = arith.constant dense<0.000000e+00> : vector<16x64xf32>
    %55 = tpu.matmul %54, %46, %cst_56 {dimension_numbers = #tpu.dot_dimension_numbers<[1], [0], [0], [1], [0, 0, 1, 1], [], []>} : vector<16x32xf32>, vector<32x64xf32>, vector<16x64xf32> -> vector<16x64xf32>
    %c1_57 = arith.constant 1 : index
    %c0_58 = arith.constant 0 : index
    %c0_59 = arith.constant 0 : index
    %56 = vector.load %arg9[%c1_57, %c0_58, %c0_59] : memref<5x64x128xf32, #tpu.memory_space<vmem>>, vector<1x64x128xf32>
    %57 = vector.shape_cast %56 : vector<1x64x128xf32> to vector<64x128xf32>
    %cst_60 = arith.constant dense<0.000000e+00> : vector<16x128xf32>
    %58 = tpu.matmul %55, %57, %cst_60 {dimension_numbers = #tpu.dot_dimension_numbers<[1], [0], [0], [1], [0, 0, 1, 1], [], []>} : vector<16x64xf32>, vector<64x128xf32>, vector<16x128xf32> -> vector<16x128xf32>
    %59 = arith.addf %52, %58 : vector<16x128xf32>
    %c2_61 = arith.constant 2 : index
    %c0_62 = arith.constant 0 : index
    %c0_63 = arith.constant 0 : index
    %60 = vector.load %arg8[%c2_61, %c0_62, %c0_63] : memref<5x16x32xf32, #tpu.memory_space<vmem>>, vector<1x16x32xf32>
    %61 = vector.shape_cast %60 : vector<1x16x32xf32> to vector<16x32xf32>
    %cst_64 = arith.constant dense<0.000000e+00> : vector<16x64xf32>
    %62 = tpu.matmul %61, %46, %cst_64 {dimension_numbers = #tpu.dot_dimension_numbers<[1], [0], [0], [1], [0, 0, 1, 1], [], []>} : vector<16x32xf32>, vector<32x64xf32>, vector<16x64xf32> -> vector<16x64xf32>
    %c2_65 = arith.constant 2 : index
    %c0_66 = arith.constant 0 : index
    %c0_67 = arith.constant 0 : index
    %63 = vector.load %arg9[%c2_65, %c0_66, %c0_67] : memref<5x64x128xf32, #tpu.memory_space<vmem>>, vector<1x64x128xf32>
    %64 = vector.shape_cast %63 : vector<1x64x128xf32> to vector<64x128xf32>
    %cst_68 = arith.constant dense<0.000000e+00> : vector<16x128xf32>
    %65 = tpu.matmul %62, %64, %cst_68 {dimension_numbers = #tpu.dot_dimension_numbers<[1], [0], [0], [1], [0, 0, 1, 1], [], []>} : vector<16x64xf32>, vector<64x128xf32>, vector<16x128xf32> -> vector<16x128xf32>
    %66 = arith.addf %59, %65 : vector<16x128xf32>
    %c3_69 = arith.constant 3 : index
    %c0_70 = arith.constant 0 : index
    %c0_71 = arith.constant 0 : index
    %67 = vector.load %arg8[%c3_69, %c0_70, %c0_71] : memref<5x16x32xf32, #tpu.memory_space<vmem>>, vector<1x16x32xf32>
    %68 = vector.shape_cast %67 : vector<1x16x32xf32> to vector<16x32xf32>
    %cst_72 = arith.constant dense<0.000000e+00> : vector<16x64xf32>
    %69 = tpu.matmul %68, %46, %cst_72 {dimension_numbers = #tpu.dot_dimension_numbers<[1], [0], [0], [1], [0, 0, 1, 1], [], []>} : vector<16x32xf32>, vector<32x64xf32>, vector<16x64xf32> -> vector<16x64xf32>
    %c3_73 = arith.constant 3 : index
    %c0_74 = arith.constant 0 : index
    %c0_75 = arith.constant 0 : index
    %70 = vector.load %arg9[%c3_73, %c0_74, %c0_75] : memref<5x64x128xf32, #tpu.memory_space<vmem>>, vector<1x64x128xf32>
    %71 = vector.shape_cast %70 : vector<1x64x128xf32> to vector<64x128xf32>
    %cst_76 = arith.constant dense<0.000000e+00> : vector<16x128xf32>
    %72 = tpu.matmul %69, %71, %cst_76 {dimension_numbers = #tpu.dot_dimension_numbers<[1], [0], [0], [1], [0, 0, 1, 1], [], []>} : vector<16x64xf32>, vector<64x128xf32>, vector<16x128xf32> -> vector<16x128xf32>
    %73 = arith.addf %66, %72 : vector<16x128xf32>
    %c4_77 = arith.constant 4 : index
    %c0_78 = arith.constant 0 : index
    %c0_79 = arith.constant 0 : index
    %74 = vector.load %arg8[%c4_77, %c0_78, %c0_79] : memref<5x16x32xf32, #tpu.memory_space<vmem>>, vector<1x16x32xf32>
    %75 = vector.shape_cast %74 : vector<1x16x32xf32> to vector<16x32xf32>
    %cst_80 = arith.constant dense<0.000000e+00> : vector<16x64xf32>
    %76 = tpu.matmul %75, %46, %cst_80 {dimension_numbers = #tpu.dot_dimension_numbers<[1], [0], [0], [1], [0, 0, 1, 1], [], []>} : vector<16x32xf32>, vector<32x64xf32>, vector<16x64xf32> -> vector<16x64xf32>
    %c4_81 = arith.constant 4 : index
    %c0_82 = arith.constant 0 : index
    %c0_83 = arith.constant 0 : index
    %77 = vector.load %arg9[%c4_81, %c0_82, %c0_83] : memref<5x64x128xf32, #tpu.memory_space<vmem>>, vector<1x64x128xf32>
    %78 = vector.shape_cast %77 : vector<1x64x128xf32> to vector<64x128xf32>
    %cst_84 = arith.constant dense<0.000000e+00> : vector<16x128xf32>
    %79 = tpu.matmul %76, %78, %cst_84 {dimension_numbers = #tpu.dot_dimension_numbers<[1], [0], [0], [1], [0, 0, 1, 1], [], []>} : vector<16x64xf32>, vector<64x128xf32>, vector<16x128xf32> -> vector<16x128xf32>
    %80 = arith.addf %73, %79 : vector<16x128xf32>
    %c0_85 = arith.constant 0 : index
    %c0_86 = arith.constant 0 : index
    %81 = vector.load %arg10[%c0_85, %c0_86] : memref<1x128xf32, #tpu.memory_space<vmem>>, vector<1x128xf32>
    %82 = vector.broadcast %81 : vector<1x128xf32> to vector<16x128xf32>
    %83 = arith.addf %80, %82 : vector<16x128xf32>
    %cst_87 = arith.constant 0.000000e+00 : f32
    %84 = vector.broadcast %cst_87 : f32 to vector<16x128xf32>
    %85 = arith.maximumf %83, %84 : vector<16x128xf32>
    %c0_88 = arith.constant 0 : index
    %c0_89 = arith.constant 0 : index
    %86 = vector.load %arg26[%c0_88, %c0_89] : memref<16x128xf32, #tpu.memory_space<vmem>>, vector<16x128xf32>
    tpu.vector_store %arg26[%c0_88, %c0_89], %85 {strides = array<i32>} : memref<16x128xf32, #tpu.memory_space<vmem>>, vector<16x128xf32>,
    %cst_90 = arith.constant 0.000000e+00 : f32
    %87 = vector.broadcast %cst_90 : f32 to vector<2x64xf32>
    %c0_91 = arith.constant 0 : index
    %c0_92 = arith.constant 0 : index
    %88 = vector.load %arg26[%c0_91, %c0_92] : memref<16x128xf32, #tpu.memory_space<vmem>>, vector<2x128xf32>
    %c0_93 = arith.constant 0 : index
    %c0_94 = arith.constant 0 : index
    %c0_95 = arith.constant 0 : index
    %89 = vector.load %arg11[%c0_93, %c0_94, %c0_95] : memref<8x128x64xf32, #tpu.memory_space<vmem>>, vector<1x128x64xf32>
    %90 = vector.shape_cast %89 : vector<1x128x64xf32> to vector<128x64xf32>
    %cst_96 = arith.constant dense<0.000000e+00> : vector<2x64xf32>
    %91 = tpu.matmul %88, %90, %cst_96 {dimension_numbers = #tpu.dot_dimension_numbers<[1], [0], [0], [1], [0, 0, 1, 1], [], []>} : vector<2x128xf32>, vector<128x64xf32>, vector<2x64xf32> -> vector<2x64xf32>
    %92 = arith.addf %87, %91 : vector<2x64xf32>
    %c2_97 = arith.constant 2 : index
    %c0_98 = arith.constant 0 : index
    %93 = vector.load %arg26[%c2_97, %c0_98] : memref<16x128xf32, #tpu.memory_space<vmem>>, vector<2x128xf32>
    %c1_99 = arith.constant 1 : index
    %c0_100 = arith.constant 0 : index
    %c0_101 = arith.constant 0 : index
    %94 = vector.load %arg11[%c1_99, %c0_100, %c0_101] : memref<8x128x64xf32, #tpu.memory_space<vmem>>, vector<1x128x64xf32>
    %95 = vector.shape_cast %94 : vector<1x128x64xf32> to vector<128x64xf32>
    %cst_102 = arith.constant dense<0.000000e+00> : vector<2x64xf32>
    %96 = tpu.matmul %93, %95, %cst_102 {dimension_numbers = #tpu.dot_dimension_numbers<[1], [0], [0], [1], [0, 0, 1, 1], [], []>} : vector<2x128xf32>, vector<128x64xf32>, vector<2x64xf32> -> vector<2x64xf32>
    %97 = arith.addf %92, %96 : vector<2x64xf32>
    %c4_103 = arith.constant 4 : index
    %c0_104 = arith.constant 0 : index
    %98 = vector.load %arg26[%c4_103, %c0_104] : memref<16x128xf32, #tpu.memory_space<vmem>>, vector<2x128xf32>
    %c2_105 = arith.constant 2 : index
    %c0_106 = arith.constant 0 : index
    %c0_107 = arith.constant 0 : index
    %99 = vector.load %arg11[%c2_105, %c0_106, %c0_107] : memref<8x128x64xf32, #tpu.memory_space<vmem>>, vector<1x128x64xf32>
    %100 = vector.shape_cast %99 : vector<1x128x64xf32> to vector<128x64xf32>
    %cst_108 = arith.constant dense<0.000000e+00> : vector<2x64xf32>
    %101 = tpu.matmul %98, %100, %cst_108 {dimension_numbers = #tpu.dot_dimension_numbers<[1], [0], [0], [1], [0, 0, 1, 1], [], []>} : vector<2x128xf32>, vector<128x64xf32>, vector<2x64xf32> -> vector<2x64xf32>
    %102 = arith.addf %97, %101 : vector<2x64xf32>
    %c6 = arith.constant 6 : index
    %c0_109 = arith.constant 0 : index
    %103 = vector.load %arg26[%c6, %c0_109] : memref<16x128xf32, #tpu.memory_space<vmem>>, vector<2x128xf32>
    %c3_110 = arith.constant 3 : index
    %c0_111 = arith.constant 0 : index
    %c0_112 = arith.constant 0 : index
    %104 = vector.load %arg11[%c3_110, %c0_111, %c0_112] : memref<8x128x64xf32, #tpu.memory_space<vmem>>, vector<1x128x64xf32>
    %105 = vector.shape_cast %104 : vector<1x128x64xf32> to vector<128x64xf32>
    %cst_113 = arith.constant dense<0.000000e+00> : vector<2x64xf32>
    %106 = tpu.matmul %103, %105, %cst_113 {dimension_numbers = #tpu.dot_dimension_numbers<[1], [0], [0], [1], [0, 0, 1, 1], [], []>} : vector<2x128xf32>, vector<128x64xf32>, vector<2x64xf32> -> vector<2x64xf32>
    %107 = arith.addf %102, %106 : vector<2x64xf32>
    %c8 = arith.constant 8 : index
    %c0_114 = arith.constant 0 : index
    %108 = vector.load %arg26[%c8, %c0_114] : memref<16x128xf32, #tpu.memory_space<vmem>>, vector<2x128xf32>
    %c4_115 = arith.constant 4 : index
    %c0_116 = arith.constant 0 : index
    %c0_117 = arith.constant 0 : index
    %109 = vector.load %arg11[%c4_115, %c0_116, %c0_117] : memref<8x128x64xf32, #tpu.memory_space<vmem>>, vector<1x128x64xf32>
    %110 = vector.shape_cast %109 : vector<1x128x64xf32> to vector<128x64xf32>
    %cst_118 = arith.constant dense<0.000000e+00> : vector<2x64xf32>
    %111 = tpu.matmul %108, %110, %cst_118 {dimension_numbers = #tpu.dot_dimension_numbers<[1], [0], [0], [1], [0, 0, 1, 1], [], []>} : vector<2x128xf32>, vector<128x64xf32>, vector<2x64xf32> -> vector<2x64xf32>
    %112 = arith.addf %107, %111 : vector<2x64xf32>
    %c10 = arith.constant 10 : index
    %c0_119 = arith.constant 0 : index
    %113 = vector.load %arg26[%c10, %c0_119] : memref<16x128xf32, #tpu.memory_space<vmem>>, vector<2x128xf32>
    %c5 = arith.constant 5 : index
    %c0_120 = arith.constant 0 : index
    %c0_121 = arith.constant 0 : index
    %114 = vector.load %arg11[%c5, %c0_120, %c0_121] : memref<8x128x64xf32, #tpu.memory_space<vmem>>, vector<1x128x64xf32>
    %115 = vector.shape_cast %114 : vector<1x128x64xf32> to vector<128x64xf32>
    %cst_122 = arith.constant dense<0.000000e+00> : vector<2x64xf32>
    %116 = tpu.matmul %113, %115, %cst_122 {dimension_numbers = #tpu.dot_dimension_numbers<[1], [0], [0], [1], [0, 0, 1, 1], [], []>} : vector<2x128xf32>, vector<128x64xf32>, vector<2x64xf32> -> vector<2x64xf32>
    %117 = arith.addf %112, %116 : vector<2x64xf32>
    %c12 = arith.constant 12 : index
    %c0_123 = arith.constant 0 : index
    %118 = vector.load %arg26[%c12, %c0_123] : memref<16x128xf32, #tpu.memory_space<vmem>>, vector<2x128xf32>
    %c6_124 = arith.constant 6 : index
    %c0_125 = arith.constant 0 : index
    %c0_126 = arith.constant 0 : index
    %119 = vector.load %arg11[%c6_124, %c0_125, %c0_126] : memref<8x128x64xf32, #tpu.memory_space<vmem>>, vector<1x128x64xf32>
    %120 = vector.shape_cast %119 : vector<1x128x64xf32> to vector<128x64xf32>
    %cst_127 = arith.constant dense<0.000000e+00> : vector<2x64xf32>
    %121 = tpu.matmul %118, %120, %cst_127 {dimension_numbers = #tpu.dot_dimension_numbers<[1], [0], [0], [1], [0, 0, 1, 1], [], []>} : vector<2x128xf32>, vector<128x64xf32>, vector<2x64xf32> -> vector<2x64xf32>
    %122 = arith.addf %117, %121 : vector<2x64xf32>
    %c14 = arith.constant 14 : index
    %c0_128 = arith.constant 0 : index
    %123 = vector.load %arg26[%c14, %c0_128] : memref<16x128xf32, #tpu.memory_space<vmem>>, vector<2x128xf32>
    %c7 = arith.constant 7 : index
    %c0_129 = arith.constant 0 : index
    %c0_130 = arith.constant 0 : index
    %124 = vector.load %arg11[%c7, %c0_129, %c0_130] : memref<8x128x64xf32, #tpu.memory_space<vmem>>, vector<1x128x64xf32>
    %125 = vector.shape_cast %124 : vector<1x128x64xf32> to vector<128x64xf32>
    %cst_131 = arith.constant dense<0.000000e+00> : vector<2x64xf32>
    %126 = tpu.matmul %123, %125, %cst_131 {dimension_numbers = #tpu.dot_dimension_numbers<[1], [0], [0], [1], [0, 0, 1, 1], [], []>} : vector<2x128xf32>, vector<128x64xf32>, vector<2x64xf32> -> vector<2x64xf32>
    %127 = arith.addf %122, %126 : vector<2x64xf32>
    %c0_132 = arith.constant 0 : index
    %c0_133 = arith.constant 0 : index
    %128 = vector.load %arg12[%c0_132, %c0_133] : memref<1x64xf32, #tpu.memory_space<vmem>>, vector<1x64xf32>
    %129 = vector.broadcast %128 : vector<1x64xf32> to vector<2x64xf32>
    %130 = arith.addf %127, %129 : vector<2x64xf32>
    %131 = vector.extract_strided_slice %130 {offsets = [0, 0], sizes = [2, 32], strides = [1, 1]} : vector<2x64xf32> to vector<2x32xf32>
    %132 = vector.extract_strided_slice %130 {offsets = [0, 32], sizes = [2, 32], strides = [1, 1]} : vector<2x64xf32> to vector<2x32xf32>
    %cst_134 = arith.constant -1.000000e+01 : f32
    %cst_135 = arith.constant 1.000000e+01 : f32
    %133 = vector.broadcast %cst_134 : f32 to vector<2x32xf32>
    %134 = arith.maximumf %133, %132 : vector<2x32xf32>
    %135 = vector.broadcast %cst_135 : f32 to vector<2x32xf32>
    %136 = arith.minimumf %135, %134 : vector<2x32xf32>
    %cst_136 = arith.constant 5.000000e-01 : f32
    %137 = vector.broadcast %cst_136 : f32 to vector<2x32xf32>
    %138 = arith.mulf %137, %136 : vector<2x32xf32>
    %139 = math.exp %138 : vector<2x32xf32>
    %cst_137 = arith.constant 9.99999997E-7 : f32
    %140 = vector.broadcast %cst_137 : f32 to vector<2x32xf32>
    %141 = arith.addf %139, %140 : vector<2x32xf32>
    %c0_138 = arith.constant 0 : index
    %c0_139 = arith.constant 0 : index
    %142 = vector.load %arg2[%c0_138, %c0_139] : memref<2x32xf32, #tpu.memory_space<vmem>>, vector<2x32xf32>
    %143 = arith.mulf %142, %141 : vector<2x32xf32>
    %144 = arith.addf %131, %143 : vector<2x32xf32>
    %145 = tpu.iota {dimensions = array<i32: 1>} : vector<2x64xi32>
    %c32_i32 = arith.constant 32 : i32
    %146 = vector.broadcast %c32_i32 : i32 to vector<2x64xi32>
    %147 = arith.cmpi slt, %145, %146 : vector<2x64xi32>
    %cst_140 = arith.constant -1.000000e+01 : f32
    %cst_141 = arith.constant 1.000000e+01 : f32
    %148 = vector.broadcast %cst_140 : f32 to vector<2x64xf32>
    %149 = arith.maximumf %148, %130 : vector<2x64xf32>
    %150 = vector.broadcast %cst_141 : f32 to vector<2x64xf32>
    %151 = arith.minimumf %150, %149 : vector<2x64xf32>
    %152 = arith.select %147, %130, %151 : vector<2x64xi1>, vector<2x64xf32>
    %c0_142 = arith.constant 0 : index
    %c0_143 = arith.constant 0 : index
    %153 = vector.load %arg25[%c0_142, %c0_143] : memref<2x64xf32, #tpu.memory_space<vmem>>, vector<2x64xf32>
    tpu.vector_store %arg25[%c0_142, %c0_143], %152 {strides = array<i32>} : memref<2x64xf32, #tpu.memory_space<vmem>>, vector<2x64xf32>,
    %c0_144 = arith.constant 0 : index
    %c0_145 = arith.constant 0 : index
    %154 = vector.load %arg13[%c0_144, %c0_145] : memref<32x1024xf32, #tpu.memory_space<vmem>>, vector<32x1024xf32>
    %cst_146 = arith.constant dense<0.000000e+00> : vector<2x1024xf32>
    %155 = tpu.matmul %144, %154, %cst_146 {dimension_numbers = #tpu.dot_dimension_numbers<[1], [0], [0], [1], [0, 0, 1, 1], [], []>} : vector<2x32xf32>, vector<32x1024xf32>, vector<2x1024xf32> -> vector<2x1024xf32>
    %156 = vector.extract_strided_slice %155 {offsets = [0, 0], sizes = [2, 128], strides = [1, 1]} : vector<2x1024xf32> to vector<2x128xf32>
    %c0_147 = arith.constant 0 : index
    %c0_148 = arith.constant 0 : index
    %157 = vector.load %arg14[%c0_147, %c0_148] : memref<16x128xf32, #tpu.memory_space<vmem>>, vector<2x128xf32>
    %158 = arith.addf %156, %157 : vector<2x128xf32>
    %c0_149 = arith.constant 0 : index
    %c0_150 = arith.constant 0 : index
    %159 = vector.load %arg27[%c0_149, %c0_150] : memref<16x128xf32, #tpu.memory_space<vmem>>, vector<2x128xf32>
    tpu.vector_store %arg27[%c0_149, %c0_150], %158 {strides = array<i32>} : memref<16x128xf32, #tpu.memory_space<vmem>>, vector<2x128xf32>,
    %160 = vector.extract_strided_slice %155 {offsets = [0, 128], sizes = [2, 128], strides = [1, 1]} : vector<2x1024xf32> to vector<2x128xf32>
    %c2_151 = arith.constant 2 : index
    %c0_152 = arith.constant 0 : index
    %161 = vector.load %arg14[%c2_151, %c0_152] : memref<16x128xf32, #tpu.memory_space<vmem>>, vector<2x128xf32>
    %162 = arith.addf %160, %161 : vector<2x128xf32>
    %c2_153 = arith.constant 2 : index
    %c0_154 = arith.constant 0 : index
    %163 = vector.load %arg27[%c2_153, %c0_154] : memref<16x128xf32, #tpu.memory_space<vmem>>, vector<2x128xf32>
    tpu.vector_store %arg27[%c2_153, %c0_154], %162 {strides = array<i32>} : memref<16x128xf32, #tpu.memory_space<vmem>>, vector<2x128xf32>,
    %164 = vector.extract_strided_slice %155 {offsets = [0, 256], sizes = [2, 128], strides = [1, 1]} : vector<2x1024xf32> to vector<2x128xf32>
    %c4_155 = arith.constant 4 : index
    %c0_156 = arith.constant 0 : index
    %165 = vector.load %arg14[%c4_155, %c0_156] : memref<16x128xf32, #tpu.memory_space<vmem>>, vector<2x128xf32>
    %166 = arith.addf %164, %165 : vector<2x128xf32>
    %c4_157 = arith.constant 4 : index
    %c0_158 = arith.constant 0 : index
    %167 = vector.load %arg27[%c4_157, %c0_158] : memref<16x128xf32, #tpu.memory_space<vmem>>, vector<2x128xf32>
    tpu.vector_store %arg27[%c4_157, %c0_158], %166 {strides = array<i32>} : memref<16x128xf32, #tpu.memory_space<vmem>>, vector<2x128xf32>,
    %168 = vector.extract_strided_slice %155 {offsets = [0, 384], sizes = [2, 128], strides = [1, 1]} : vector<2x1024xf32> to vector<2x128xf32>
    %c6_159 = arith.constant 6 : index
    %c0_160 = arith.constant 0 : index
    %169 = vector.load %arg14[%c6_159, %c0_160] : memref<16x128xf32, #tpu.memory_space<vmem>>, vector<2x128xf32>
    %170 = arith.addf %168, %169 : vector<2x128xf32>
    %c6_161 = arith.constant 6 : index
    %c0_162 = arith.constant 0 : index
    %171 = vector.load %arg27[%c6_161, %c0_162] : memref<16x128xf32, #tpu.memory_space<vmem>>, vector<2x128xf32>
    tpu.vector_store %arg27[%c6_161, %c0_162], %170 {strides = array<i32>} : memref<16x128xf32, #tpu.memory_space<vmem>>, vector<2x128xf32>,
    %172 = vector.extract_strided_slice %155 {offsets = [0, 512], sizes = [2, 128], strides = [1, 1]} : vector<2x1024xf32> to vector<2x128xf32>
    %c8_163 = arith.constant 8 : index
    %c0_164 = arith.constant 0 : index
    %173 = vector.load %arg14[%c8_163, %c0_164] : memref<16x128xf32, #tpu.memory_space<vmem>>, vector<2x128xf32>
    %174 = arith.addf %172, %173 : vector<2x128xf32>
    %c8_165 = arith.constant 8 : index
    %c0_166 = arith.constant 0 : index
    %175 = vector.load %arg27[%c8_165, %c0_166] : memref<16x128xf32, #tpu.memory_space<vmem>>, vector<2x128xf32>
    tpu.vector_store %arg27[%c8_165, %c0_166], %174 {strides = array<i32>} : memref<16x128xf32, #tpu.memory_space<vmem>>, vector<2x128xf32>,
    %176 = vector.extract_strided_slice %155 {offsets = [0, 640], sizes = [2, 128], strides = [1, 1]} : vector<2x1024xf32> to vector<2x128xf32>
    %c10_167 = arith.constant 10 : index
    %c0_168 = arith.constant 0 : index
    %177 = vector.load %arg14[%c10_167, %c0_168] : memref<16x128xf32, #tpu.memory_space<vmem>>, vector<2x128xf32>
    %178 = arith.addf %176, %177 : vector<2x128xf32>
    %c10_169 = arith.constant 10 : index
    %c0_170 = arith.constant 0 : index
    %179 = vector.load %arg27[%c10_169, %c0_170] : memref<16x128xf32, #tpu.memory_space<vmem>>, vector<2x128xf32>
    tpu.vector_store %arg27[%c10_169, %c0_170], %178 {strides = array<i32>} : memref<16x128xf32, #tpu.memory_space<vmem>>, vector<2x128xf32>,
    %180 = vector.extract_strided_slice %155 {offsets = [0, 768], sizes = [2, 128], strides = [1, 1]} : vector<2x1024xf32> to vector<2x128xf32>
    %c12_171 = arith.constant 12 : index
    %c0_172 = arith.constant 0 : index
    %181 = vector.load %arg14[%c12_171, %c0_172] : memref<16x128xf32, #tpu.memory_space<vmem>>, vector<2x128xf32>
    %182 = arith.addf %180, %181 : vector<2x128xf32>
    %c12_173 = arith.constant 12 : index
    %c0_174 = arith.constant 0 : index
    %183 = vector.load %arg27[%c12_173, %c0_174] : memref<16x128xf32, #tpu.memory_space<vmem>>, vector<2x128xf32>
    tpu.vector_store %arg27[%c12_173, %c0_174], %182 {strides = array<i32>} : memref<16x128xf32, #tpu.memory_space<vmem>>, vector<2x128xf32>,
    %184 = vector.extract_strided_slice %155 {offsets = [0, 896], sizes = [2, 128], strides = [1, 1]} : vector<2x1024xf32> to vector<2x128xf32>
    %c14_175 = arith.constant 14 : index
    %c0_176 = arith.constant 0 : index
    %185 = vector.load %arg14[%c14_175, %c0_176] : memref<16x128xf32, #tpu.memory_space<vmem>>, vector<2x128xf32>
    %186 = arith.addf %184, %185 : vector<2x128xf32>
    %c14_177 = arith.constant 14 : index
    %c0_178 = arith.constant 0 : index
    %187 = vector.load %arg27[%c14_177, %c0_178] : memref<16x128xf32, #tpu.memory_space<vmem>>, vector<2x128xf32>
    tpu.vector_store %arg27[%c14_177, %c0_178], %186 {strides = array<i32>} : memref<16x128xf32, #tpu.memory_space<vmem>>, vector<2x128xf32>,
    %c0_179 = arith.constant 0 : index
    %c0_180 = arith.constant 0 : index
    %188 = vector.load %arg27[%c0_179, %c0_180] : memref<16x128xf32, #tpu.memory_space<vmem>>, vector<16x128xf32>
    %c0_181 = arith.constant 0 : index
    %c0_182 = arith.constant 0 : index
    %c0_183 = arith.constant 0 : index
    %189 = vector.load %arg15[%c0_181, %c0_182, %c0_183] : memref<5x32x16xf32, #tpu.memory_space<vmem>>, vector<1x32x16xf32>
    %190 = vector.shape_cast %189 : vector<1x32x16xf32> to vector<32x16xf32>
    %cst_184 = arith.constant dense<0.000000e+00> : vector<32x128xf32>
    %191 = tpu.matmul %190, %188, %cst_184 {dimension_numbers = #tpu.dot_dimension_numbers<[1], [0], [0], [1], [0, 0, 1, 1], [], []>} : vector<32x16xf32>, vector<16x128xf32>, vector<32x128xf32> -> vector<32x128xf32>
    %c0_185 = arith.constant 0 : index
    %c0_186 = arith.constant 0 : index
    %c0_187 = arith.constant 0 : index
    %192 = vector.load %arg16[%c0_185, %c0_186, %c0_187] : memref<5x128x64xf32, #tpu.memory_space<vmem>>, vector<1x128x64xf32>
    %193 = vector.shape_cast %192 : vector<1x128x64xf32> to vector<128x64xf32>
    %cst_188 = arith.constant dense<0.000000e+00> : vector<32x64xf32>
    %194 = tpu.matmul %191, %193, %cst_188 {dimension_numbers = #tpu.dot_dimension_numbers<[1], [0], [0], [1], [0, 0, 1, 1], [], []>} : vector<32x128xf32>, vector<128x64xf32>, vector<32x64xf32> -> vector<32x64xf32>
    %c1_189 = arith.constant 1 : index
    %c0_190 = arith.constant 0 : index
    %c0_191 = arith.constant 0 : index
    %195 = vector.load %arg15[%c1_189, %c0_190, %c0_191] : memref<5x32x16xf32, #tpu.memory_space<vmem>>, vector<1x32x16xf32>
    %196 = vector.shape_cast %195 : vector<1x32x16xf32> to vector<32x16xf32>
    %cst_192 = arith.constant dense<0.000000e+00> : vector<32x128xf32>
    %197 = tpu.matmul %196, %188, %cst_192 {dimension_numbers = #tpu.dot_dimension_numbers<[1], [0], [0], [1], [0, 0, 1, 1], [], []>} : vector<32x16xf32>, vector<16x128xf32>, vector<32x128xf32> -> vector<32x128xf32>
    %c1_193 = arith.constant 1 : index
    %c0_194 = arith.constant 0 : index
    %c0_195 = arith.constant 0 : index
    %198 = vector.load %arg16[%c1_193, %c0_194, %c0_195] : memref<5x128x64xf32, #tpu.memory_space<vmem>>, vector<1x128x64xf32>
    %199 = vector.shape_cast %198 : vector<1x128x64xf32> to vector<128x64xf32>
    %cst_196 = arith.constant dense<0.000000e+00> : vector<32x64xf32>
    %200 = tpu.matmul %197, %199, %cst_196 {dimension_numbers = #tpu.dot_dimension_numbers<[1], [0], [0], [1], [0, 0, 1, 1], [], []>} : vector<32x128xf32>, vector<128x64xf32>, vector<32x64xf32> -> vector<32x64xf32>
    %201 = arith.addf %194, %200 : vector<32x64xf32>
    %c2_197 = arith.constant 2 : index
    %c0_198 = arith.constant 0 : index
    %c0_199 = arith.constant 0 : index
    %202 = vector.load %arg15[%c2_197, %c0_198, %c0_199] : memref<5x32x16xf32, #tpu.memory_space<vmem>>, vector<1x32x16xf32>
    %203 = vector.shape_cast %202 : vector<1x32x16xf32> to vector<32x16xf32>
    %cst_200 = arith.constant dense<0.000000e+00> : vector<32x128xf32>
    %204 = tpu.matmul %203, %188, %cst_200 {dimension_numbers = #tpu.dot_dimension_numbers<[1], [0], [0], [1], [0, 0, 1, 1], [], []>} : vector<32x16xf32>, vector<16x128xf32>, vector<32x128xf32> -> vector<32x128xf32>
    %c2_201 = arith.constant 2 : index
    %c0_202 = arith.constant 0 : index
    %c0_203 = arith.constant 0 : index
    %205 = vector.load %arg16[%c2_201, %c0_202, %c0_203] : memref<5x128x64xf32, #tpu.memory_space<vmem>>, vector<1x128x64xf32>
    %206 = vector.shape_cast %205 : vector<1x128x64xf32> to vector<128x64xf32>
    %cst_204 = arith.constant dense<0.000000e+00> : vector<32x64xf32>
    %207 = tpu.matmul %204, %206, %cst_204 {dimension_numbers = #tpu.dot_dimension_numbers<[1], [0], [0], [1], [0, 0, 1, 1], [], []>} : vector<32x128xf32>, vector<128x64xf32>, vector<32x64xf32> -> vector<32x64xf32>
    %208 = arith.addf %201, %207 : vector<32x64xf32>
    %c3_205 = arith.constant 3 : index
    %c0_206 = arith.constant 0 : index
    %c0_207 = arith.constant 0 : index
    %209 = vector.load %arg15[%c3_205, %c0_206, %c0_207] : memref<5x32x16xf32, #tpu.memory_space<vmem>>, vector<1x32x16xf32>
    %210 = vector.shape_cast %209 : vector<1x32x16xf32> to vector<32x16xf32>
    %cst_208 = arith.constant dense<0.000000e+00> : vector<32x128xf32>
    %211 = tpu.matmul %210, %188, %cst_208 {dimension_numbers = #tpu.dot_dimension_numbers<[1], [0], [0], [1], [0, 0, 1, 1], [], []>} : vector<32x16xf32>, vector<16x128xf32>, vector<32x128xf32> -> vector<32x128xf32>
    %c3_209 = arith.constant 3 : index
    %c0_210 = arith.constant 0 : index
    %c0_211 = arith.constant 0 : index
    %212 = vector.load %arg16[%c3_209, %c0_210, %c0_211] : memref<5x128x64xf32, #tpu.memory_space<vmem>>, vector<1x128x64xf32>
    %213 = vector.shape_cast %212 : vector<1x128x64xf32> to vector<128x64xf32>
    %cst_212 = arith.constant dense<0.000000e+00> : vector<32x64xf32>
    %214 = tpu.matmul %211, %213, %cst_212 {dimension_numbers = #tpu.dot_dimension_numbers<[1], [0], [0], [1], [0, 0, 1, 1], [], []>} : vector<32x128xf32>, vector<128x64xf32>, vector<32x64xf32> -> vector<32x64xf32>
    %215 = arith.addf %208, %214 : vector<32x64xf32>
    %c4_213 = arith.constant 4 : index
    %c0_214 = arith.constant 0 : index
    %c0_215 = arith.constant 0 : index
    %216 = vector.load %arg15[%c4_213, %c0_214, %c0_215] : memref<5x32x16xf32, #tpu.memory_space<vmem>>, vector<1x32x16xf32>
    %217 = vector.shape_cast %216 : vector<1x32x16xf32> to vector<32x16xf32>
    %cst_216 = arith.constant dense<0.000000e+00> : vector<32x128xf32>
    %218 = tpu.matmul %217, %188, %cst_216 {dimension_numbers = #tpu.dot_dimension_numbers<[1], [0], [0], [1], [0, 0, 1, 1], [], []>} : vector<32x16xf32>, vector<16x128xf32>, vector<32x128xf32> -> vector<32x128xf32>
    %c4_217 = arith.constant 4 : index
    %c0_218 = arith.constant 0 : index
    %c0_219 = arith.constant 0 : index
    %219 = vector.load %arg16[%c4_217, %c0_218, %c0_219] : memref<5x128x64xf32, #tpu.memory_space<vmem>>, vector<1x128x64xf32>
    %220 = vector.shape_cast %219 : vector<1x128x64xf32> to vector<128x64xf32>
    %cst_220 = arith.constant dense<0.000000e+00> : vector<32x64xf32>
    %221 = tpu.matmul %218, %220, %cst_220 {dimension_numbers = #tpu.dot_dimension_numbers<[1], [0], [0], [1], [0, 0, 1, 1], [], []>} : vector<32x128xf32>, vector<128x64xf32>, vector<32x64xf32> -> vector<32x64xf32>
    %222 = arith.addf %215, %221 : vector<32x64xf32>
    %c0_221 = arith.constant 0 : index
    %c0_222 = arith.constant 0 : index
    %223 = vector.load %arg17[%c0_221, %c0_222] : memref<1x64xf32, #tpu.memory_space<vmem>>, vector<1x64xf32>
    %224 = vector.broadcast %223 : vector<1x64xf32> to vector<32x64xf32>
    %225 = arith.addf %222, %224 : vector<32x64xf32>
    %cst_223 = arith.constant 0.000000e+00 : f32
    %226 = vector.broadcast %cst_223 : f32 to vector<32x64xf32>
    %227 = arith.maximumf %225, %226 : vector<32x64xf32>
    %c0_224 = arith.constant 0 : index
    %c0_225 = arith.constant 0 : index
    %c0_226 = arith.constant 0 : index
    %228 = vector.load %arg18[%c0_224, %c0_225, %c0_226] : memref<5x64x32xf32, #tpu.memory_space<vmem>>, vector<1x64x32xf32>
    %229 = vector.shape_cast %228 : vector<1x64x32xf32> to vector<64x32xf32>
    %cst_227 = arith.constant dense<0.000000e+00> : vector<64x64xf32>
    %230 = tpu.matmul %229, %227, %cst_227 {dimension_numbers = #tpu.dot_dimension_numbers<[1], [0], [0], [1], [0, 0, 1, 1], [], []>} : vector<64x32xf32>, vector<32x64xf32>, vector<64x64xf32> -> vector<64x64xf32>
    %c0_228 = arith.constant 0 : index
    %c0_229 = arith.constant 0 : index
    %c0_230 = arith.constant 0 : index
    %231 = vector.load %arg19[%c0_228, %c0_229, %c0_230] : memref<5x64x32xf32, #tpu.memory_space<vmem>>, vector<1x64x32xf32>
    %232 = vector.shape_cast %231 : vector<1x64x32xf32> to vector<64x32xf32>
    %cst_231 = arith.constant dense<0.000000e+00> : vector<64x32xf32>
    %233 = tpu.matmul %230, %232, %cst_231 {dimension_numbers = #tpu.dot_dimension_numbers<[1], [0], [0], [1], [0, 0, 1, 1], [], []>} : vector<64x64xf32>, vector<64x32xf32>, vector<64x32xf32> -> vector<64x32xf32>
    %c1_232 = arith.constant 1 : index
    %c0_233 = arith.constant 0 : index
    %c0_234 = arith.constant 0 : index
    %234 = vector.load %arg18[%c1_232, %c0_233, %c0_234] : memref<5x64x32xf32, #tpu.memory_space<vmem>>, vector<1x64x32xf32>
    %235 = vector.shape_cast %234 : vector<1x64x32xf32> to vector<64x32xf32>
    %cst_235 = arith.constant dense<0.000000e+00> : vector<64x64xf32>
    %236 = tpu.matmul %235, %227, %cst_235 {dimension_numbers = #tpu.dot_dimension_numbers<[1], [0], [0], [1], [0, 0, 1, 1], [], []>} : vector<64x32xf32>, vector<32x64xf32>, vector<64x64xf32> -> vector<64x64xf32>
    %c1_236 = arith.constant 1 : index
    %c0_237 = arith.constant 0 : index
    %c0_238 = arith.constant 0 : index
    %237 = vector.load %arg19[%c1_236, %c0_237, %c0_238] : memref<5x64x32xf32, #tpu.memory_space<vmem>>, vector<1x64x32xf32>
    %238 = vector.shape_cast %237 : vector<1x64x32xf32> to vector<64x32xf32>
    %cst_239 = arith.constant dense<0.000000e+00> : vector<64x32xf32>
    %239 = tpu.matmul %236, %238, %cst_239 {dimension_numbers = #tpu.dot_dimension_numbers<[1], [0], [0], [1], [0, 0, 1, 1], [], []>} : vector<64x64xf32>, vector<64x32xf32>, vector<64x32xf32> -> vector<64x32xf32>
    %240 = arith.addf %233, %239 : vector<64x32xf32>
    %c2_240 = arith.constant 2 : index
    %c0_241 = arith.constant 0 : index
    %c0_242 = arith.constant 0 : index
    %241 = vector.load %arg18[%c2_240, %c0_241, %c0_242] : memref<5x64x32xf32, #tpu.memory_space<vmem>>, vector<1x64x32xf32>
    %242 = vector.shape_cast %241 : vector<1x64x32xf32> to vector<64x32xf32>
    %cst_243 = arith.constant dense<0.000000e+00> : vector<64x64xf32>
    %243 = tpu.matmul %242, %227, %cst_243 {dimension_numbers = #tpu.dot_dimension_numbers<[1], [0], [0], [1], [0, 0, 1, 1], [], []>} : vector<64x32xf32>, vector<32x64xf32>, vector<64x64xf32> -> vector<64x64xf32>
    %c2_244 = arith.constant 2 : index
    %c0_245 = arith.constant 0 : index
    %c0_246 = arith.constant 0 : index
    %244 = vector.load %arg19[%c2_244, %c0_245, %c0_246] : memref<5x64x32xf32, #tpu.memory_space<vmem>>, vector<1x64x32xf32>
    %245 = vector.shape_cast %244 : vector<1x64x32xf32> to vector<64x32xf32>
    %cst_247 = arith.constant dense<0.000000e+00> : vector<64x32xf32>
    %246 = tpu.matmul %243, %245, %cst_247 {dimension_numbers = #tpu.dot_dimension_numbers<[1], [0], [0], [1], [0, 0, 1, 1], [], []>} : vector<64x64xf32>, vector<64x32xf32>, vector<64x32xf32> -> vector<64x32xf32>
    %247 = arith.addf %240, %246 : vector<64x32xf32>
    %c3_248 = arith.constant 3 : index
    %c0_249 = arith.constant 0 : index
    %c0_250 = arith.constant 0 : index
    %248 = vector.load %arg18[%c3_248, %c0_249, %c0_250] : memref<5x64x32xf32, #tpu.memory_space<vmem>>, vector<1x64x32xf32>
    %249 = vector.shape_cast %248 : vector<1x64x32xf32> to vector<64x32xf32>
    %cst_251 = arith.constant dense<0.000000e+00> : vector<64x64xf32>
    %250 = tpu.matmul %249, %227, %cst_251 {dimension_numbers = #tpu.dot_dimension_numbers<[1], [0], [0], [1], [0, 0, 1, 1], [], []>} : vector<64x32xf32>, vector<32x64xf32>, vector<64x64xf32> -> vector<64x64xf32>
    %c3_252 = arith.constant 3 : index
    %c0_253 = arith.constant 0 : index
    %c0_254 = arith.constant 0 : index
    %251 = vector.load %arg19[%c3_252, %c0_253, %c0_254] : memref<5x64x32xf32, #tpu.memory_space<vmem>>, vector<1x64x32xf32>
    %252 = vector.shape_cast %251 : vector<1x64x32xf32> to vector<64x32xf32>
    %cst_255 = arith.constant dense<0.000000e+00> : vector<64x32xf32>
    %253 = tpu.matmul %250, %252, %cst_255 {dimension_numbers = #tpu.dot_dimension_numbers<[1], [0], [0], [1], [0, 0, 1, 1], [], []>} : vector<64x64xf32>, vector<64x32xf32>, vector<64x32xf32> -> vector<64x32xf32>
    %254 = arith.addf %247, %253 : vector<64x32xf32>
    %c4_256 = arith.constant 4 : index
    %c0_257 = arith.constant 0 : index
    %c0_258 = arith.constant 0 : index
    %255 = vector.load %arg18[%c4_256, %c0_257, %c0_258] : memref<5x64x32xf32, #tpu.memory_space<vmem>>, vector<1x64x32xf32>
    %256 = vector.shape_cast %255 : vector<1x64x32xf32> to vector<64x32xf32>
    %cst_259 = arith.constant dense<0.000000e+00> : vector<64x64xf32>
    %257 = tpu.matmul %256, %227, %cst_259 {dimension_numbers = #tpu.dot_dimension_numbers<[1], [0], [0], [1], [0, 0, 1, 1], [], []>} : vector<64x32xf32>, vector<32x64xf32>, vector<64x64xf32> -> vector<64x64xf32>
    %c4_260 = arith.constant 4 : index
    %c0_261 = arith.constant 0 : index
    %c0_262 = arith.constant 0 : index
    %258 = vector.load %arg19[%c4_260, %c0_261, %c0_262] : memref<5x64x32xf32, #tpu.memory_space<vmem>>, vector<1x64x32xf32>
    %259 = vector.shape_cast %258 : vector<1x64x32xf32> to vector<64x32xf32>
    %cst_263 = arith.constant dense<0.000000e+00> : vector<64x32xf32>
    %260 = tpu.matmul %257, %259, %cst_263 {dimension_numbers = #tpu.dot_dimension_numbers<[1], [0], [0], [1], [0, 0, 1, 1], [], []>} : vector<64x64xf32>, vector<64x32xf32>, vector<64x32xf32> -> vector<64x32xf32>
    %261 = arith.addf %254, %260 : vector<64x32xf32>
    %c0_264 = arith.constant 0 : index
    %c0_265 = arith.constant 0 : index
    %262 = vector.load %arg20[%c0_264, %c0_265] : memref<1x32xf32, #tpu.memory_space<vmem>>, vector<1x32xf32>
    %263 = vector.broadcast %262 : vector<1x32xf32> to vector<64x32xf32>
    %264 = arith.addf %261, %263 : vector<64x32xf32>
    %cst_266 = arith.constant 0.000000e+00 : f32
    %265 = vector.broadcast %cst_266 : f32 to vector<64x32xf32>
    %266 = arith.maximumf %264, %265 : vector<64x32xf32>
    %c0_267 = arith.constant 0 : index
    %c0_268 = arith.constant 0 : index
    %c0_269 = arith.constant 0 : index
    %267 = vector.load %arg21[%c0_267, %c0_268, %c0_269] : memref<5x128x64xf32, #tpu.memory_space<vmem>>, vector<1x128x64xf32>
    %268 = vector.shape_cast %267 : vector<1x128x64xf32> to vector<128x64xf32>
    %cst_270 = arith.constant dense<0.000000e+00> : vector<128x32xf32>
    %269 = tpu.matmul %268, %266, %cst_270 {dimension_numbers = #tpu.dot_dimension_numbers<[1], [0], [0], [1], [0, 0, 1, 1], [], []>} : vector<128x64xf32>, vector<64x32xf32>, vector<128x32xf32> -> vector<128x32xf32>
    %c0_271 = arith.constant 0 : index
    %c0_272 = arith.constant 0 : index
    %c0_273 = arith.constant 0 : index
    %270 = vector.load %arg22[%c0_271, %c0_272, %c0_273] : memref<5x32x1xf32, #tpu.memory_space<vmem>>, vector<1x32x1xf32>
    %271 = vector.shape_cast %270 : vector<1x32x1xf32> to vector<32x1xf32>
    %cst_274 = arith.constant dense<0.000000e+00> : vector<128x1xf32>
    %272 = tpu.matmul %269, %271, %cst_274 {dimension_numbers = #tpu.dot_dimension_numbers<[1], [0], [0], [1], [0, 0, 1, 1], [], []>} : vector<128x32xf32>, vector<32x1xf32>, vector<128x1xf32> -> vector<128x1xf32>
    %c1_275 = arith.constant 1 : index
    %c0_276 = arith.constant 0 : index
    %c0_277 = arith.constant 0 : index
    %273 = vector.load %arg21[%c1_275, %c0_276, %c0_277] : memref<5x128x64xf32, #tpu.memory_space<vmem>>, vector<1x128x64xf32>
    %274 = vector.shape_cast %273 : vector<1x128x64xf32> to vector<128x64xf32>
    %cst_278 = arith.constant dense<0.000000e+00> : vector<128x32xf32>
    %275 = tpu.matmul %274, %266, %cst_278 {dimension_numbers = #tpu.dot_dimension_numbers<[1], [0], [0], [1], [0, 0, 1, 1], [], []>} : vector<128x64xf32>, vector<64x32xf32>, vector<128x32xf32> -> vector<128x32xf32>
    %c1_279 = arith.constant 1 : index
    %c0_280 = arith.constant 0 : index
    %c0_281 = arith.constant 0 : index
    %276 = vector.load %arg22[%c1_279, %c0_280, %c0_281] : memref<5x32x1xf32, #tpu.memory_space<vmem>>, vector<1x32x1xf32>
    %277 = vector.shape_cast %276 : vector<1x32x1xf32> to vector<32x1xf32>
    %cst_282 = arith.constant dense<0.000000e+00> : vector<128x1xf32>
    %278 = tpu.matmul %275, %277, %cst_282 {dimension_numbers = #tpu.dot_dimension_numbers<[1], [0], [0], [1], [0, 0, 1, 1], [], []>} : vector<128x32xf32>, vector<32x1xf32>, vector<128x1xf32> -> vector<128x1xf32>
    %279 = arith.addf %272, %278 : vector<128x1xf32>
    %c2_283 = arith.constant 2 : index
    %c0_284 = arith.constant 0 : index
    %c0_285 = arith.constant 0 : index
    %280 = vector.load %arg21[%c2_283, %c0_284, %c0_285] : memref<5x128x64xf32, #tpu.memory_space<vmem>>, vector<1x128x64xf32>
    %281 = vector.shape_cast %280 : vector<1x128x64xf32> to vector<128x64xf32>
    %cst_286 = arith.constant dense<0.000000e+00> : vector<128x32xf32>
    %282 = tpu.matmul %281, %266, %cst_286 {dimension_numbers = #tpu.dot_dimension_numbers<[1], [0], [0], [1], [0, 0, 1, 1], [], []>} : vector<128x64xf32>, vector<64x32xf32>, vector<128x32xf32> -> vector<128x32xf32>
    %c2_287 = arith.constant 2 : index
    %c0_288 = arith.constant 0 : index
    %c0_289 = arith.constant 0 : index
    %283 = vector.load %arg22[%c2_287, %c0_288, %c0_289] : memref<5x32x1xf32, #tpu.memory_space<vmem>>, vector<1x32x1xf32>
    %284 = vector.shape_cast %283 : vector<1x32x1xf32> to vector<32x1xf32>
    %cst_290 = arith.constant dense<0.000000e+00> : vector<128x1xf32>
    %285 = tpu.matmul %282, %284, %cst_290 {dimension_numbers = #tpu.dot_dimension_numbers<[1], [0], [0], [1], [0, 0, 1, 1], [], []>} : vector<128x32xf32>, vector<32x1xf32>, vector<128x1xf32> -> vector<128x1xf32>
    %286 = arith.addf %279, %285 : vector<128x1xf32>
    %c3_291 = arith.constant 3 : index
    %c0_292 = arith.constant 0 : index
    %c0_293 = arith.constant 0 : index
    %287 = vector.load %arg21[%c3_291, %c0_292, %c0_293] : memref<5x128x64xf32, #tpu.memory_space<vmem>>, vector<1x128x64xf32>
    %288 = vector.shape_cast %287 : vector<1x128x64xf32> to vector<128x64xf32>
    %cst_294 = arith.constant dense<0.000000e+00> : vector<128x32xf32>
    %289 = tpu.matmul %288, %266, %cst_294 {dimension_numbers = #tpu.dot_dimension_numbers<[1], [0], [0], [1], [0, 0, 1, 1], [], []>} : vector<128x64xf32>, vector<64x32xf32>, vector<128x32xf32> -> vector<128x32xf32>
    %c3_295 = arith.constant 3 : index
    %c0_296 = arith.constant 0 : index
    %c0_297 = arith.constant 0 : index
    %290 = vector.load %arg22[%c3_295, %c0_296, %c0_297] : memref<5x32x1xf32, #tpu.memory_space<vmem>>, vector<1x32x1xf32>
    %291 = vector.shape_cast %290 : vector<1x32x1xf32> to vector<32x1xf32>
    %cst_298 = arith.constant dense<0.000000e+00> : vector<128x1xf32>
    %292 = tpu.matmul %289, %291, %cst_298 {dimension_numbers = #tpu.dot_dimension_numbers<[1], [0], [0], [1], [0, 0, 1, 1], [], []>} : vector<128x32xf32>, vector<32x1xf32>, vector<128x1xf32> -> vector<128x1xf32>
    %293 = arith.addf %286, %292 : vector<128x1xf32>
    %c4_299 = arith.constant 4 : index
    %c0_300 = arith.constant 0 : index
    %c0_301 = arith.constant 0 : index
    %294 = vector.load %arg21[%c4_299, %c0_300, %c0_301] : memref<5x128x64xf32, #tpu.memory_space<vmem>>, vector<1x128x64xf32>
    %295 = vector.shape_cast %294 : vector<1x128x64xf32> to vector<128x64xf32>
    %cst_302 = arith.constant dense<0.000000e+00> : vector<128x32xf32>
    %296 = tpu.matmul %295, %266, %cst_302 {dimension_numbers = #tpu.dot_dimension_numbers<[1], [0], [0], [1], [0, 0, 1, 1], [], []>} : vector<128x64xf32>, vector<64x32xf32>, vector<128x32xf32> -> vector<128x32xf32>
    %c4_303 = arith.constant 4 : index
    %c0_304 = arith.constant 0 : index
    %c0_305 = arith.constant 0 : index
    %297 = vector.load %arg22[%c4_303, %c0_304, %c0_305] : memref<5x32x1xf32, #tpu.memory_space<vmem>>, vector<1x32x1xf32>
    %298 = vector.shape_cast %297 : vector<1x32x1xf32> to vector<32x1xf32>
    %cst_306 = arith.constant dense<0.000000e+00> : vector<128x1xf32>
    %299 = tpu.matmul %296, %298, %cst_306 {dimension_numbers = #tpu.dot_dimension_numbers<[1], [0], [0], [1], [0, 0, 1, 1], [], []>} : vector<128x32xf32>, vector<32x1xf32>, vector<128x1xf32> -> vector<128x1xf32>
    %300 = arith.addf %293, %299 : vector<128x1xf32>
    %c0_307 = arith.constant 0 : index
    %c0_308 = arith.constant 0 : index
    %301 = vector.load %arg23[%c0_307, %c0_308] : memref<1x1xf32, #tpu.memory_space<vmem>>, vector<1x1xf32>
    %302 = vector.broadcast %301 : vector<1x1xf32> to vector<128x1xf32>
    %303 = arith.addf %300, %302 : vector<128x1xf32>
    %304 = math.tanh %303 : vector<128x1xf32>
    %c0_309 = arith.constant 0 : index
    %c0_310 = arith.constant 0 : index
    %305 = vector.load %arg24[%c0_309, %c0_310] : memref<128x1xf32, #tpu.memory_space<vmem>>, vector<128x1xf32>
    tpu.vector_store %arg24[%c0_309, %c0_310], %304 {strides = array<i32>} : memref<128x1xf32, #tpu.memory_space<vmem>>, vector<128x1xf32>,
    return
  }
  func.func @transform_0(%arg0: i32) -> (i32, i32) {
    %c0_i32 = arith.constant 0 : i32
    %c0_i32_0 = arith.constant 0 : i32
    %c0_i32_1 = arith.constant 0 : i32
    return %c0_i32, %c0_i32_0 : i32, i32
  }
  func.func @transform_1(%arg0: i32) -> (i32, i32) {
    %c0_i32 = arith.constant 0 : i32
    %c0_i32_0 = arith.constant 0 : i32
    %c0_i32_1 = arith.constant 0 : i32
    return %c0_i32, %c0_i32_0 : i32, i32
  }
  func.func @transform_2(%arg0: i32) -> (i32, i32) {
    %c0_i32 = arith.constant 0 : i32
    %c0_i32_0 = arith.constant 0 : i32
    %c0_i32_1 = arith.constant 0 : i32
    return %c0_i32, %c0_i32_0 : i32, i32
  }
  func.func @transform_3(%arg0: i32) -> (i32, i32) {
    %c0_i32 = arith.constant 0 : i32
    %c0_i32_0 = arith.constant 0 : i32
    %c0_i32_1 = arith.constant 0 : i32
    return %c0_i32, %c0_i32_0 : i32, i32
  }
  func.func @transform_4(%arg0: i32) -> (i32, i32, i32) {
    %c0_i32 = arith.constant 0 : i32
    %c0_i32_0 = arith.constant 0 : i32
    %c0_i32_1 = arith.constant 0 : i32
    %c0_i32_2 = arith.constant 0 : i32
    return %c0_i32, %c0_i32_0, %c0_i32_1 : i32, i32, i32
  }
  func.func @transform_5(%arg0: i32) -> (i32, i32, i32) {
    %c0_i32 = arith.constant 0 : i32
    %c0_i32_0 = arith.constant 0 : i32
    %c0_i32_1 = arith.constant 0 : i32
    %c0_i32_2 = arith.constant 0 : i32
    return %c0_i32, %c0_i32_0, %c0_i32_1 : i32, i32, i32
  }
  func.func @transform_6(%arg0: i32) -> (i32, i32) {
    %c0_i32 = arith.constant 0 : i32
    %c0_i32_0 = arith.constant 0 : i32
    %c0_i32_1 = arith.constant 0 : i32
    return %c0_i32, %c0_i32_0 : i32, i32
  }
  func.func @transform_7(%arg0: i32) -> (i32, i32, i32) {
    %c0_i32 = arith.constant 0 : i32
    %c0_i32_0 = arith.constant 0 : i32
    %c0_i32_1 = arith.constant 0 : i32
    %c0_i32_2 = arith.constant 0 : i32
    return %c0_i32, %c0_i32_0, %c0_i32_1 : i32, i32, i32
  }
  func.func @transform_8(%arg0: i32) -> (i32, i32, i32) {
    %c0_i32 = arith.constant 0 : i32
    %c0_i32_0 = arith.constant 0 : i32
    %c0_i32_1 = arith.constant 0 : i32
    %c0_i32_2 = arith.constant 0 : i32
    return %c0_i32, %c0_i32_0, %c0_i32_1 : i32, i32, i32
  }
  func.func @transform_9(%arg0: i32) -> (i32, i32) {
    %c0_i32 = arith.constant 0 : i32
    %c0_i32_0 = arith.constant 0 : i32
    %c0_i32_1 = arith.constant 0 : i32
    return %c0_i32, %c0_i32_0 : i32, i32
  }
  func.func @transform_10(%arg0: i32) -> (i32, i32, i32) {
    %c0_i32 = arith.constant 0 : i32
    %c0_i32_0 = arith.constant 0 : i32
    %c0_i32_1 = arith.constant 0 : i32
    %c0_i32_2 = arith.constant 0 : i32
    return %c0_i32, %c0_i32_0, %c0_i32_1 : i32, i32, i32
  }
  func.func @transform_11(%arg0: i32) -> (i32, i32) {
    %c0_i32 = arith.constant 0 : i32
    %c0_i32_0 = arith.constant 0 : i32
    %c0_i32_1 = arith.constant 0 : i32
    return %c0_i32, %c0_i32_0 : i32, i32
  }
  func.func @transform_12(%arg0: i32) -> (i32, i32) {
    %c0_i32 = arith.constant 0 : i32
    %c0_i32_0 = arith.constant 0 : i32
    %c0_i32_1 = arith.constant 0 : i32
    return %c0_i32, %c0_i32_0 : i32, i32
  }
  func.func @transform_13(%arg0: i32) -> (i32, i32) {
    %c0_i32 = arith.constant 0 : i32
    %c0_i32_0 = arith.constant 0 : i32
    %c0_i32_1 = arith.constant 0 : i32
    return %c0_i32, %c0_i32_0 : i32, i32
  }
  func.func @transform_14(%arg0: i32) -> (i32, i32, i32) {
    %c0_i32 = arith.constant 0 : i32
    %c0_i32_0 = arith.constant 0 : i32
    %c0_i32_1 = arith.constant 0 : i32
    %c0_i32_2 = arith.constant 0 : i32
    return %c0_i32, %c0_i32_0, %c0_i32_1 : i32, i32, i32
  }
  func.func @transform_15(%arg0: i32) -> (i32, i32, i32) {
    %c0_i32 = arith.constant 0 : i32
    %c0_i32_0 = arith.constant 0 : i32
    %c0_i32_1 = arith.constant 0 : i32
    %c0_i32_2 = arith.constant 0 : i32
    return %c0_i32, %c0_i32_0, %c0_i32_1 : i32, i32, i32
  }
  func.func @transform_16(%arg0: i32) -> (i32, i32) {
    %c0_i32 = arith.constant 0 : i32
    %c0_i32_0 = arith.constant 0 : i32
    %c0_i32_1 = arith.constant 0 : i32
    return %c0_i32, %c0_i32_0 : i32, i32
  }
  func.func @transform_17(%arg0: i32) -> (i32, i32, i32) {
    %c0_i32 = arith.constant 0 : i32
    %c0_i32_0 = arith.constant 0 : i32
    %c0_i32_1 = arith.constant 0 : i32
    %c0_i32_2 = arith.constant 0 : i32
    return %c0_i32, %c0_i32_0, %c0_i32_1 : i32, i32, i32
  }
  func.func @transform_18(%arg0: i32) -> (i32, i32, i32) {
    %c0_i32 = arith.constant 0 : i32
    %c0_i32_0 = arith.constant 0 : i32
    %c0_i32_1 = arith.constant 0 : i32
    %c0_i32_2 = arith.constant 0 : i32
    return %c0_i32, %c0_i32_0, %c0_i32_1 : i32, i32, i32
  }
  func.func @transform_19(%arg0: i32) -> (i32, i32) {
    %c0_i32 = arith.constant 0 : i32
    %c0_i32_0 = arith.constant 0 : i32
    %c0_i32_1 = arith.constant 0 : i32
    return %c0_i32, %c0_i32_0 : i32, i32
  }
  func.func @transform_20(%arg0: i32) -> (i32, i32, i32) {
    %c0_i32 = arith.constant 0 : i32
    %c0_i32_0 = arith.constant 0 : i32
    %c0_i32_1 = arith.constant 0 : i32
    %c0_i32_2 = arith.constant 0 : i32
    return %c0_i32, %c0_i32_0, %c0_i32_1 : i32, i32, i32
  }
  func.func @transform_21(%arg0: i32) -> (i32, i32, i32) {
    %c0_i32 = arith.constant 0 : i32
    %c0_i32_0 = arith.constant 0 : i32
    %c0_i32_1 = arith.constant 0 : i32
    %c0_i32_2 = arith.constant 0 : i32
    return %c0_i32, %c0_i32_0, %c0_i32_1 : i32, i32, i32
  }
  func.func @transform_22(%arg0: i32) -> (i32, i32) {
    %c0_i32 = arith.constant 0 : i32
    %c0_i32_0 = arith.constant 0 : i32
    %c0_i32_1 = arith.constant 0 : i32
    return %c0_i32, %c0_i32_0 : i32, i32
  }
  func.func @transform_23(%arg0: i32) -> (i32, i32) {
    %c0_i32 = arith.constant 0 : i32
    %c0_i32_0 = arith.constant 0 : i32
    %c0_i32_1 = arith.constant 0 : i32
    return %c0_i32, %c0_i32_0 : i32, i32
  }
  func.func @transform_24(%arg0: i32) -> (i32, i32) {
    %c0_i32 = arith.constant 0 : i32
    %c0_i32_0 = arith.constant 0 : i32
    %c0_i32_1 = arith.constant 0 : i32
    return %c0_i32, %c0_i32_0 : i32, i32
  }
}

</mosaic_0001>

<llo_original>
// kernel: vae_forward.1
$region0: #{vae_forward.1}
  #allocation0 [shape = 'u32[]', space=smem, size = 0x4, offset = 0x4, fixed_abs, tag = 'smem constant byte address 0x4 - core index']
  #allocation1 [shape = 'u32[72,128]{1,0:T(1,128)}', space=vmem, size = 0x9000, scoped, tag = 'internal scratch']
  #allocation2 [shape = 'f32[16,128]{1,0:T(8,128)}', space=vmem, size = 0x2000, scoped, tag = 'scratch operand']
  #allocation3 [shape = 'f32[16,128]{1,0:T(8,128)}', space=vmem, size = 0x2000, scoped, tag = 'scratch operand']
  #allocation4 [shape = 'f32[1,1]{1,0:T(1,128)S(1)}', space=vmem, size = 0x200, scoped, tag = 'scoped memory for vae_forward.1']
  %s0 = inlined_call_operand.vmem [shape: f32[64,5], index: 0, kind: input, shape index: {}]
  %s1 = inlined_call_operand.vmem [shape: f32[2,32], index: 1, kind: input, shape index: {}]
  %s2 = inlined_call_operand.vmem [shape: f32[5,32], index: 2, kind: input, shape index: {}]
  %s3 = inlined_call_operand.vmem [shape: f32[1,32], index: 3, kind: input, shape index: {}]
  %s4 = inlined_call_operand.vmem [shape: f32[5,32,64], index: 4, kind: input, shape index: {}]
  %s5 = inlined_call_operand.vmem [shape: f32[5,32,64], index: 5, kind: input, shape index: {}]
  %s6 = inlined_call_operand.vmem [shape: f32[1,64], index: 6, kind: input, shape index: {}]
  %s7 = inlined_call_operand.vmem [shape: f32[5,16,32], index: 7, kind: input, shape index: {}]
  %s8 = inlined_call_operand.vmem [shape: f32[5,64,128], index: 8, kind: input, shape index: {}]
  %s9 = inlined_call_operand.vmem [shape: f32[1,128], index: 9, kind: input, shape index: {}]
  %s10 = inlined_call_operand.vmem [shape: f32[8,128,64], index: 10, kind: input, shape index: {}]
  %s11 = inlined_call_operand.vmem [shape: f32[1,64], index: 11, kind: input, shape index: {}]
  %s12 = inlined_call_operand.vmem [shape: f32[32,1024], index: 12, kind: input, shape index: {}]
  %s13 = inlined_call_operand.vmem [shape: f32[16,128], index: 13, kind: input, shape index: {}]
  %s14 = inlined_call_operand.vmem [shape: f32[5,32,16], index: 14, kind: input, shape index: {}]
  %s15 = inlined_call_operand.vmem [shape: f32[5,128,64], index: 15, kind: input, shape index: {}]
  %s16 = inlined_call_operand.vmem [shape: f32[1,64], index: 16, kind: input, shape index: {}]
  %s17 = inlined_call_operand.vmem [shape: f32[5,64,32], index: 17, kind: input, shape index: {}]
  %s18 = inlined_call_operand.vmem [shape: f32[5,64,32], index: 18, kind: input, shape index: {}]
  %s19 = inlined_call_operand.vmem [shape: f32[1,32], index: 19, kind: input, shape index: {}]
  %s20 = inlined_call_operand.vmem [shape: f32[5,128,64], index: 20, kind: input, shape index: {}]
  %s21 = inlined_call_operand.vmem [shape: f32[5,32,1], index: 21, kind: input, shape index: {}]
  %s22 = inlined_call_operand.<no memory space> [shape: f32[1,1], index: 22, kind: input, shape index: {}]
  %s23 = inlined_call_operand.vmem [shape: f32[128,1], index: 23, kind: output, shape index: {0}]
  %s24 = inlined_call_operand.vmem [shape: f32[2,64], index: 24, kind: output, shape index: {1}]
  %25 = xla_tuple %s23, %s24
  %s26 = sld [smem:[#allocation0]]
  $region110: #{vae_forward.1} parent=0
    _
  %s28 = ssub.s32 1, %s26
  %s29 = scalar_select 0, %s28, %s26
  %v30 = vstv %s22
  %31 = vst [vmem:[#allocation4] sm:$0x1] %v30
  // Predicated region
  $region2: #{vae_forward.1} parent=0 // pred_check
    _
  $region3: #{vae_forward.1} parent=0 // pred_check_branch
    %33 = sbr.rel (0) target = $region5
  $region4: #{vae_forward.1} parent=0 // pred_region
    _
  $region5: #{vae_forward.1} parent=0 // pred_fallthru
    _
  // Predicated region
  $region6: #{vae_forward.1} parent=0 // pred_check
    _
  $region7: #{vae_forward.1} parent=0 // pred_check_branch
    %35 = sbr.rel (0) target = $region9
  $region8: #{vae_forward.1} parent=0 // pred_region
    _
  $region9: #{vae_forward.1} parent=0 // pred_fallthru
    _
  // Predicated region
  $region10: #{vae_forward.1} parent=0 // pred_check
    _
  $region11: #{vae_forward.1} parent=0 // pred_check_branch
    %37 = sbr.rel (0) target = $region13
  $region12: #{vae_forward.1} parent=0 // pred_region
    _
  $region13: #{vae_forward.1} parent=0 // pred_fallthru
    _
  // Predicated region
  $region14: #{vae_forward.1} parent=0 // pred_check
    _
  $region15: #{vae_forward.1} parent=0 // pred_check_branch
    %39 = sbr.rel (0) target = $region17
  $region16: #{vae_forward.1} parent=0 // pred_region
    _
  $region17: #{vae_forward.1} parent=0 // pred_fallthru
    _
  // Predicated region
  $region18: #{vae_forward.1} parent=0 // pred_check
    _
  $region19: #{vae_forward.1} parent=0 // pred_check_branch
    %41 = sbr.rel (0) target = $region21
  $region20: #{vae_forward.1} parent=0 // pred_region
    _
  $region21: #{vae_forward.1} parent=0 // pred_fallthru
    _
  // Predicated region
  $region22: #{vae_forward.1} parent=0 // pred_check
    _
  $region23: #{vae_forward.1} parent=0 // pred_check_branch
    %43 = sbr.rel (0) target = $region25
  $region24: #{vae_forward.1} parent=0 // pred_region
    _
  $region25: #{vae_forward.1} parent=0 // pred_fallthru
    _
  // Predicated region
  $region26: #{vae_forward.1} parent=0 // pred_check
    _
  $region27: #{vae_forward.1} parent=0 // pred_check_branch
    %45 = sbr.rel (0) target = $region29
  $region28: #{vae_forward.1} parent=0 // pred_region
    _
  $region29: #{vae_forward.1} parent=0 // pred_fallthru
    _
  // Predicated region
  $region30: #{vae_forward.1} parent=0 // pred_check
    _
  $region31: #{vae_forward.1} parent=0 // pred_check_branch
    %47 = sbr.rel (0) target = $region33
  $region32: #{vae_forward.1} parent=0 // pred_region
    _
  $region33: #{vae_forward.1} parent=0 // pred_fallthru
    _
  // Predicated region
  $region34: #{vae_forward.1} parent=0 // pred_check
    _
  $region35: #{vae_forward.1} parent=0 // pred_check_branch
    %49 = sbr.rel (0) target = $region37
  $region36: #{vae_forward.1} parent=0 // pred_region
    _
  $region37: #{vae_forward.1} parent=0 // pred_fallthru
    _
  // Predicated region
  $region38: #{vae_forward.1} parent=0 // pred_check
    _
  $region39: #{vae_forward.1} parent=0 // pred_check_branch
    %51 = sbr.rel (0) target = $region41
  $region40: #{vae_forward.1} parent=0 // pred_region
    _
  $region41: #{vae_forward.1} parent=0 // pred_fallthru
    _
  // Predicated region
  $region42: #{vae_forward.1} parent=0 // pred_check
    _
  $region43: #{vae_forward.1} parent=0 // pred_check_branch
    %53 = sbr.rel (0) target = $region45
  $region44: #{vae_forward.1} parent=0 // pred_region
    _
  $region45: #{vae_forward.1} parent=0 // pred_fallthru
    _
  // Predicated region
  $region46: #{vae_forward.1} parent=0 // pred_check
    _
  $region47: #{vae_forward.1} parent=0 // pred_check_branch
    %55 = sbr.rel (0) target = $region49
  $region48: #{vae_forward.1} parent=0 // pred_region
    _
  $region49: #{vae_forward.1} parent=0 // pred_fallthru
    _
  // Predicated region
  $region50: #{vae_forward.1} parent=0 // pred_check
    _
  $region51: #{vae_forward.1} parent=0 // pred_check_branch
    %57 = sbr.rel (0) target = $region53
  $region52: #{vae_forward.1} parent=0 // pred_region
    _
  $region53: #{vae_forward.1} parent=0 // pred_fallthru
    _
  // Predicated region
  $region54: #{vae_forward.1} parent=0 // pred_check
    _
  $region55: #{vae_forward.1} parent=0 // pred_check_branch
    %59 = sbr.rel (0) target = $region57
  $region56: #{vae_forward.1} parent=0 // pred_region
    _
  $region57: #{vae_forward.1} parent=0 // pred_fallthru
    _
  // Predicated region
  $region58: #{vae_forward.1} parent=0 // pred_check
    _
  $region59: #{vae_forward.1} parent=0 // pred_check_branch
    %61 = sbr.rel (0) target = $region61
  $region60: #{vae_forward.1} parent=0 // pred_region
    _
  $region61: #{vae_forward.1} parent=0 // pred_fallthru
    _
  // Predicated region
  $region62: #{vae_forward.1} parent=0 // pred_check
    _
  $region63: #{vae_forward.1} parent=0 // pred_check_branch
    %63 = sbr.rel (0) target = $region65
  $region64: #{vae_forward.1} parent=0 // pred_region
    _
  $region65: #{vae_forward.1} parent=0 // pred_fallthru
    _
  // Predicated region
  $region66: #{vae_forward.1} parent=0 // pred_check
    _
  $region67: #{vae_forward.1} parent=0 // pred_check_branch
    %65 = sbr.rel (0) target = $region69
  $region68: #{vae_forward.1} parent=0 // pred_region
    _
  $region69: #{vae_forward.1} parent=0 // pred_fallthru
    _
  // Predicated region
  $region70: #{vae_forward.1} parent=0 // pred_check
    _
  $region71: #{vae_forward.1} parent=0 // pred_check_branch
    %67 = sbr.rel (0) target = $region73
  $region72: #{vae_forward.1} parent=0 // pred_region
    _
  $region73: #{vae_forward.1} parent=0 // pred_fallthru
    _
  // Predicated region
  $region74: #{vae_forward.1} parent=0 // pred_check
    _
  $region75: #{vae_forward.1} parent=0 // pred_check_branch
    %69 = sbr.rel (0) target = $region77
  $region76: #{vae_forward.1} parent=0 // pred_region
    _
  $region77: #{vae_forward.1} parent=0 // pred_fallthru
    _
  // Predicated region
  $region78: #{vae_forward.1} parent=0 // pred_check
    _
  $region79: #{vae_forward.1} parent=0 // pred_check_branch
    %71 = sbr.rel (0) target = $region81
  $region80: #{vae_forward.1} parent=0 // pred_region
    _
  $region81: #{vae_forward.1} parent=0 // pred_fallthru
    _
  // Predicated region
  $region82: #{vae_forward.1} parent=0 // pred_check
    _
  $region83: #{vae_forward.1} parent=0 // pred_check_branch
    %73 = sbr.rel (0) target = $region85
  $region84: #{vae_forward.1} parent=0 // pred_region
    _
  $region85: #{vae_forward.1} parent=0 // pred_fallthru
    _
  // Predicated region
  $region86: #{vae_forward.1} parent=0 // pred_check
    _
  $region87: #{vae_forward.1} parent=0 // pred_check_branch
    %75 = sbr.rel (0) target = $region89
  $region88: #{vae_forward.1} parent=0 // pred_region
    _
  $region89: #{vae_forward.1} parent=0 // pred_fallthru
    _
  // Predicated region
  $region90: #{vae_forward.1} parent=0 // pred_check
    _
  $region91: #{vae_forward.1} parent=0 // pred_check_branch
    %77 = sbr.rel (0) target = $region93
  $region92: #{vae_forward.1} parent=0 // pred_region
    _
  $region93: #{vae_forward.1} parent=0 // pred_fallthru
    _
  %v78 = vld [vmem:[%s0] sm:$0xff]
  %v79 = vld [vmem:[%s0 + $0x8] sm:$0xff]
  %v80 = vld [vmem:[%s0 + $0x10] sm:$0xff]
  %v81 = vld [vmem:[%s0 + $0x18] sm:$0xff]
  %v82 = vld [vmem:[%s0 + $0x20] sm:$0xff]
  %v83 = vld [vmem:[%s0 + $0x28] sm:$0xff]
  %v84 = vld [vmem:[%s0 + $0x30] sm:$0xff]
  %v85 = vld [vmem:[%s0 + $0x38] sm:$0xff]
  %v86 = vld [vmem:[%s2] sm:$0x1f]
  %v87 = vld [vmem:[%s3] sm:$0x1]
  %v89 = vperm.slane %v87, 0
  %vm91 = vcmask 39936
  %v93 = vsel %vm91, %v78, 0
  %v96 = vsel %vm91, %v79, 0
  %v99 = vsel %vm91, %v80, 0
  %v102 = vsel %vm91, %v81, 0
  %v105 = vsel %vm91, %v82, 0
  %v108 = vsel %vm91, %v83, 0
  %v111 = vsel %vm91, %v84, 0
  %v114 = vsel %vm91, %v85, 0
  %vm116 = vcmask 1044480
  %v118 = vsel %vm116, %v86, 0
  %120 = vmatpush.msra.mxu0 0.0
  %121 = vmatpush.msra.mxu0 0.0
  %122 = vmatpush.msra.mxu0 0.0
  %123 = vmatpush.msra.mxu0 0.0
  %124 = vmatpush.msra.mxu0 0.0
  %125 = vmatpush.msra.mxu0 0.0
  %126 = vmatpush.msra.mxu0 0.0
  %127 = vmatpush.msra.mxu0 0.0
  %128 = vmatpush.msra.mxu0 0.0
  %129 = vmatpush.msra.mxu0 0.0
  %130 = vmatpush.msra.mxu0 0.0
  %131 = vmatpush.msra.mxu0 0.0
  %132 = vmatpush.msra.mxu0 0.0
  %133 = vmatpush.msra.mxu0 0.0
  %134 = vmatpush.msra.mxu0 0.0
  %135 = vmatpush.msra.mxu0 %v118
  %136 = vmatmul.f32.gmra.mxu0 %v93
  %v137 = vpop.f32.mrf.mxu0
  %v138 = vadd.f32 %v89, %v137
  %139 = vmatmul.f32.gmra.mxu0 %v96
  %v140 = vpop.f32.mrf.mxu0
  %v141 = vadd.f32 %v89, %v140
  %142 = vmatmul.f32.gmra.mxu0 %v99
  %v143 = vpop.f32.mrf.mxu0
  %v144 = vadd.f32 %v89, %v143
  %145 = vmatmul.f32.gmra.mxu0 %v102
  %v146 = vpop.f32.mrf.mxu0
  %v147 = vadd.f32 %v89, %v146
  %148 = vmatmul.f32.gmra.mxu0 %v105
  %v149 = vpop.f32.mrf.mxu0
  %v150 = vadd.f32 %v89, %v149
  %151 = vmatmul.f32.gmra.mxu0 %v108
  %v152 = vpop.f32.mrf.mxu0
  %v153 = vadd.f32 %v89, %v152
  %154 = vmatmul.f32.gmra.mxu0 %v111
  %v155 = vpop.f32.mrf.mxu0
  %v156 = vadd.f32 %v89, %v155
  %157 = vmatmul.f32.gmra.mxu0 %v114
  %v158 = vpop.f32.mrf.mxu0
  %v159 = vadd.f32 %v89, %v158
  %160 = vdwg.mxu0
  %v161 = vmax.f32 %v138, 0.0
  %v162 = vmax.f32 %v141, 0.0
  %v163 = vmax.f32 %v144, 0.0
  %v164 = vmax.f32 %v147, 0.0
  %v165 = vmax.f32 %v150, 0.0
  %v166 = vmax.f32 %v153, 0.0
  %v167 = vmax.f32 %v156, 0.0
  %v168 = vmax.f32 %v159, 0.0
  %v169 = vld [vmem:[%s4] sm:$0xff]
  %v170 = vld [vmem:[%s4 + $0x8] sm:$0xff]
  %v171 = vld [vmem:[%s4 + $0x10] sm:$0xff]
  %v172 = vld [vmem:[%s4 + $0x18] sm:$0xff]
  %vm173 = vcmask 523264
  %v175 = vsel %vm173, %v169, 0
  %v178 = vsel %vm173, %v170, 0
  %v181 = vsel %vm173, %v171, 0
  %v184 = vsel %vm173, %v172, 0
  %186 = vmatpush.msra.mxu0 0.0
  %187 = vmatpush.msra.mxu0 0.0
  %188 = vmatpush.msra.mxu0 0.0
  %189 = vmatpush.msra.mxu0 0.0
  %190 = vmatpush.msra.mxu0 0.0
  %191 = vmatpush.msra.mxu0 0.0
  %192 = vmatpush.msra.mxu0 0.0
  %193 = vmatpush.msra.mxu0 0.0
  %194 = vmatpush.msra.mxu0 %v168
  %195 = vmatpush.msra.mxu0 %v167
  %196 = vmatpush.msra.mxu0 %v166
  %197 = vmatpush.msra.mxu0 %v165
  %198 = vmatpush.msra.mxu0 %v164
  %199 = vmatpush.msra.mxu0 %v163
  %200 = vmatpush.msra.mxu0 %v162
  %201 = vmatpush.msra.mxu0 %v161
  %202 = vmatmul.f32.gmra.mxu0 %v175
  %v203 = vpop.f32.mrf.mxu0
  %v204 = vadd.f32 0.0, %v203
  %205 = vmatmul.f32.gmra.mxu0 %v178
  %v206 = vpop.f32.mrf.mxu0
  %v207 = vadd.f32 0.0, %v206
  %208 = vmatmul.f32.gmra.mxu0 %v181
  %v209 = vpop.f32.mrf.mxu0
  %v210 = vadd.f32 0.0, %v209
  %211 = vmatmul.f32.gmra.mxu0 %v184
  %v212 = vpop.f32.mrf.mxu0
  %v213 = vadd.f32 0.0, %v212
  %214 = vdwg.mxu0
  %v215 = vld [vmem:[%s5] sm:$0xff]
  %v216 = vld [vmem:[%s5 + $0x8] sm:$0xff]
  %v217 = vld [vmem:[%s5 + $0x10] sm:$0xff]
  %v218 = vld [vmem:[%s5 + $0x18] sm:$0xff]
  %s219 = scalar_lea.vmem %s4, 32
  %v220 = vld [vmem:[%s219] sm:$0xff]
  %v221 = vld [vmem:[%s219 + $0x8] sm:$0xff]
  %v222 = vld [vmem:[%s219 + $0x10] sm:$0xff]
  %v223 = vld [vmem:[%s219 + $0x18] sm:$0xff]
  %v225 = vsel %vm173, %v220, 0
  %v228 = vsel %vm173, %v221, 0
  %v231 = vsel %vm173, %v222, 0
  %v234 = vsel %vm173, %v223, 0
  %236 = vmatpush.msra.mxu0 0.0
  %237 = vmatpush.msra.mxu0 0.0
  %238 = vmatpush.msra.mxu0 0.0
  %239 = vmatpush.msra.mxu0 0.0
  %240 = vmatpush.msra.mxu0 0.0
  %241 = vmatpush.msra.mxu0 0.0
  %242 = vmatpush.msra.mxu0 0.0
  %243 = vmatpush.msra.mxu0 0.0
  %244 = vmatpush.msra.mxu0 %v168
  %245 = vmatpush.msra.mxu0 %v167
  %246 = vmatpush.msra.mxu0 %v166
  %247 = vmatpush.msra.mxu0 %v165
  %248 = vmatpush.msra.mxu0 %v164
  %249 = vmatpush.msra.mxu0 %v163
  %250 = vmatpush.msra.mxu0 %v162
  %251 = vmatpush.msra.mxu0 %v161
  %252 = vmatmul.f32.gmra.mxu0 %v225
  %v253 = vpop.f32.mrf.mxu0
  %v254 = vadd.f32 0.0, %v253
  %255 = vmatmul.f32.gmra.mxu0 %v228
  %v256 = vpop.f32.mrf.mxu0
  %v257 = vadd.f32 0.0, %v256
  %258 = vmatmul.f32.gmra.mxu0 %v231
  %v259 = vpop.f32.mrf.mxu0
  %v260 = vadd.f32 0.0, %v259
  %261 = vmatmul.f32.gmra.mxu0 %v234
  %v262 = vpop.f32.mrf.mxu0
  %v263 = vadd.f32 0.0, %v262
  %264 = vdwg.mxu0
  %s265 = scalar_lea.vmem %s5, 32
  %v266 = vld [vmem:[%s265] sm:$0xff]
  %v267 = vld [vmem:[%s265 + $0x8] sm:$0xff]
  %v268 = vld [vmem:[%s265 + $0x10] sm:$0xff]
  %v269 = vld [vmem:[%s265 + $0x18] sm:$0xff]
  %vm270 = vcmask 261120
  %v272 = vsel %vm270, %v254, 0
  %v275 = vsel %vm270, %v257, 0
  %v278 = vsel %vm270, %v260, 0
  %v281 = vsel %vm270, %v263, 0
  %283 = vmatpush.msra.mxu0 0.0
  %284 = vmatpush.msra.mxu0 0.0
  %285 = vmatpush.msra.mxu0 0.0
  %286 = vmatpush.msra.mxu0 0.0
  %287 = vmatpush.msra.mxu0 0.0
  %288 = vmatpush.msra.mxu0 0.0
  %289 = vmatpush.msra.mxu0 0.0
  %290 = vmatpush.msra.mxu0 0.0
  %291 = vmatpush.msra.mxu0 0.0
  %292 = vmatpush.msra.mxu0 0.0
  %293 = vmatpush.msra.mxu0 0.0
  %294 = vmatpush.msra.mxu0 0.0
  %295 = vmatpush.msra.mxu0 %v269
  %296 = vmatpush.msra.mxu0 %v268
  %297 = vmatpush.msra.mxu0 %v267
  %298 = vmatpush.msra.mxu0 %v266
  %299 = vmatmul.f32.gmra.mxu0 %v272
  %v300 = vpop.f32.mrf.mxu0
  %v301 = vadd.f32 0.0, %v300
  %302 = vmatmul.f32.gmra.mxu0 %v275
  %v303 = vpop.f32.mrf.mxu0
  %v304 = vadd.f32 0.0, %v303
  %305 = vmatmul.f32.gmra.mxu0 %v278
  %v306 = vpop.f32.mrf.mxu0
  %v307 = vadd.f32 0.0, %v306
  %308 = vmatmul.f32.gmra.mxu0 %v281
  %v309 = vpop.f32.mrf.mxu0
  %v310 = vadd.f32 0.0, %v309
  %311 = vdwg.mxu0
  %v313 = vsel %vm270, %v204, 0
  %v316 = vsel %vm270, %v207, 0
  %v319 = vsel %vm270, %v210, 0
  %v322 = vsel %vm270, %v213, 0
  %324 = vmatpush.msra.mxu0 0.0
  %325 = vmatpush.msra.mxu0 0.0
  %326 = vmatpush.msra.mxu0 0.0
  %327 = vmatpush.msra.mxu0 0.0
  %328 = vmatpush.msra.mxu0 0.0
  %329 = vmatpush.msra.mxu0 0.0
  %330 = vmatpush.msra.mxu0 0.0
  %331 = vmatpush.msra.mxu0 0.0
  %332 = vmatpush.msra.mxu0 0.0
  %333 = vmatpush.msra.mxu0 0.0
  %334 = vmatpush.msra.mxu0 0.0
  %335 = vmatpush.msra.mxu0 0.0
  %336 = vmatpush.msra.mxu0 %v218
  %337 = vmatpush.msra.mxu0 %v217
  %338 = vmatpush.msra.mxu0 %v216
  %339 = vmatpush.msra.mxu0 %v215
  %340 = vmatmul.f32.gmra.mxu0 %v313
  %v341 = vpop.f32.mrf.mxu0
  %v342 = vadd.f32 %v301, %v341
  %343 = vmatmul.f32.gmra.mxu0 %v316
  %v344 = vpop.f32.mrf.mxu0
  %v345 = vadd.f32 %v304, %v344
  %346 = vmatmul.f32.gmra.mxu0 %v319
  %v347 = vpop.f32.mrf.mxu0
  %v348 = vadd.f32 %v307, %v347
  %349 = vmatmul.f32.gmra.mxu0 %v322
  %v350 = vpop.f32.mrf.mxu0
  %v351 = vadd.f32 %v310, %v350
  %352 = vdwg.mxu0
  %s353 = scalar_lea.vmem %s4, 64
  %v354 = vld [vmem:[%s353] sm:$0xff]
  %v355 = vld [vmem:[%s353 + $0x8] sm:$0xff]
  %v356 = vld [vmem:[%s353 + $0x10] sm:$0xff]
  %v357 = vld [vmem:[%s353 + $0x18] sm:$0xff]
  %v359 = vsel %vm173, %v354, 0
  %v362 = vsel %vm173, %v355, 0
  %v365 = vsel %vm173, %v356, 0
  %v368 = vsel %vm173, %v357, 0
  %370 = vmatpush.msra.mxu0 0.0
  %371 = vmatpush.msra.mxu0 0.0
  %372 = vmatpush.msra.mxu0 0.0
  %373 = vmatpush.msra.mxu0 0.0
  %374 = vmatpush.msra.mxu0 0.0
  %375 = vmatpush.msra.mxu0 0.0
  %376 = vmatpush.msra.mxu0 0.0
  %377 = vmatpush.msra.mxu0 0.0
  %378 = vmatpush.msra.mxu0 %v168
  %379 = vmatpush.msra.mxu0 %v167
  %380 = vmatpush.msra.mxu0 %v166
  %381 = vmatpush.msra.mxu0 %v165
  %382 = vmatpush.msra.mxu0 %v164
  %383 = vmatpush.msra.mxu0 %v163
  %384 = vmatpush.msra.mxu0 %v162
  %385 = vmatpush.msra.mxu0 %v161
  %386 = vmatmul.f32.gmra.mxu0 %v359
  %v387 = vpop.f32.mrf.mxu0
  %v388 = vadd.f32 0.0, %v387
  %389 = vmatmul.f32.gmra.mxu0 %v362
  %v390 = vpop.f32.mrf.mxu0
  %v391 = vadd.f32 0.0, %v390
  %392 = vmatmul.f32.gmra.mxu0 %v365
  %v393 = vpop.f32.mrf.mxu0
  %v394 = vadd.f32 0.0, %v393
  %395 = vmatmul.f32.gmra.mxu0 %v368
  %v396 = vpop.f32.mrf.mxu0
  %v397 = vadd.f32 0.0, %v396
  %398 = vdwg.mxu0
  %s399 = scalar_lea.vmem %s5, 64
  %v400 = vld [vmem:[%s399] sm:$0xff]
  %v401 = vld [vmem:[%s399 + $0x8] sm:$0xff]
  %v402 = vld [vmem:[%s399 + $0x10] sm:$0xff]
  %v403 = vld [vmem:[%s399 + $0x18] sm:$0xff]
  %v405 = vsel %vm270, %v388, 0
  %v408 = vsel %vm270, %v391, 0
  %v411 = vsel %vm270, %v394, 0
  %v414 = vsel %vm270, %v397, 0
  %416 = vmatpush.msra.mxu0 0.0
  %417 = vmatpush.msra.mxu0 0.0
  %418 = vmatpush.msra.mxu0 0.0
  %419 = vmatpush.msra.mxu0 0.0
  %420 = vmatpush.msra.mxu0 0.0
  %421 = vmatpush.msra.mxu0 0.0
  %422 = vmatpush.msra.mxu0 0.0
  %423 = vmatpush.msra.mxu0 0.0
  %424 = vmatpush.msra.mxu0 0.0
  %425 = vmatpush.msra.mxu0 0.0
  %426 = vmatpush.msra.mxu0 0.0
  %427 = vmatpush.msra.mxu0 0.0
  %428 = vmatpush.msra.mxu0 %v403
  %429 = vmatpush.msra.mxu0 %v402
  %430 = vmatpush.msra.mxu0 %v401
  %431 = vmatpush.msra.mxu0 %v400
  %432 = vmatmul.f32.gmra.mxu0 %v405
  %v433 = vpop.f32.mrf.mxu0
  %v434 = vadd.f32 0.0, %v433
  %435 = vmatmul.f32.gmra.mxu0 %v408
  %v436 = vpop.f32.mrf.mxu0
  %v437 = vadd.f32 0.0, %v436
  %438 = vmatmul.f32.gmra.mxu0 %v411
  %v439 = vpop.f32.mrf.mxu0
  %v440 = vadd.f32 0.0, %v439
  %441 = vmatmul.f32.gmra.mxu0 %v414
  %v442 = vpop.f32.mrf.mxu0
  %v443 = vadd.f32 0.0, %v442
  %444 = vdwg.mxu0
  %v445 = vadd.f32 %v342, %v434
  %v446 = vadd.f32 %v345, %v437
  %v447 = vadd.f32 %v348, %v440
  %v448 = vadd.f32 %v351, %v443
  %s449 = scalar_lea.vmem %s4, 96
  %v450 = vld [vmem:[%s449] sm:$0xff]
  %v451 = vld [vmem:[%s449 + $0x8] sm:$0xff]
  %v452 = vld [vmem:[%s449 + $0x10] sm:$0xff]
  %v453 = vld [vmem:[%s449 + $0x18] sm:$0xff]
  %v455 = vsel %vm173, %v450, 0
  %v458 = vsel %vm173, %v451, 0
  %v461 = vsel %vm173, %v452, 0
  %v464 = vsel %vm173, %v453, 0
  %466 = vmatpush.msra.mxu0 0.0
  %467 = vmatpush.msra.mxu0 0.0
  %468 = vmatpush.msra.mxu0 0.0
  %469 = vmatpush.msra.mxu0 0.0
  %470 = vmatpush.msra.mxu0 0.0
  %471 = vmatpush.msra.mxu0 0.0
  %472 = vmatpush.msra.mxu0 0.0
  %473 = vmatpush.msra.mxu0 0.0
  %474 = vmatpush.msra.mxu0 %v168
  %475 = vmatpush.msra.mxu0 %v167
  %476 = vmatpush.msra.mxu0 %v166
  %477 = vmatpush.msra.mxu0 %v165
  %478 = vmatpush.msra.mxu0 %v164
  %479 = vmatpush.msra.mxu0 %v163
  %480 = vmatpush.msra.mxu0 %v162
  %481 = vmatpush.msra.mxu0 %v161
  %482 = vmatmul.f32.gmra.mxu0 %v455
  %v483 = vpop.f32.mrf.mxu0
  %v484 = vadd.f32 0.0, %v483
  %485 = vmatmul.f32.gmra.mxu0 %v458
  %v486 = vpop.f32.mrf.mxu0
  %v487 = vadd.f32 0.0, %v486
  %488 = vmatmul.f32.gmra.mxu0 %v461
  %v489 = vpop.f32.mrf.mxu0
  %v490 = vadd.f32 0.0, %v489
  %491 = vmatmul.f32.gmra.mxu0 %v464
  %v492 = vpop.f32.mrf.mxu0
  %v493 = vadd.f32 0.0, %v492
  %494 = vdwg.mxu0
  %s495 = scalar_lea.vmem %s5, 96
  %v496 = vld [vmem:[%s495] sm:$0xff]
  %v497 = vld [vmem:[%s495 + $0x8] sm:$0xff]
  %v498 = vld [vmem:[%s495 + $0x10] sm:$0xff]
  %v499 = vld [vmem:[%s495 + $0x18] sm:$0xff]
  %v501 = vsel %vm270, %v484, 0
  %v504 = vsel %vm270, %v487, 0
  %v507 = vsel %vm270, %v490, 0
  %v510 = vsel %vm270, %v493, 0
  %512 = vmatpush.msra.mxu0 0.0
  %513 = vmatpush.msra.mxu0 0.0
  %514 = vmatpush.msra.mxu0 0.0
  %515 = vmatpush.msra.mxu0 0.0
  %516 = vmatpush.msra.mxu0 0.0
  %517 = vmatpush.msra.mxu0 0.0
  %518 = vmatpush.msra.mxu0 0.0
  %519 = vmatpush.msra.mxu0 0.0
  %520 = vmatpush.msra.mxu0 0.0
  %521 = vmatpush.msra.mxu0 0.0
  %522 = vmatpush.msra.mxu0 0.0
  %523 = vmatpush.msra.mxu0 0.0
  %524 = vmatpush.msra.mxu0 %v499
  %525 = vmatpush.msra.mxu0 %v498
  %526 = vmatpush.msra.mxu0 %v497
  %527 = vmatpush.msra.mxu0 %v496
  %528 = vmatmul.f32.gmra.mxu0 %v501
  %v529 = vpop.f32.mrf.mxu0
  %v530 = vadd.f32 0.0, %v529
  %531 = vmatmul.f32.gmra.mxu0 %v504
  %v532 = vpop.f32.mrf.mxu0
  %v533 = vadd.f32 0.0, %v532
  %534 = vmatmul.f32.gmra.mxu0 %v507
  %v535 = vpop.f32.mrf.mxu0
  %v536 = vadd.f32 0.0, %v535
  %537 = vmatmul.f32.gmra.mxu0 %v510
  %v538 = vpop.f32.mrf.mxu0
  %v539 = vadd.f32 0.0, %v538
  %540 = vdwg.mxu0
  %v541 = vadd.f32 %v445, %v530
  %v542 = vadd.f32 %v446, %v533
  %v543 = vadd.f32 %v447, %v536
  %v544 = vadd.f32 %v448, %v539
  %s545 = scalar_lea.vmem %s4, 128
  %v546 = vld [vmem:[%s545] sm:$0xff]
  %v547 = vld [vmem:[%s545 + $0x8] sm:$0xff]
  %v548 = vld [vmem:[%s545 + $0x10] sm:$0xff]
  %v549 = vld [vmem:[%s545 + $0x18] sm:$0xff]
  %v551 = vsel %vm173, %v546, 0
  %v554 = vsel %vm173, %v547, 0
  %v557 = vsel %vm173, %v548, 0
  %v560 = vsel %vm173, %v549, 0
  %562 = vmatpush.msra.mxu0 0.0
  %563 = vmatpush.msra.mxu0 0.0
  %564 = vmatpush.msra.mxu0 0.0
  %565 = vmatpush.msra.mxu0 0.0
  %566 = vmatpush.msra.mxu0 0.0
  %567 = vmatpush.msra.mxu0 0.0
  %568 = vmatpush.msra.mxu0 0.0
  %569 = vmatpush.msra.mxu0 0.0
  %570 = vmatpush.msra.mxu0 %v168
  %571 = vmatpush.msra.mxu0 %v167
  %572 = vmatpush.msra.mxu0 %v166
  %573 = vmatpush.msra.mxu0 %v165
  %574 = vmatpush.msra.mxu0 %v164
  %575 = vmatpush.msra.mxu0 %v163
  %576 = vmatpush.msra.mxu0 %v162
  %577 = vmatpush.msra.mxu0 %v161
  %578 = vmatmul.f32.gmra.mxu0 %v551
  %v579 = vpop.f32.mrf.mxu0
  %v580 = vadd.f32 0.0, %v579
  %581 = vmatmul.f32.gmra.mxu0 %v554
  %v582 = vpop.f32.mrf.mxu0
  %v583 = vadd.f32 0.0, %v582
  %584 = vmatmul.f32.gmra.mxu0 %v557
  %v585 = vpop.f32.mrf.mxu0
  %v586 = vadd.f32 0.0, %v585
  %587 = vmatmul.f32.gmra.mxu0 %v560
  %v588 = vpop.f32.mrf.mxu0
  %v589 = vadd.f32 0.0, %v588
  %590 = vdwg.mxu0
  %s591 = scalar_lea.vmem %s5, 128
  %v592 = vld [vmem:[%s591] sm:$0xff]
  %v593 = vld [vmem:[%s591 + $0x8] sm:$0xff]
  %v594 = vld [vmem:[%s591 + $0x10] sm:$0xff]
  %v595 = vld [vmem:[%s591 + $0x18] sm:$0xff]
  %v597 = vsel %vm270, %v580, 0
  %v600 = vsel %vm270, %v583, 0
  %v603 = vsel %vm270, %v586, 0
  %v606 = vsel %vm270, %v589, 0
  %608 = vmatpush.msra.mxu0 0.0
  %609 = vmatpush.msra.mxu0 0.0
  %610 = vmatpush.msra.mxu0 0.0
  %611 = vmatpush.msra.mxu0 0.0
  %612 = vmatpush.msra.mxu0 0.0
  %613 = vmatpush.msra.mxu0 0.0
  %614 = vmatpush.msra.mxu0 0.0
  %615 = vmatpush.msra.mxu0 0.0
  %616 = vmatpush.msra.mxu0 0.0
  %617 = vmatpush.msra.mxu0 0.0
  %618 = vmatpush.msra.mxu0 0.0
  %619 = vmatpush.msra.mxu0 0.0
  %620 = vmatpush.msra.mxu0 %v595
  %621 = vmatpush.msra.mxu0 %v594
  %622 = vmatpush.msra.mxu0 %v593
  %623 = vmatpush.msra.mxu0 %v592
  %624 = vmatmul.f32.gmra.mxu0 %v597
  %v625 = vpop.f32.mrf.mxu0
  %v626 = vadd.f32 0.0, %v625
  %627 = vmatmul.f32.gmra.mxu0 %v600
  %v628 = vpop.f32.mrf.mxu0
  %v629 = vadd.f32 0.0, %v628
  %630 = vmatmul.f32.gmra.mxu0 %v603
  %v631 = vpop.f32.mrf.mxu0
  %v632 = vadd.f32 0.0, %v631
  %633 = vmatmul.f32.gmra.mxu0 %v606
  %v634 = vpop.f32.mrf.mxu0
  %v635 = vadd.f32 0.0, %v634
  %636 = vdwg.mxu0
  %v637 = vadd.f32 %v541, %v626
  %v638 = vadd.f32 %v542, %v629
  %v639 = vadd.f32 %v543, %v632
  %v640 = vadd.f32 %v544, %v635
  %v641 = vld [vmem:[%s6] sm:$0x1]
  %v643 = vperm.slane %v641, 0
  %v645 = vadd.f32 %v637, %v643
  %v646 = vadd.f32 %v638, %v643
  %v647 = vadd.f32 %v639, %v643
  %v648 = vadd.f32 %v640, %v643
  %v649 = vmax.f32 %v645, 0.0
  %v650 = vmax.f32 %v646, 0.0
  %v651 = vmax.f32 %v647, 0.0
  %v652 = vmax.f32 %v648, 0.0
  %v653 = vld [vmem:[%s7] sm:$0xff]
  %v654 = vld [vmem:[%s7 + $0x8] sm:$0xff]
  %v656 = vsel %vm270, %v653, 0
  %v659 = vsel %vm270, %v654, 0
  %661 = vmatpush.msra.mxu0 0.0
  %662 = vmatpush.msra.mxu0 0.0
  %663 = vmatpush.msra.mxu0 0.0
  %664 = vmatpush.msra.mxu0 0.0
  %665 = vmatpush.msra.mxu0 0.0
  %666 = vmatpush.msra.mxu0 0.0
  %667 = vmatpush.msra.mxu0 0.0
  %668 = vmatpush.msra.mxu0 0.0
  %669 = vmatpush.msra.mxu0 0.0
  %670 = vmatpush.msra.mxu0 0.0
  %671 = vmatpush.msra.mxu0 0.0
  %672 = vmatpush.msra.mxu0 0.0
  %673 = vmatpush.msra.mxu0 %v652
  %674 = vmatpush.msra.mxu0 %v651
  %675 = vmatpush.msra.mxu0 %v650
  %676 = vmatpush.msra.mxu0 %v649
  %677 = vmatmul.f32.gmra.mxu0 %v656
  %v678 = vpop.f32.mrf.mxu0
  %v679 = vadd.f32 0.0, %v678
  %680 = vmatmul.f32.gmra.mxu0 %v659
  %v681 = vpop.f32.mrf.mxu0
  %v682 = vadd.f32 0.0, %v681
  %683 = vdwg.mxu0
  %v684 = vld [vmem:[%s8] sm:$0xff]
  %v685 = vld [vmem:[%s8 + $0x8] sm:$0xff]
  %v686 = vld [vmem:[%s8 + $0x10] sm:$0xff]
  %v687 = vld [vmem:[%s8 + $0x18] sm:$0xff]
  %v688 = vld [vmem:[%s8 + $0x20] sm:$0xff]
  %v689 = vld [vmem:[%s8 + $0x28] sm:$0xff]
  %v690 = vld [vmem:[%s8 + $0x30] sm:$0xff]
  %v691 = vld [vmem:[%s8 + $0x38] sm:$0xff]
  %s692 = scalar_lea.vmem %s7, 16
  %v693 = vld [vmem:[%s692] sm:$0xff]
  %v694 = vld [vmem:[%s692 + $0x8] sm:$0xff]
  %v696 = vsel %vm270, %v693, 0
  %v699 = vsel %vm270, %v694, 0
  %701 = vmatpush.msra.mxu0 0.0
  %702 = vmatpush.msra.mxu0 0.0
  %703 = vmatpush.msra.mxu0 0.0
  %704 = vmatpush.msra.mxu0 0.0
  %705 = vmatpush.msra.mxu0 0.0
  %706 = vmatpush.msra.mxu0 0.0
  %707 = vmatpush.msra.mxu0 0.0
  %708 = vmatpush.msra.mxu0 0.0
  %709 = vmatpush.msra.mxu0 0.0
  %710 = vmatpush.msra.mxu0 0.0
  %711 = vmatpush.msra.mxu0 0.0
  %712 = vmatpush.msra.mxu0 0.0
  %713 = vmatpush.msra.mxu0 %v652
  %714 = vmatpush.msra.mxu0 %v651
  %715 = vmatpush.msra.mxu0 %v650
  %716 = vmatpush.msra.mxu0 %v649
  %717 = vmatmul.f32.gmra.mxu0 %v696
  %v718 = vpop.f32.mrf.mxu0
  %v719 = vadd.f32 0.0, %v718
  %720 = vmatmul.f32.gmra.mxu0 %v699
  %v721 = vpop.f32.mrf.mxu0
  %v722 = vadd.f32 0.0, %v721
  %723 = vdwg.mxu0
  %s724 = scalar_lea.vmem %s8, 64
  %v725 = vld [vmem:[%s724] sm:$0xff]
  %v726 = vld [vmem:[%s724 + $0x8] sm:$0xff]
  %v727 = vld [vmem:[%s724 + $0x10] sm:$0xff]
  %v728 = vld [vmem:[%s724 + $0x18] sm:$0xff]
  %v729 = vld [vmem:[%s724 + $0x20] sm:$0xff]
  %v730 = vld [vmem:[%s724 + $0x28] sm:$0xff]
  %v731 = vld [vmem:[%s724 + $0x30] sm:$0xff]
  %v732 = vld [vmem:[%s724 + $0x38] sm:$0xff]
  %v734 = vsel %vm173, %v719, 0
  %v737 = vsel %vm173, %v722, 0
  %739 = vmatpush.msra.mxu0 0.0
  %740 = vmatpush.msra.mxu0 0.0
  %741 = vmatpush.msra.mxu0 0.0
  %742 = vmatpush.msra.mxu0 0.0
  %743 = vmatpush.msra.mxu0 0.0
  %744 = vmatpush.msra.mxu0 0.0
  %745 = vmatpush.msra.mxu0 0.0
  %746 = vmatpush.msra.mxu0 0.0
  %747 = vmatpush.msra.mxu0 %v732
  %748 = vmatpush.msra.mxu0 %v731
  %749 = vmatpush.msra.mxu0 %v730
  %750 = vmatpush.msra.mxu0 %v729
  %751 = vmatpush.msra.mxu0 %v728
  %752 = vmatpush.msra.mxu0 %v727
  %753 = vmatpush.msra.mxu0 %v726
  %754 = vmatpush.msra.mxu0 %v725
  %755 = vmatmul.f32.gmra.mxu0 %v734
  %v756 = vpop.f32.mrf.mxu0
  %v757 = vadd.f32 0.0, %v756
  %758 = vmatmul.f32.gmra.mxu0 %v737
  %v759 = vpop.f32.mrf.mxu0
  %v760 = vadd.f32 0.0, %v759
  %761 = vdwg.mxu0
  %v763 = vsel %vm173, %v679, 0
  %v766 = vsel %vm173, %v682, 0
  %768 = vmatpush.msra.mxu0 0.0
  %769 = vmatpush.msra.mxu0 0.0
  %770 = vmatpush.msra.mxu0 0.0
  %771 = vmatpush.msra.mxu0 0.0
  %772 = vmatpush.msra.mxu0 0.0
  %773 = vmatpush.msra.mxu0 0.0
  %774 = vmatpush.msra.mxu0 0.0
  %775 = vmatpush.msra.mxu0 0.0
  %776 = vmatpush.msra.mxu0 %v691
  %777 = vmatpush.msra.mxu0 %v690
  %778 = vmatpush.msra.mxu0 %v689
  %779 = vmatpush.msra.mxu0 %v688
  %780 = vmatpush.msra.mxu0 %v687
  %781 = vmatpush.msra.mxu0 %v686
  %782 = vmatpush.msra.mxu0 %v685
  %783 = vmatpush.msra.mxu0 %v684
  %784 = vmatmul.f32.gmra.mxu0 %v763
  %v785 = vpop.f32.mrf.mxu0
  %v786 = vadd.f32 %v757, %v785
  %787 = vmatmul.f32.gmra.mxu0 %v766
  %v788 = vpop.f32.mrf.mxu0
  %v789 = vadd.f32 %v760, %v788
  %790 = vdwg.mxu0
  %s791 = scalar_lea.vmem %s7, 32
  %v792 = vld [vmem:[%s791] sm:$0xff]
  %v793 = vld [vmem:[%s791 + $0x8] sm:$0xff]
  %v795 = vsel %vm270, %v792, 0
  %v798 = vsel %vm270, %v793, 0
  %800 = vmatpush.msra.mxu0 0.0
  %801 = vmatpush.msra.mxu0 0.0
  %802 = vmatpush.msra.mxu0 0.0
  %803 = vmatpush.msra.mxu0 0.0
  %804 = vmatpush.msra.mxu0 0.0
  %805 = vmatpush.msra.mxu0 0.0
  %806 = vmatpush.msra.mxu0 0.0
  %807 = vmatpush.msra.mxu0 0.0
  %808 = vmatpush.msra.mxu0 0.0
  %809 = vmatpush.msra.mxu0 0.0
  %810 = vmatpush.msra.mxu0 0.0
  %811 = vmatpush.msra.mxu0 0.0
  %812 = vmatpush.msra.mxu0 %v652
  %813 = vmatpush.msra.mxu0 %v651
  %814 = vmatpush.msra.mxu0 %v650
  %815 = vmatpush.msra.mxu0 %v649
  %816 = vmatmul.f32.gmra.mxu0 %v795
  %v817 = vpop.f32.mrf.mxu0
  %v818 = vadd.f32 0.0, %v817
  %819 = vmatmul.f32.gmra.mxu0 %v798
  %v820 = vpop.f32.mrf.mxu0
  %v821 = vadd.f32 0.0, %v820
  %822 = vdwg.mxu0
  %s823 = scalar_lea.vmem %s8, 128
  %v824 = vld [vmem:[%s823] sm:$0xff]
  %v825 = vld [vmem:[%s823 + $0x8] sm:$0xff]
  %v826 = vld [vmem:[%s823 + $0x10] sm:$0xff]
  %v827 = vld [vmem:[%s823 + $0x18] sm:$0xff]
  %v828 = vld [vmem:[%s823 + $0x20] sm:$0xff]
  %v829 = vld [vmem:[%s823 + $0x28] sm:$0xff]
  %v830 = vld [vmem:[%s823 + $0x30] sm:$0xff]
  %v831 = vld [vmem:[%s823 + $0x38] sm:$0xff]
  %v833 = vsel %vm173, %v818, 0
  %v836 = vsel %vm173, %v821, 0
  %838 = vmatpush.msra.mxu0 0.0
  %839 = vmatpush.msra.mxu0 0.0
  %840 = vmatpush.msra.mxu0 0.0
  %841 = vmatpush.msra.mxu0 0.0
  %842 = vmatpush.msra.mxu0 0.0
  %843 = vmatpush.msra.mxu0 0.0
  %844 = vmatpush.msra.mxu0 0.0
  %845 = vmatpush.msra.mxu0 0.0
  %846 = vmatpush.msra.mxu0 %v831
  %847 = vmatpush.msra.mxu0 %v830
  %848 = vmatpush.msra.mxu0 %v829
  %849 = vmatpush.msra.mxu0 %v828
  %850 = vmatpush.msra.mxu0 %v827
  %851 = vmatpush.msra.mxu0 %v826
  %852 = vmatpush.msra.mxu0 %v825
  %853 = vmatpush.msra.mxu0 %v824
  %854 = vmatmul.f32.gmra.mxu0 %v833
  %v855 = vpop.f32.mrf.mxu0
  %v856 = vadd.f32 0.0, %v855
  %857 = vmatmul.f32.gmra.mxu0 %v836
  %v858 = vpop.f32.mrf.mxu0
  %v859 = vadd.f32 0.0, %v858
  %860 = vdwg.mxu0
  %v861 = vadd.f32 %v786, %v856
  %v862 = vadd.f32 %v789, %v859
  %s863 = scalar_lea.vmem %s7, 48
  %v864 = vld [vmem:[%s863] sm:$0xff]
  %v865 = vld [vmem:[%s863 + $0x8] sm:$0xff]
  %v867 = vsel %vm270, %v864, 0
  %v870 = vsel %vm270, %v865, 0
  %872 = vmatpush.msra.mxu0 0.0
  %873 = vmatpush.msra.mxu0 0.0
  %874 = vmatpush.msra.mxu0 0.0
  %875 = vmatpush.msra.mxu0 0.0
  %876 = vmatpush.msra.mxu0 0.0
  %877 = vmatpush.msra.mxu0 0.0
  %878 = vmatpush.msra.mxu0 0.0
  %879 = vmatpush.msra.mxu0 0.0
  %880 = vmatpush.msra.mxu0 0.0
  %881 = vmatpush.msra.mxu0 0.0
  %882 = vmatpush.msra.mxu0 0.0
  %883 = vmatpush.msra.mxu0 0.0
  %884 = vmatpush.msra.mxu0 %v652
  %885 = vmatpush.msra.mxu0 %v651
  %886 = vmatpush.msra.mxu0 %v650
  %887 = vmatpush.msra.mxu0 %v649
  %888 = vmatmul.f32.gmra.mxu0 %v867
  %v889 = vpop.f32.mrf.mxu0
  %v890 = vadd.f32 0.0, %v889
  %891 = vmatmul.f32.gmra.mxu0 %v870
  %v892 = vpop.f32.mrf.mxu0
  %v893 = vadd.f32 0.0, %v892
  %894 = vdwg.mxu0
  %s895 = scalar_lea.vmem %s8, 192
  %v896 = vld [vmem:[%s895] sm:$0xff]
  %v897 = vld [vmem:[%s895 + $0x8] sm:$0xff]
  %v898 = vld [vmem:[%s895 + $0x10] sm:$0xff]
  %v899 = vld [vmem:[%s895 + $0x18] sm:$0xff]
  %v900 = vld [vmem:[%s895 + $0x20] sm:$0xff]
  %v901 = vld [vmem:[%s895 + $0x28] sm:$0xff]
  %v902 = vld [vmem:[%s895 + $0x30] sm:$0xff]
  %v903 = vld [vmem:[%s895 + $0x38] sm:$0xff]
  %v905 = vsel %vm173, %v890, 0
  %v908 = vsel %vm173, %v893, 0
  %910 = vmatpush.msra.mxu0 0.0
  %911 = vmatpush.msra.mxu0 0.0
  %912 = vmatpush.msra.mxu0 0.0
  %913 = vmatpush.msra.mxu0 0.0
  %914 = vmatpush.msra.mxu0 0.0
  %915 = vmatpush.msra.mxu0 0.0
  %916 = vmatpush.msra.mxu0 0.0
  %917 = vmatpush.msra.mxu0 0.0
  %918 = vmatpush.msra.mxu0 %v903
  %919 = vmatpush.msra.mxu0 %v902
  %920 = vmatpush.msra.mxu0 %v901
  %921 = vmatpush.msra.mxu0 %v900
  %922 = vmatpush.msra.mxu0 %v899
  %923 = vmatpush.msra.mxu0 %v898
  %924 = vmatpush.msra.mxu0 %v897
  %925 = vmatpush.msra.mxu0 %v896
  %926 = vmatmul.f32.gmra.mxu0 %v905
  %v927 = vpop.f32.mrf.mxu0
  %v928 = vadd.f32 0.0, %v927
  %929 = vmatmul.f32.gmra.mxu0 %v908
  %v930 = vpop.f32.mrf.mxu0
  %v931 = vadd.f32 0.0, %v930
  %932 = vdwg.mxu0
  %v933 = vadd.f32 %v861, %v928
  %v934 = vadd.f32 %v862, %v931
  %s935 = scalar_lea.vmem %s7, 64
  %v936 = vld [vmem:[%s935] sm:$0xff]
  %v937 = vld [vmem:[%s935 + $0x8] sm:$0xff]
  %v939 = vsel %vm270, %v936, 0
  %v942 = vsel %vm270, %v937, 0
  %944 = vmatpush.msra.mxu0 0.0
  %945 = vmatpush.msra.mxu0 0.0
  %946 = vmatpush.msra.mxu0 0.0
  %947 = vmatpush.msra.mxu0 0.0
  %948 = vmatpush.msra.mxu0 0.0
  %949 = vmatpush.msra.mxu0 0.0
  %950 = vmatpush.msra.mxu0 0.0
  %951 = vmatpush.msra.mxu0 0.0
  %952 = vmatpush.msra.mxu0 0.0
  %953 = vmatpush.msra.mxu0 0.0
  %954 = vmatpush.msra.mxu0 0.0
  %955 = vmatpush.msra.mxu0 0.0
  %956 = vmatpush.msra.mxu0 %v652
  %957 = vmatpush.msra.mxu0 %v651
  %958 = vmatpush.msra.mxu0 %v650
  %959 = vmatpush.msra.mxu0 %v649
  %960 = vmatmul.f32.gmra.mxu0 %v939
  %v961 = vpop.f32.mrf.mxu0
  %v962 = vadd.f32 0.0, %v961
  %963 = vmatmul.f32.gmra.mxu0 %v942
  %v964 = vpop.f32.mrf.mxu0
  %v965 = vadd.f32 0.0, %v964
  %966 = vdwg.mxu0
  %s967 = scalar_lea.vmem %s8, 256
  %v968 = vld [vmem:[%s967] sm:$0xff]
  %v969 = vld [vmem:[%s967 + $0x8] sm:$0xff]
  %v970 = vld [vmem:[%s967 + $0x10] sm:$0xff]
  %v971 = vld [vmem:[%s967 + $0x18] sm:$0xff]
  %v972 = vld [vmem:[%s967 + $0x20] sm:$0xff]
  %v973 = vld [vmem:[%s967 + $0x28] sm:$0xff]
  %v974 = vld [vmem:[%s967 + $0x30] sm:$0xff]
  %v975 = vld [vmem:[%s967 + $0x38] sm:$0xff]
  %v977 = vsel %vm173, %v962, 0
  %v980 = vsel %vm173, %v965, 0
  %982 = vmatpush.msra.mxu0 0.0
  %983 = vmatpush.msra.mxu0 0.0
  %984 = vmatpush.msra.mxu0 0.0
  %985 = vmatpush.msra.mxu0 0.0
  %986 = vmatpush.msra.mxu0 0.0
  %987 = vmatpush.msra.mxu0 0.0
  %988 = vmatpush.msra.mxu0 0.0
  %989 = vmatpush.msra.mxu0 0.0
  %990 = vmatpush.msra.mxu0 %v975
  %991 = vmatpush.msra.mxu0 %v974
  %992 = vmatpush.msra.mxu0 %v973
  %993 = vmatpush.msra.mxu0 %v972
  %994 = vmatpush.msra.mxu0 %v971
  %995 = vmatpush.msra.mxu0 %v970
  %996 = vmatpush.msra.mxu0 %v969
  %997 = vmatpush.msra.mxu0 %v968
  %998 = vmatmul.f32.gmra.mxu0 %v977
  %v999 = vpop.f32.mrf.mxu0
  %v1000 = vadd.f32 0.0, %v999
  %1001 = vmatmul.f32.gmra.mxu0 %v980
  %v1002 = vpop.f32.mrf.mxu0
  %v1003 = vadd.f32 0.0, %v1002
  %1004 = vdwg.mxu0
  %v1005 = vadd.f32 %v933, %v1000
  %v1006 = vadd.f32 %v934, %v1003
  %v1007 = vld [vmem:[%s9] sm:$0x1]
  %v1009 = vperm.slane %v1007, 0
  %v1011 = vadd.f32 %v1005, %v1009
  %v1012 = vadd.f32 %v1006, %v1009
  %v1013 = vmax.f32 %v1011, 0.0
  %v1014 = vmax.f32 %v1012, 0.0
  %1015 = vst [vmem:[#allocation2] sm:$0xff] %v1013
  %1016 = vst [vmem:[#allocation2 + $0x8] sm:$0xff] %v1014
  %v1017 = vld [vmem:[#allocation2] sm:$0x3]
  %v1018 = vld [vmem:[%s10] sm:$0xff]
  %v1019 = vld [vmem:[%s10 + $0x8] sm:$0xff]
  %v1020 = vld [vmem:[%s10 + $0x10] sm:$0xff]
  %v1021 = vld [vmem:[%s10 + $0x18] sm:$0xff]
  %v1022 = vld [vmem:[%s10 + $0x20] sm:$0xff]
  %v1023 = vld [vmem:[%s10 + $0x28] sm:$0xff]
  %v1024 = vld [vmem:[%s10 + $0x30] sm:$0xff]
  %v1025 = vld [vmem:[%s10 + $0x38] sm:$0xff]
  %v1026 = vld [vmem:[%s10 + $0x40] sm:$0xff]
  %v1027 = vld [vmem:[%s10 + $0x48] sm:$0xff]
  %v1028 = vld [vmem:[%s10 + $0x50] sm:$0xff]
  %v1029 = vld [vmem:[%s10 + $0x58] sm:$0xff]
  %v1030 = vld [vmem:[%s10 + $0x60] sm:$0xff]
  %v1031 = vld [vmem:[%s10 + $0x68] sm:$0xff]
  %v1032 = vld [vmem:[%s10 + $0x70] sm:$0xff]
  %v1033 = vld [vmem:[%s10 + $0x78] sm:$0xff]
  %v1034 = vld [vmem:[#allocation2 + $0x2] sm:$0x3]
  %s1035 = scalar_lea.vmem %s10, 128
  %v1036 = vld [vmem:[%s1035] sm:$0xff]
  %v1037 = vld [vmem:[%s1035 + $0x8] sm:$0xff]
  %v1038 = vld [vmem:[%s1035 + $0x10] sm:$0xff]
  %v1039 = vld [vmem:[%s1035 + $0x18] sm:$0xff]
  %v1040 = vld [vmem:[%s1035 + $0x20] sm:$0xff]
  %v1041 = vld [vmem:[%s1035 + $0x28] sm:$0xff]
  %v1042 = vld [vmem:[%s1035 + $0x30] sm:$0xff]
  %v1043 = vld [vmem:[%s1035 + $0x38] sm:$0xff]
  %v1044 = vld [vmem:[%s1035 + $0x40] sm:$0xff]
  %v1045 = vld [vmem:[%s1035 + $0x48] sm:$0xff]
  %v1046 = vld [vmem:[%s1035 + $0x50] sm:$0xff]
  %v1047 = vld [vmem:[%s1035 + $0x58] sm:$0xff]
  %v1048 = vld [vmem:[%s1035 + $0x60] sm:$0xff]
  %v1049 = vld [vmem:[%s1035 + $0x68] sm:$0xff]
  %v1050 = vld [vmem:[%s1035 + $0x70] sm:$0xff]
  %v1051 = vld [vmem:[%s1035 + $0x78] sm:$0xff]
  %1052 = vmatpush.msra.mxu0 %v1051
  %1053 = vmatpush.msra.mxu0 %v1050
  %1054 = vmatpush.msra.mxu0 %v1049
  %1055 = vmatpush.msra.mxu0 %v1048
  %1056 = vmatpush.msra.mxu0 %v1047
  %1057 = vmatpush.msra.mxu0 %v1046
  %1058 = vmatpush.msra.mxu0 %v1045
  %1059 = vmatpush.msra.mxu0 %v1044
  %1060 = vmatpush.msra.mxu0 %v1043
  %1061 = vmatpush.msra.mxu0 %v1042
  %1062 = vmatpush.msra.mxu0 %v1041
  %1063 = vmatpush.msra.mxu0 %v1040
  %1064 = vmatpush.msra.mxu0 %v1039
  %1065 = vmatpush.msra.mxu0 %v1038
  %1066 = vmatpush.msra.mxu0 %v1037
  %1067 = vmatpush.msra.mxu0 %v1036
  %1068 = vmatmul.f32.gmra.mxu0 %v1034
  %v1069 = vpop.f32.mrf.mxu0
  %v1070 = vadd.f32 0.0, %v1069
  %1071 = vdwg.mxu0
  %1072 = vmatpush.msra.mxu0 %v1033
  %1073 = vmatpush.msra.mxu0 %v1032
  %1074 = vmatpush.msra.mxu0 %v1031
  %1075 = vmatpush.msra.mxu0 %v1030
  %1076 = vmatpush.msra.mxu0 %v1029
  %1077 = vmatpush.msra.mxu0 %v1028
  %1078 = vmatpush.msra.mxu0 %v1027
  %1079 = vmatpush.msra.mxu0 %v1026
  %1080 = vmatpush.msra.mxu0 %v1025
  %1081 = vmatpush.msra.mxu0 %v1024
  %1082 = vmatpush.msra.mxu0 %v1023
  %1083 = vmatpush.msra.mxu0 %v1022
  %1084 = vmatpush.msra.mxu0 %v1021
  %1085 = vmatpush.msra.mxu0 %v1020
  %1086 = vmatpush.msra.mxu0 %v1019
  %1087 = vmatpush.msra.mxu0 %v1018
  %1088 = vmatmul.f32.gmra.mxu0 %v1017
  %v1089 = vpop.f32.mrf.mxu0
  %v1090 = vadd.f32 %v1070, %v1089
  %1091 = vdwg.mxu0
  %v1092 = vld [vmem:[#allocation2 + $0x4] sm:$0x3]
  %s1093 = scalar_lea.vmem %s10, 256
  %v1094 = vld [vmem:[%s1093] sm:$0xff]
  %v1095 = vld [vmem:[%s1093 + $0x8] sm:$0xff]
  %v1096 = vld [vmem:[%s1093 + $0x10] sm:$0xff]
  %v1097 = vld [vmem:[%s1093 + $0x18] sm:$0xff]
  %v1098 = vld [vmem:[%s1093 + $0x20] sm:$0xff]
  %v1099 = vld [vmem:[%s1093 + $0x28] sm:$0xff]
  %v1100 = vld [vmem:[%s1093 + $0x30] sm:$0xff]
  %v1101 = vld [vmem:[%s1093 + $0x38] sm:$0xff]
  %v1102 = vld [vmem:[%s1093 + $0x40] sm:$0xff]
  %v1103 = vld [vmem:[%s1093 + $0x48] sm:$0xff]
  %v1104 = vld [vmem:[%s1093 + $0x50] sm:$0xff]
  %v1105 = vld [vmem:[%s1093 + $0x58] sm:$0xff]
  %v1106 = vld [vmem:[%s1093 + $0x60] sm:$0xff]
  %v1107 = vld [vmem:[%s1093 + $0x68] sm:$0xff]
  %v1108 = vld [vmem:[%s1093 + $0x70] sm:$0xff]
  %v1109 = vld [vmem:[%s1093 + $0x78] sm:$0xff]
  %1110 = vmatpush.msra.mxu0 %v1109
  %1111 = vmatpush.msra.mxu0 %v1108
  %1112 = vmatpush.msra.mxu0 %v1107
  %1113 = vmatpush.msra.mxu0 %v1106
  %1114 = vmatpush.msra.mxu0 %v1105
  %1115 = vmatpush.msra.mxu0 %v1104
  %1116 = vmatpush.msra.mxu0 %v1103
  %1117 = vmatpush.msra.mxu0 %v1102
  %1118 = vmatpush.msra.mxu0 %v1101
  %1119 = vmatpush.msra.mxu0 %v1100
  %1120 = vmatpush.msra.mxu0 %v1099
  %1121 = vmatpush.msra.mxu0 %v1098
  %1122 = vmatpush.msra.mxu0 %v1097
  %1123 = vmatpush.msra.mxu0 %v1096
  %1124 = vmatpush.msra.mxu0 %v1095
  %1125 = vmatpush.msra.mxu0 %v1094
  %1126 = vmatmul.f32.gmra.mxu0 %v1092
  %v1127 = vpop.f32.mrf.mxu0
  %v1128 = vadd.f32 0.0, %v1127
  %1129 = vdwg.mxu0
  %v1130 = vadd.f32 %v1090, %v1128
  %v1131 = vld [vmem:[#allocation2 + $0x6] sm:$0x3]
  %s1132 = scalar_lea.vmem %s10, 384
  %v1133 = vld [vmem:[%s1132] sm:$0xff]
  %v1134 = vld [vmem:[%s1132 + $0x8] sm:$0xff]
  %v1135 = vld [vmem:[%s1132 + $0x10] sm:$0xff]
  %v1136 = vld [vmem:[%s1132 + $0x18] sm:$0xff]
  %v1137 = vld [vmem:[%s1132 + $0x20] sm:$0xff]
  %v1138 = vld [vmem:[%s1132 + $0x28] sm:$0xff]
  %v1139 = vld [vmem:[%s1132 + $0x30] sm:$0xff]
  %v1140 = vld [vmem:[%s1132 + $0x38] sm:$0xff]
  %v1141 = vld [vmem:[%s1132 + $0x40] sm:$0xff]
  %v1142 = vld [vmem:[%s1132 + $0x48] sm:$0xff]
  %v1143 = vld [vmem:[%s1132 + $0x50] sm:$0xff]
  %v1144 = vld [vmem:[%s1132 + $0x58] sm:$0xff]
  %v1145 = vld [vmem:[%s1132 + $0x60] sm:$0xff]
  %v1146 = vld [vmem:[%s1132 + $0x68] sm:$0xff]
  %v1147 = vld [vmem:[%s1132 + $0x70] sm:$0xff]
  %v1148 = vld [vmem:[%s1132 + $0x78] sm:$0xff]
  %1149 = vmatpush.msra.mxu0 %v1148
  %1150 = vmatpush.msra.mxu0 %v1147
  %1151 = vmatpush.msra.mxu0 %v1146
  %1152 = vmatpush.msra.mxu0 %v1145
  %1153 = vmatpush.msra.mxu0 %v1144
  %1154 = vmatpush.msra.mxu0 %v1143
  %1155 = vmatpush.msra.mxu0 %v1142
  %1156 = vmatpush.msra.mxu0 %v1141
  %1157 = vmatpush.msra.mxu0 %v1140
  %1158 = vmatpush.msra.mxu0 %v1139
  %1159 = vmatpush.msra.mxu0 %v1138
  %1160 = vmatpush.msra.mxu0 %v1137
  %1161 = vmatpush.msra.mxu0 %v1136
  %1162 = vmatpush.msra.mxu0 %v1135
  %1163 = vmatpush.msra.mxu0 %v1134
  %1164 = vmatpush.msra.mxu0 %v1133
  %1165 = vmatmul.f32.gmra.mxu0 %v1131
  %v1166 = vpop.f32.mrf.mxu0
  %v1167 = vadd.f32 0.0, %v1166
  %1168 = vdwg.mxu0
  %v1169 = vadd.f32 %v1130, %v1167
  %v1170 = vld [vmem:[#allocation2 + $0x8] sm:$0x3]
  %s1171 = scalar_lea.vmem %s10, 512
  %v1172 = vld [vmem:[%s1171] sm:$0xff]
  %v1173 = vld [vmem:[%s1171 + $0x8] sm:$0xff]
  %v1174 = vld [vmem:[%s1171 + $0x10] sm:$0xff]
  %v1175 = vld [vmem:[%s1171 + $0x18] sm:$0xff]
  %v1176 = vld [vmem:[%s1171 + $0x20] sm:$0xff]
  %v1177 = vld [vmem:[%s1171 + $0x28] sm:$0xff]
  %v1178 = vld [vmem:[%s1171 + $0x30] sm:$0xff]
  %v1179 = vld [vmem:[%s1171 + $0x38] sm:$0xff]
  %v1180 = vld [vmem:[%s1171 + $0x40] sm:$0xff]
  %v1181 = vld [vmem:[%s1171 + $0x48] sm:$0xff]
  %v1182 = vld [vmem:[%s1171 + $0x50] sm:$0xff]
  %v1183 = vld [vmem:[%s1171 + $0x58] sm:$0xff]
  %v1184 = vld [vmem:[%s1171 + $0x60] sm:$0xff]
  %v1185 = vld [vmem:[%s1171 + $0x68] sm:$0xff]
  %v1186 = vld [vmem:[%s1171 + $0x70] sm:$0xff]
  %v1187 = vld [vmem:[%s1171 + $0x78] sm:$0xff]
  %1188 = vmatpush.msra.mxu0 %v1187
  %1189 = vmatpush.msra.mxu0 %v1186
  %1190 = vmatpush.msra.mxu0 %v1185
  %1191 = vmatpush.msra.mxu0 %v1184
  %1192 = vmatpush.msra.mxu0 %v1183
  %1193 = vmatpush.msra.mxu0 %v1182
  %1194 = vmatpush.msra.mxu0 %v1181
  %1195 = vmatpush.msra.mxu0 %v1180
  %1196 = vmatpush.msra.mxu0 %v1179
  %1197 = vmatpush.msra.mxu0 %v1178
  %1198 = vmatpush.msra.mxu0 %v1177
  %1199 = vmatpush.msra.mxu0 %v1176
  %1200 = vmatpush.msra.mxu0 %v1175
  %1201 = vmatpush.msra.mxu0 %v1174
  %1202 = vmatpush.msra.mxu0 %v1173
  %1203 = vmatpush.msra.mxu0 %v1172
  %1204 = vmatmul.f32.gmra.mxu0 %v1170
  %v1205 = vpop.f32.mrf.mxu0
  %v1206 = vadd.f32 0.0, %v1205
  %1207 = vdwg.mxu0
  %v1208 = vadd.f32 %v1169, %v1206
  %v1209 = vld [vmem:[#allocation2 + $0xa] sm:$0x3]
  %s1210 = scalar_lea.vmem %s10, 640
  %v1211 = vld [vmem:[%s1210] sm:$0xff]
  %v1212 = vld [vmem:[%s1210 + $0x8] sm:$0xff]
  %v1213 = vld [vmem:[%s1210 + $0x10] sm:$0xff]
  %v1214 = vld [vmem:[%s1210 + $0x18] sm:$0xff]
  %v1215 = vld [vmem:[%s1210 + $0x20] sm:$0xff]
  %v1216 = vld [vmem:[%s1210 + $0x28] sm:$0xff]
  %v1217 = vld [vmem:[%s1210 + $0x30] sm:$0xff]
  %v1218 = vld [vmem:[%s1210 + $0x38] sm:$0xff]
  %v1219 = vld [vmem:[%s1210 + $0x40] sm:$0xff]
  %v1220 = vld [vmem:[%s1210 + $0x48] sm:$0xff]
  %v1221 = vld [vmem:[%s1210 + $0x50] sm:$0xff]
  %v1222 = vld [vmem:[%s1210 + $0x58] sm:$0xff]
  %v1223 = vld [vmem:[%s1210 + $0x60] sm:$0xff]
  %v1224 = vld [vmem:[%s1210 + $0x68] sm:$0xff]
  %v1225 = vld [vmem:[%s1210 + $0x70] sm:$0xff]
  %v1226 = vld [vmem:[%s1210 + $0x78] sm:$0xff]
  %1227 = vmatpush.msra.mxu0 %v1226
  %1228 = vmatpush.msra.mxu0 %v1225
  %1229 = vmatpush.msra.mxu0 %v1224
  %1230 = vmatpush.msra.mxu0 %v1223
  %1231 = vmatpush.msra.mxu0 %v1222
  %1232 = vmatpush.msra.mxu0 %v1221
  %1233 = vmatpush.msra.mxu0 %v1220
  %1234 = vmatpush.msra.mxu0 %v1219
  %1235 = vmatpush.msra.mxu0 %v1218
  %1236 = vmatpush.msra.mxu0 %v1217
  %1237 = vmatpush.msra.mxu0 %v1216
  %1238 = vmatpush.msra.mxu0 %v1215
  %1239 = vmatpush.msra.mxu0 %v1214
  %1240 = vmatpush.msra.mxu0 %v1213
  %1241 = vmatpush.msra.mxu0 %v1212
  %1242 = vmatpush.msra.mxu0 %v1211
  %1243 = vmatmul.f32.gmra.mxu0 %v1209
  %v1244 = vpop.f32.mrf.mxu0
  %v1245 = vadd.f32 0.0, %v1244
  %1246 = vdwg.mxu0
  %v1247 = vadd.f32 %v1208, %v1245
  %v1248 = vld [vmem:[#allocation2 + $0xc] sm:$0x3]
  %s1249 = scalar_lea.vmem %s10, 768
  %v1250 = vld [vmem:[%s1249] sm:$0xff]
  %v1251 = vld [vmem:[%s1249 + $0x8] sm:$0xff]
  %v1252 = vld [vmem:[%s1249 + $0x10] sm:$0xff]
  %v1253 = vld [vmem:[%s1249 + $0x18] sm:$0xff]
  %v1254 = vld [vmem:[%s1249 + $0x20] sm:$0xff]
  %v1255 = vld [vmem:[%s1249 + $0x28] sm:$0xff]
  %v1256 = vld [vmem:[%s1249 + $0x30] sm:$0xff]
  %v1257 = vld [vmem:[%s1249 + $0x38] sm:$0xff]
  %v1258 = vld [vmem:[%s1249 + $0x40] sm:$0xff]
  %v1259 = vld [vmem:[%s1249 + $0x48] sm:$0xff]
  %v1260 = vld [vmem:[%s1249 + $0x50] sm:$0xff]
  %v1261 = vld [vmem:[%s1249 + $0x58] sm:$0xff]
  %v1262 = vld [vmem:[%s1249 + $0x60] sm:$0xff]
  %v1263 = vld [vmem:[%s1249 + $0x68] sm:$0xff]
  %v1264 = vld [vmem:[%s1249 + $0x70] sm:$0xff]
  %v1265 = vld [vmem:[%s1249 + $0x78] sm:$0xff]
  %1266 = vmatpush.msra.mxu0 %v1265
  %1267 = vmatpush.msra.mxu0 %v1264
  %1268 = vmatpush.msra.mxu0 %v1263
  %1269 = vmatpush.msra.mxu0 %v1262
  %1270 = vmatpush.msra.mxu0 %v1261
  %1271 = vmatpush.msra.mxu0 %v1260
  %1272 = vmatpush.msra.mxu0 %v1259
  %1273 = vmatpush.msra.mxu0 %v1258
  %1274 = vmatpush.msra.mxu0 %v1257
  %1275 = vmatpush.msra.mxu0 %v1256
  %1276 = vmatpush.msra.mxu0 %v1255
  %1277 = vmatpush.msra.mxu0 %v1254
  %1278 = vmatpush.msra.mxu0 %v1253
  %1279 = vmatpush.msra.mxu0 %v1252
  %1280 = vmatpush.msra.mxu0 %v1251
  %1281 = vmatpush.msra.mxu0 %v1250
  %1282 = vmatmul.f32.gmra.mxu0 %v1248
  %v1283 = vpop.f32.mrf.mxu0
  %v1284 = vadd.f32 0.0, %v1283
  %1285 = vdwg.mxu0
  %v1286 = vadd.f32 %v1247, %v1284
  %v1287 = vld [vmem:[#allocation2 + $0xe] sm:$0x3]
  %s1288 = scalar_lea.vmem %s10, 896
  %v1289 = vld [vmem:[%s1288] sm:$0xff]
  %v1290 = vld [vmem:[%s1288 + $0x8] sm:$0xff]
  %v1291 = vld [vmem:[%s1288 + $0x10] sm:$0xff]
  %v1292 = vld [vmem:[%s1288 + $0x18] sm:$0xff]
  %v1293 = vld [vmem:[%s1288 + $0x20] sm:$0xff]
  %v1294 = vld [vmem:[%s1288 + $0x28] sm:$0xff]
  %v1295 = vld [vmem:[%s1288 + $0x30] sm:$0xff]
  %v1296 = vld [vmem:[%s1288 + $0x38] sm:$0xff]
  %v1297 = vld [vmem:[%s1288 + $0x40] sm:$0xff]
  %v1298 = vld [vmem:[%s1288 + $0x48] sm:$0xff]
  %v1299 = vld [vmem:[%s1288 + $0x50] sm:$0xff]
  %v1300 = vld [vmem:[%s1288 + $0x58] sm:$0xff]
  %v1301 = vld [vmem:[%s1288 + $0x60] sm:$0xff]
  %v1302 = vld [vmem:[%s1288 + $0x68] sm:$0xff]
  %v1303 = vld [vmem:[%s1288 + $0x70] sm:$0xff]
  %v1304 = vld [vmem:[%s1288 + $0x78] sm:$0xff]
  %1305 = vmatpush.msra.mxu0 %v1304
  %1306 = vmatpush.msra.mxu0 %v1303
  %1307 = vmatpush.msra.mxu0 %v1302
  %1308 = vmatpush.msra.mxu0 %v1301
  %1309 = vmatpush.msra.mxu0 %v1300
  %1310 = vmatpush.msra.mxu0 %v1299
  %1311 = vmatpush.msra.mxu0 %v1298
  %1312 = vmatpush.msra.mxu0 %v1297
  %1313 = vmatpush.msra.mxu0 %v1296
  %1314 = vmatpush.msra.mxu0 %v1295
  %1315 = vmatpush.msra.mxu0 %v1294
  %1316 = vmatpush.msra.mxu0 %v1293
  %1317 = vmatpush.msra.mxu0 %v1292
  %1318 = vmatpush.msra.mxu0 %v1291
  %1319 = vmatpush.msra.mxu0 %v1290
  %1320 = vmatpush.msra.mxu0 %v1289
  %1321 = vmatmul.f32.gmra.mxu0 %v1287
  %v1322 = vpop.f32.mrf.mxu0
  %v1323 = vadd.f32 0.0, %v1322
  %1324 = vdwg.mxu0
  %v1325 = vadd.f32 %v1286, %v1323
  %v1326 = vld [vmem:[%s11] sm:$0x1]
  %v1328 = vperm.slane %v1326, 0
  %v1330 = vadd.f32 %v1325, %v1328
  %v1331 = vmax.f32 %v1330, -10.0
  %v1332 = vmin.f32 %v1331, 10.0
  %v1333 = vmul.f32 %v1332, 0.5
  %v1334 = vmul.f32 %v1333, 1.442695
  %v1335 = vpow.pop %v1334
  %v1336 = vadd.f32 %v1335, 1e-06
  %v1337 = vld [vmem:[%s1] sm:$0x3]
  %1339 = vrot.lane.b32.xlu0 %v1336, 96
  %v1340 = vpop.permute.xlu0 %1339
  %v1342 = vmul.f32 %v1337, %v1340
  %v1343 = vadd.f32 %v1330, %v1342
  %v1344 = vlaneseq
  %v1345 = vand.u32 %v1344, 127
  %vm1346 = vcmp.lt.s32.totalorder %v1345, 32
  %v1347 = vsel %vm1346, %v1330, %v1332
  %vm1348 = vcmask 517120
  %1349 = vst.msk [vmem:[%s24] sm:$0x3] %vm1348, %v1347
  %v1350 = vld [vmem:[%s12] sm:$0xff]
  %v1351 = vld [vmem:[%s12 + $0x8] sm:$0xff]
  %v1352 = vld [vmem:[%s12 + $0x10] sm:$0xff]
  %v1353 = vld [vmem:[%s12 + $0x18] sm:$0xff]
  %v1354 = vld [vmem:[%s12 + $0x20] sm:$0xff]
  %v1355 = vld [vmem:[%s12 + $0x28] sm:$0xff]
  %v1356 = vld [vmem:[%s12 + $0x30] sm:$0xff]
  %v1357 = vld [vmem:[%s12 + $0x38] sm:$0xff]
  %v1358 = vld [vmem:[%s12 + $0x40] sm:$0xff]
  %v1359 = vld [vmem:[%s12 + $0x48] sm:$0xff]
  %v1360 = vld [vmem:[%s12 + $0x50] sm:$0xff]
  %v1361 = vld [vmem:[%s12 + $0x58] sm:$0xff]
  %v1362 = vld [vmem:[%s12 + $0x60] sm:$0xff]
  %v1363 = vld [vmem:[%s12 + $0x68] sm:$0xff]
  %v1364 = vld [vmem:[%s12 + $0x70] sm:$0xff]
  %v1365 = vld [vmem:[%s12 + $0x78] sm:$0xff]
  %v1366 = vld [vmem:[%s12 + $0x80] sm:$0xff]
  %v1367 = vld [vmem:[%s12 + $0x88] sm:$0xff]
  %v1368 = vld [vmem:[%s12 + $0x90] sm:$0xff]
  %v1369 = vld [vmem:[%s12 + $0x98] sm:$0xff]
  %v1370 = vld [vmem:[%s12 + $0xa0] sm:$0xff]
  %v1371 = vld [vmem:[%s12 + $0xa8] sm:$0xff]
  %v1372 = vld [vmem:[%s12 + $0xb0] sm:$0xff]
  %v1373 = vld [vmem:[%s12 + $0xb8] sm:$0xff]
  %v1374 = vld [vmem:[%s12 + $0xc0] sm:$0xff]
  %v1375 = vld [vmem:[%s12 + $0xc8] sm:$0xff]
  %v1376 = vld [vmem:[%s12 + $0xd0] sm:$0xff]
  %v1377 = vld [vmem:[%s12 + $0xd8] sm:$0xff]
  %v1378 = vld [vmem:[%s12 + $0xe0] sm:$0xff]
  %v1379 = vld [vmem:[%s12 + $0xe8] sm:$0xff]
  %v1380 = vld [vmem:[%s12 + $0xf0] sm:$0xff]
  %v1381 = vld [vmem:[%s12 + $0xf8] sm:$0xff]
  %v1383 = vsel %vm270, %v1343, 0
  %1385 = vmatpush.msra.mxu0 0.0
  %1386 = vmatpush.msra.mxu0 0.0
  %1387 = vmatpush.msra.mxu0 0.0
  %1388 = vmatpush.msra.mxu0 0.0
  %1389 = vmatpush.msra.mxu0 0.0
  %1390 = vmatpush.msra.mxu0 0.0
  %1391 = vmatpush.msra.mxu0 0.0
  %1392 = vmatpush.msra.mxu0 0.0
  %1393 = vmatpush.msra.mxu0 0.0
  %1394 = vmatpush.msra.mxu0 0.0
  %1395 = vmatpush.msra.mxu0 0.0
  %1396 = vmatpush.msra.mxu0 0.0
  %1397 = vmatpush.msra.mxu0 %v1374
  %1398 = vmatpush.msra.mxu0 %v1366
  %1399 = vmatpush.msra.mxu0 %v1358
  %1400 = vmatpush.msra.mxu0 %v1350
  %1401 = vmatmul.f32.gmra.mxu0 %v1383
  %v1402 = vpop.f32.mrf.mxu0
  %v1403 = vadd.f32 0.0, %v1402
  %1404 = vdwg.mxu0
  %1405 = vmatpush.msra.mxu0 0.0
  %1406 = vmatpush.msra.mxu0 0.0
  %1407 = vmatpush.msra.mxu0 0.0
  %1408 = vmatpush.msra.mxu0 0.0
  %1409 = vmatpush.msra.mxu0 0.0
  %1410 = vmatpush.msra.mxu0 0.0
  %1411 = vmatpush.msra.mxu0 0.0
  %1412 = vmatpush.msra.mxu0 0.0
  %1413 = vmatpush.msra.mxu0 0.0
  %1414 = vmatpush.msra.mxu0 0.0
  %1415 = vmatpush.msra.mxu0 0.0
  %1416 = vmatpush.msra.mxu0 0.0
  %1417 = vmatpush.msra.mxu0 %v1375
  %1418 = vmatpush.msra.mxu0 %v1367
  %1419 = vmatpush.msra.mxu0 %v1359
  %1420 = vmatpush.msra.mxu0 %v1351
  %1421 = vmatmul.f32.gmra.mxu0 %v1383
  %v1422 = vpop.f32.mrf.mxu0
  %v1423 = vadd.f32 0.0, %v1422
  %1424 = vdwg.mxu0
  %1425 = vmatpush.msra.mxu0 0.0
  %1426 = vmatpush.msra.mxu0 0.0
  %1427 = vmatpush.msra.mxu0 0.0
  %1428 = vmatpush.msra.mxu0 0.0
  %1429 = vmatpush.msra.mxu0 0.0
  %1430 = vmatpush.msra.mxu0 0.0
  %1431 = vmatpush.msra.mxu0 0.0
  %1432 = vmatpush.msra.mxu0 0.0
  %1433 = vmatpush.msra.mxu0 0.0
  %1434 = vmatpush.msra.mxu0 0.0
  %1435 = vmatpush.msra.mxu0 0.0
  %1436 = vmatpush.msra.mxu0 0.0
  %1437 = vmatpush.msra.mxu0 %v1376
  %1438 = vmatpush.msra.mxu0 %v1368
  %1439 = vmatpush.msra.mxu0 %v1360
  %1440 = vmatpush.msra.mxu0 %v1352
  %1441 = vmatmul.f32.gmra.mxu0 %v1383
  %v1442 = vpop.f32.mrf.mxu0
  %v1443 = vadd.f32 0.0, %v1442
  %1444 = vdwg.mxu0
  %1445 = vmatpush.msra.mxu0 0.0
  %1446 = vmatpush.msra.mxu0 0.0
  %1447 = vmatpush.msra.mxu0 0.0
  %1448 = vmatpush.msra.mxu0 0.0
  %1449 = vmatpush.msra.mxu0 0.0
  %1450 = vmatpush.msra.mxu0 0.0
  %1451 = vmatpush.msra.mxu0 0.0
  %1452 = vmatpush.msra.mxu0 0.0
  %1453 = vmatpush.msra.mxu0 0.0
  %1454 = vmatpush.msra.mxu0 0.0
  %1455 = vmatpush.msra.mxu0 0.0
  %1456 = vmatpush.msra.mxu0 0.0
  %1457 = vmatpush.msra.mxu0 %v1377
  %1458 = vmatpush.msra.mxu0 %v1369
  %1459 = vmatpush.msra.mxu0 %v1361
  %1460 = vmatpush.msra.mxu0 %v1353
  %1461 = vmatmul.f32.gmra.mxu0 %v1383
  %v1462 = vpop.f32.mrf.mxu0
  %v1463 = vadd.f32 0.0, %v1462
  %1464 = vdwg.mxu0
  %1465 = vmatpush.msra.mxu0 0.0
  %1466 = vmatpush.msra.mxu0 0.0
  %1467 = vmatpush.msra.mxu0 0.0
  %1468 = vmatpush.msra.mxu0 0.0
  %1469 = vmatpush.msra.mxu0 0.0
  %1470 = vmatpush.msra.mxu0 0.0
  %1471 = vmatpush.msra.mxu0 0.0
  %1472 = vmatpush.msra.mxu0 0.0
  %1473 = vmatpush.msra.mxu0 0.0
  %1474 = vmatpush.msra.mxu0 0.0
  %1475 = vmatpush.msra.mxu0 0.0
  %1476 = vmatpush.msra.mxu0 0.0
  %1477 = vmatpush.msra.mxu0 %v1378
  %1478 = vmatpush.msra.mxu0 %v1370
  %1479 = vmatpush.msra.mxu0 %v1362
  %1480 = vmatpush.msra.mxu0 %v1354
  %1481 = vmatmul.f32.gmra.mxu0 %v1383
  %v1482 = vpop.f32.mrf.mxu0
  %v1483 = vadd.f32 0.0, %v1482
  %1484 = vdwg.mxu0
  %1485 = vmatpush.msra.mxu0 0.0
  %1486 = vmatpush.msra.mxu0 0.0
  %1487 = vmatpush.msra.mxu0 0.0
  %1488 = vmatpush.msra.mxu0 0.0
  %1489 = vmatpush.msra.mxu0 0.0
  %1490 = vmatpush.msra.mxu0 0.0
  %1491 = vmatpush.msra.mxu0 0.0
  %1492 = vmatpush.msra.mxu0 0.0
  %1493 = vmatpush.msra.mxu0 0.0
  %1494 = vmatpush.msra.mxu0 0.0
  %1495 = vmatpush.msra.mxu0 0.0
  %1496 = vmatpush.msra.mxu0 0.0
  %1497 = vmatpush.msra.mxu0 %v1379
  %1498 = vmatpush.msra.mxu0 %v1371
  %1499 = vmatpush.msra.mxu0 %v1363
  %1500 = vmatpush.msra.mxu0 %v1355
  %1501 = vmatmul.f32.gmra.mxu0 %v1383
  %v1502 = vpop.f32.mrf.mxu0
  %v1503 = vadd.f32 0.0, %v1502
  %1504 = vdwg.mxu0
  %1505 = vmatpush.msra.mxu0 0.0
  %1506 = vmatpush.msra.mxu0 0.0
  %1507 = vmatpush.msra.mxu0 0.0
  %1508 = vmatpush.msra.mxu0 0.0
  %1509 = vmatpush.msra.mxu0 0.0
  %1510 = vmatpush.msra.mxu0 0.0
  %1511 = vmatpush.msra.mxu0 0.0
  %1512 = vmatpush.msra.mxu0 0.0
  %1513 = vmatpush.msra.mxu0 0.0
  %1514 = vmatpush.msra.mxu0 0.0
  %1515 = vmatpush.msra.mxu0 0.0
  %1516 = vmatpush.msra.mxu0 0.0
  %1517 = vmatpush.msra.mxu0 %v1380
  %1518 = vmatpush.msra.mxu0 %v1372
  %1519 = vmatpush.msra.mxu0 %v1364
  %1520 = vmatpush.msra.mxu0 %v1356
  %1521 = vmatmul.f32.gmra.mxu0 %v1383
  %v1522 = vpop.f32.mrf.mxu0
  %v1523 = vadd.f32 0.0, %v1522
  %1524 = vdwg.mxu0
  %1525 = vmatpush.msra.mxu0 0.0
  %1526 = vmatpush.msra.mxu0 0.0
  %1527 = vmatpush.msra.mxu0 0.0
  %1528 = vmatpush.msra.mxu0 0.0
  %1529 = vmatpush.msra.mxu0 0.0
  %1530 = vmatpush.msra.mxu0 0.0
  %1531 = vmatpush.msra.mxu0 0.0
  %1532 = vmatpush.msra.mxu0 0.0
  %1533 = vmatpush.msra.mxu0 0.0
  %1534 = vmatpush.msra.mxu0 0.0
  %1535 = vmatpush.msra.mxu0 0.0
  %1536 = vmatpush.msra.mxu0 0.0
  %1537 = vmatpush.msra.mxu0 %v1381
  %1538 = vmatpush.msra.mxu0 %v1373
  %1539 = vmatpush.msra.mxu0 %v1365
  %1540 = vmatpush.msra.mxu0 %v1357
  %1541 = vmatmul.f32.gmra.mxu0 %v1383
  %v1542 = vpop.f32.mrf.mxu0
  %v1543 = vadd.f32 0.0, %v1542
  %1544 = vdwg.mxu0
  %v1545 = vld [vmem:[%s13] sm:$0x3]
  %v1546 = vadd.f32 %v1403, %v1545
  %1547 = vst [vmem:[#allocation3] sm:$0x3] %v1546
  %v1548 = vld [vmem:[%s13 + $0x2] sm:$0x3]
  %v1549 = vadd.f32 %v1423, %v1548
  %1550 = vst [vmem:[#allocation3 + $0x2] sm:$0x3] %v1549
  %v1551 = vld [vmem:[%s13 + $0x4] sm:$0x3]
  %v1552 = vadd.f32 %v1443, %v1551
  %1553 = vst [vmem:[#allocation3 + $0x4] sm:$0x3] %v1552
  %v1554 = vld [vmem:[%s13 + $0x6] sm:$0x3]
  %v1555 = vadd.f32 %v1463, %v1554
  %1556 = vst [vmem:[#allocation3 + $0x6] sm:$0x3] %v1555
  %v1557 = vld [vmem:[%s13 + $0x8] sm:$0x3]
  %v1558 = vadd.f32 %v1483, %v1557
  %1559 = vst [vmem:[#allocation3 + $0x8] sm:$0x3] %v1558
  %v1560 = vld [vmem:[%s13 + $0xa] sm:$0x3]
  %v1561 = vadd.f32 %v1503, %v1560
  %1562 = vst [vmem:[#allocation3 + $0xa] sm:$0x3] %v1561
  %v1563 = vld [vmem:[%s13 + $0xc] sm:$0x3]
  %v1564 = vadd.f32 %v1523, %v1563
  %1565 = vst [vmem:[#allocation3 + $0xc] sm:$0x3] %v1564
  %v1566 = vld [vmem:[%s13 + $0xe] sm:$0x3]
  %v1567 = vadd.f32 %v1543, %v1566
  %1568 = vst [vmem:[#allocation3 + $0xe] sm:$0x3] %v1567
  %v1569 = vld [vmem:[#allocation3] sm:$0xff]
  %v1570 = vld [vmem:[#allocation3 + $0x8] sm:$0xff]
  %v1571 = vld [vmem:[%s14] sm:$0xff]
  %v1572 = vld [vmem:[%s14 + $0x8] sm:$0xff]
  %v1573 = vld [vmem:[%s14 + $0x10] sm:$0xff]
  %v1574 = vld [vmem:[%s14 + $0x18] sm:$0xff]
  %vm1575 = vcmask 130048
  %v1577 = vsel %vm1575, %v1571, 0
  %v1580 = vsel %vm1575, %v1572, 0
  %v1583 = vsel %vm1575, %v1573, 0
  %v1586 = vsel %vm1575, %v1574, 0
  %1588 = vmatpush.msra.mxu0 0.0
  %1589 = vmatpush.msra.mxu0 0.0
  %1590 = vmatpush.msra.mxu0 0.0
  %1591 = vmatpush.msra.mxu0 0.0
  %1592 = vmatpush.msra.mxu0 0.0
  %1593 = vmatpush.msra.mxu0 0.0
  %1594 = vmatpush.msra.mxu0 0.0
  %1595 = vmatpush.msra.mxu0 0.0
  %1596 = vmatpush.msra.mxu0 0.0
  %1597 = vmatpush.msra.mxu0 0.0
  %1598 = vmatpush.msra.mxu0 0.0
  %1599 = vmatpush.msra.mxu0 0.0
  %1600 = vmatpush.msra.mxu0 0.0
  %1601 = vmatpush.msra.mxu0 0.0
  %1602 = vmatpush.msra.mxu0 %v1570
  %1603 = vmatpush.msra.mxu0 %v1569
  %1604 = vmatmul.f32.gmra.mxu0 %v1577
  %v1605 = vpop.f32.mrf.mxu0
  %v1606 = vadd.f32 0.0, %v1605
  %1607 = vmatmul.f32.gmra.mxu0 %v1580
  %v1608 = vpop.f32.mrf.mxu0
  %v1609 = vadd.f32 0.0, %v1608
  %1610 = vmatmul.f32.gmra.mxu0 %v1583
  %v1611 = vpop.f32.mrf.mxu0
  %v1612 = vadd.f32 0.0, %v1611
  %1613 = vmatmul.f32.gmra.mxu0 %v1586
  %v1614 = vpop.f32.mrf.mxu0
  %v1615 = vadd.f32 0.0, %v1614
  %1616 = vdwg.mxu0
  %v1617 = vld [vmem:[%s15] sm:$0xff]
  %v1618 = vld [vmem:[%s15 + $0x8] sm:$0xff]
  %v1619 = vld [vmem:[%s15 + $0x10] sm:$0xff]
  %v1620 = vld [vmem:[%s15 + $0x18] sm:$0xff]
  %v1621 = vld [vmem:[%s15 + $0x20] sm:$0xff]
  %v1622 = vld [vmem:[%s15 + $0x28] sm:$0xff]
  %v1623 = vld [vmem:[%s15 + $0x30] sm:$0xff]
  %v1624 = vld [vmem:[%s15 + $0x38] sm:$0xff]
  %v1625 = vld [vmem:[%s15 + $0x40] sm:$0xff]
  %v1626 = vld [vmem:[%s15 + $0x48] sm:$0xff]
  %v1627 = vld [vmem:[%s15 + $0x50] sm:$0xff]
  %v1628 = vld [vmem:[%s15 + $0x58] sm:$0xff]
  %v1629 = vld [vmem:[%s15 + $0x60] sm:$0xff]
  %v1630 = vld [vmem:[%s15 + $0x68] sm:$0xff]
  %v1631 = vld [vmem:[%s15 + $0x70] sm:$0xff]
  %v1632 = vld [vmem:[%s15 + $0x78] sm:$0xff]
  %s1633 = scalar_lea.vmem %s14, 32
  %v1634 = vld [vmem:[%s1633] sm:$0xff]
  %v1635 = vld [vmem:[%s1633 + $0x8] sm:$0xff]
  %v1636 = vld [vmem:[%s1633 + $0x10] sm:$0xff]
  %v1637 = vld [vmem:[%s1633 + $0x18] sm:$0xff]
  %v1639 = vsel %vm1575, %v1634, 0
  %v1642 = vsel %vm1575, %v1635, 0
  %v1645 = vsel %vm1575, %v1636, 0
  %v1648 = vsel %vm1575, %v1637, 0
  %1650 = vmatpush.msra.mxu0 0.0
  %1651 = vmatpush.msra.mxu0 0.0
  %1652 = vmatpush.msra.mxu0 0.0
  %1653 = vmatpush.msra.mxu0 0.0
  %1654 = vmatpush.msra.mxu0 0.0
  %1655 = vmatpush.msra.mxu0 0.0
  %1656 = vmatpush.msra.mxu0 0.0
  %1657 = vmatpush.msra.mxu0 0.0
  %1658 = vmatpush.msra.mxu0 0.0
  %1659 = vmatpush.msra.mxu0 0.0
  %1660 = vmatpush.msra.mxu0 0.0
  %1661 = vmatpush.msra.mxu0 0.0
  %1662 = vmatpush.msra.mxu0 0.0
  %1663 = vmatpush.msra.mxu0 0.0
  %1664 = vmatpush.msra.mxu0 %v1570
  %1665 = vmatpush.msra.mxu0 %v1569
  %1666 = vmatmul.f32.gmra.mxu0 %v1639
  %v1667 = vpop.f32.mrf.mxu0
  %v1668 = vadd.f32 0.0, %v1667
  %1669 = vmatmul.f32.gmra.mxu0 %v1642
  %v1670 = vpop.f32.mrf.mxu0
  %v1671 = vadd.f32 0.0, %v1670
  %1672 = vmatmul.f32.gmra.mxu0 %v1645
  %v1673 = vpop.f32.mrf.mxu0
  %v1674 = vadd.f32 0.0, %v1673
  %1675 = vmatmul.f32.gmra.mxu0 %v1648
  %v1676 = vpop.f32.mrf.mxu0
  %v1677 = vadd.f32 0.0, %v1676
  %1678 = vdwg.mxu0
  %s1679 = scalar_lea.vmem %s15, 128
  %v1680 = vld [vmem:[%s1679] sm:$0xff]
  %v1681 = vld [vmem:[%s1679 + $0x8] sm:$0xff]
  %v1682 = vld [vmem:[%s1679 + $0x10] sm:$0xff]
  %v1683 = vld [vmem:[%s1679 + $0x18] sm:$0xff]
  %v1684 = vld [vmem:[%s1679 + $0x20] sm:$0xff]
  %v1685 = vld [vmem:[%s1679 + $0x28] sm:$0xff]
  %v1686 = vld [vmem:[%s1679 + $0x30] sm:$0xff]
  %v1687 = vld [vmem:[%s1679 + $0x38] sm:$0xff]
  %v1688 = vld [vmem:[%s1679 + $0x40] sm:$0xff]
  %v1689 = vld [vmem:[%s1679 + $0x48] sm:$0xff]
  %v1690 = vld [vmem:[%s1679 + $0x50] sm:$0xff]
  %v1691 = vld [vmem:[%s1679 + $0x58] sm:$0xff]
  %v1692 = vld [vmem:[%s1679 + $0x60] sm:$0xff]
  %v1693 = vld [vmem:[%s1679 + $0x68] sm:$0xff]
  %v1694 = vld [vmem:[%s1679 + $0x70] sm:$0xff]
  %v1695 = vld [vmem:[%s1679 + $0x78] sm:$0xff]
  %1696 = vmatpush.msra.mxu0 %v1695
  %1697 = vmatpush.msra.mxu0 %v1694
  %1698 = vmatpush.msra.mxu0 %v1693
  %1699 = vmatpush.msra.mxu0 %v1692
  %1700 = vmatpush.msra.mxu0 %v1691
  %1701 = vmatpush.msra.mxu0 %v1690
  %1702 = vmatpush.msra.mxu0 %v1689
  %1703 = vmatpush.msra.mxu0 %v1688
  %1704 = vmatpush.msra.mxu0 %v1687
  %1705 = vmatpush.msra.mxu0 %v1686
  %1706 = vmatpush.msra.mxu0 %v1685
  %1707 = vmatpush.msra.mxu0 %v1684
  %1708 = vmatpush.msra.mxu0 %v1683
  %1709 = vmatpush.msra.mxu0 %v1682
  %1710 = vmatpush.msra.mxu0 %v1681
  %1711 = vmatpush.msra.mxu0 %v1680
  %1712 = vmatmul.f32.gmra.mxu0 %v1668
  %v1713 = vpop.f32.mrf.mxu0
  %v1714 = vadd.f32 0.0, %v1713
  %1715 = vmatmul.f32.gmra.mxu0 %v1671
  %v1716 = vpop.f32.mrf.mxu0
  %v1717 = vadd.f32 0.0, %v1716
  %1718 = vmatmul.f32.gmra.mxu0 %v1674
  %v1719 = vpop.f32.mrf.mxu0
  %v1720 = vadd.f32 0.0, %v1719
  %1721 = vmatmul.f32.gmra.mxu0 %v1677
  %v1722 = vpop.f32.mrf.mxu0
  %v1723 = vadd.f32 0.0, %v1722
  %1724 = vdwg.mxu0
  %1725 = vmatpush.msra.mxu0 %v1632
  %1726 = vmatpush.msra.mxu0 %v1631
  %1727 = vmatpush.msra.mxu0 %v1630
  %1728 = vmatpush.msra.mxu0 %v1629
  %1729 = vmatpush.msra.mxu0 %v1628
  %1730 = vmatpush.msra.mxu0 %v1627
  %1731 = vmatpush.msra.mxu0 %v1626
  %1732 = vmatpush.msra.mxu0 %v1625
  %1733 = vmatpush.msra.mxu0 %v1624
  %1734 = vmatpush.msra.mxu0 %v1623
  %1735 = vmatpush.msra.mxu0 %v1622
  %1736 = vmatpush.msra.mxu0 %v1621
  %1737 = vmatpush.msra.mxu0 %v1620
  %1738 = vmatpush.msra.mxu0 %v1619
  %1739 = vmatpush.msra.mxu0 %v1618
  %1740 = vmatpush.msra.mxu0 %v1617
  %1741 = vmatmul.f32.gmra.mxu0 %v1606
  %v1742 = vpop.f32.mrf.mxu0
  %v1743 = vadd.f32 %v1714, %v1742
  %1744 = vmatmul.f32.gmra.mxu0 %v1609
  %v1745 = vpop.f32.mrf.mxu0
  %v1746 = vadd.f32 %v1717, %v1745
  %1747 = vmatmul.f32.gmra.mxu0 %v1612
  %v1748 = vpop.f32.mrf.mxu0
  %v1749 = vadd.f32 %v1720, %v1748
  %1750 = vmatmul.f32.gmra.mxu0 %v1615
  %v1751 = vpop.f32.mrf.mxu0
  %v1752 = vadd.f32 %v1723, %v1751
  %1753 = vdwg.mxu0
  %s1754 = scalar_lea.vmem %s14, 64
  %v1755 = vld [vmem:[%s1754] sm:$0xff]
  %v1756 = vld [vmem:[%s1754 + $0x8] sm:$0xff]
  %v1757 = vld [vmem:[%s1754 + $0x10] sm:$0xff]
  %v1758 = vld [vmem:[%s1754 + $0x18] sm:$0xff]
  %v1760 = vsel %vm1575, %v1755, 0
  %v1763 = vsel %vm1575, %v1756, 0
  %v1766 = vsel %vm1575, %v1757, 0
  %v1769 = vsel %vm1575, %v1758, 0
  %1771 = vmatpush.msra.mxu0 0.0
  %1772 = vmatpush.msra.mxu0 0.0
  %1773 = vmatpush.msra.mxu0 0.0
  %1774 = vmatpush.msra.mxu0 0.0
  %1775 = vmatpush.msra.mxu0 0.0
  %1776 = vmatpush.msra.mxu0 0.0
  %1777 = vmatpush.msra.mxu0 0.0
  %1778 = vmatpush.msra.mxu0 0.0
  %1779 = vmatpush.msra.mxu0 0.0
  %1780 = vmatpush.msra.mxu0 0.0
  %1781 = vmatpush.msra.mxu0 0.0
  %1782 = vmatpush.msra.mxu0 0.0
  %1783 = vmatpush.msra.mxu0 0.0
  %1784 = vmatpush.msra.mxu0 0.0
  %1785 = vmatpush.msra.mxu0 %v1570
  %1786 = vmatpush.msra.mxu0 %v1569
  %1787 = vmatmul.f32.gmra.mxu0 %v1760
  %v1788 = vpop.f32.mrf.mxu0
  %v1789 = vadd.f32 0.0, %v1788
  %1790 = vmatmul.f32.gmra.mxu0 %v1763
  %v1791 = vpop.f32.mrf.mxu0
  %v1792 = vadd.f32 0.0, %v1791
  %1793 = vmatmul.f32.gmra.mxu0 %v1766
  %v1794 = vpop.f32.mrf.mxu0
  %v1795 = vadd.f32 0.0, %v1794
  %1796 = vmatmul.f32.gmra.mxu0 %v1769
  %v1797 = vpop.f32.mrf.mxu0
  %v1798 = vadd.f32 0.0, %v1797
  %1799 = vdwg.mxu0
  %s1800 = scalar_lea.vmem %s15, 256
  %v1801 = vld [vmem:[%s1800] sm:$0xff]
  %v1802 = vld [vmem:[%s1800 + $0x8] sm:$0xff]
  %v1803 = vld [vmem:[%s1800 + $0x10] sm:$0xff]
  %v1804 = vld [vmem:[%s1800 + $0x18] sm:$0xff]
  %v1805 = vld [vmem:[%s1800 + $0x20] sm:$0xff]
  %v1806 = vld [vmem:[%s1800 + $0x28] sm:$0xff]
  %v1807 = vld [vmem:[%s1800 + $0x30] sm:$0xff]
  %v1808 = vld [vmem:[%s1800 + $0x38] sm:$0xff]
  %v1809 = vld [vmem:[%s1800 + $0x40] sm:$0xff]
  %v1810 = vld [vmem:[%s1800 + $0x48] sm:$0xff]
  %v1811 = vld [vmem:[%s1800 + $0x50] sm:$0xff]
  %v1812 = vld [vmem:[%s1800 + $0x58] sm:$0xff]
  %v1813 = vld [vmem:[%s1800 + $0x60] sm:$0xff]
  %v1814 = vld [vmem:[%s1800 + $0x68] sm:$0xff]
  %v1815 = vld [vmem:[%s1800 + $0x70] sm:$0xff]
  %v1816 = vld [vmem:[%s1800 + $0x78] sm:$0xff]
  %1817 = vmatpush.msra.mxu0 %v1816
  %1818 = vmatpush.msra.mxu0 %v1815
  %1819 = vmatpush.msra.mxu0 %v1814
  %1820 = vmatpush.msra.mxu0 %v1813
  %1821 = vmatpush.msra.mxu0 %v1812
  %1822 = vmatpush.msra.mxu0 %v1811
  %1823 = vmatpush.msra.mxu0 %v1810
  %1824 = vmatpush.msra.mxu0 %v1809
  %1825 = vmatpush.msra.mxu0 %v1808
  %1826 = vmatpush.msra.mxu0 %v1807
  %1827 = vmatpush.msra.mxu0 %v1806
  %1828 = vmatpush.msra.mxu0 %v1805
  %1829 = vmatpush.msra.mxu0 %v1804
  %1830 = vmatpush.msra.mxu0 %v1803
  %1831 = vmatpush.msra.mxu0 %v1802
  %1832 = vmatpush.msra.mxu0 %v1801
  %1833 = vmatmul.f32.gmra.mxu0 %v1789
  %v1834 = vpop.f32.mrf.mxu0
  %v1835 = vadd.f32 0.0, %v1834
  %1836 = vmatmul.f32.gmra.mxu0 %v1792
  %v1837 = vpop.f32.mrf.mxu0
  %v1838 = vadd.f32 0.0, %v1837
  %1839 = vmatmul.f32.gmra.mxu0 %v1795
  %v1840 = vpop.f32.mrf.mxu0
  %v1841 = vadd.f32 0.0, %v1840
  %1842 = vmatmul.f32.gmra.mxu0 %v1798
  %v1843 = vpop.f32.mrf.mxu0
  %v1844 = vadd.f32 0.0, %v1843
  %1845 = vdwg.mxu0
  %v1846 = vadd.f32 %v1743, %v1835
  %v1847 = vadd.f32 %v1746, %v1838
  %v1848 = vadd.f32 %v1749, %v1841
  %v1849 = vadd.f32 %v1752, %v1844
  %s1850 = scalar_lea.vmem %s14, 96
  %v1851 = vld [vmem:[%s1850] sm:$0xff]
  %v1852 = vld [vmem:[%s1850 + $0x8] sm:$0xff]
  %v1853 = vld [vmem:[%s1850 + $0x10] sm:$0xff]
  %v1854 = vld [vmem:[%s1850 + $0x18] sm:$0xff]
  %v1856 = vsel %vm1575, %v1851, 0
  %v1859 = vsel %vm1575, %v1852, 0
  %v1862 = vsel %vm1575, %v1853, 0
  %v1865 = vsel %vm1575, %v1854, 0
  %1867 = vmatpush.msra.mxu0 0.0
  %1868 = vmatpush.msra.mxu0 0.0
  %1869 = vmatpush.msra.mxu0 0.0
  %1870 = vmatpush.msra.mxu0 0.0
  %1871 = vmatpush.msra.mxu0 0.0
  %1872 = vmatpush.msra.mxu0 0.0
  %1873 = vmatpush.msra.mxu0 0.0
  %1874 = vmatpush.msra.mxu0 0.0
  %1875 = vmatpush.msra.mxu0 0.0
  %1876 = vmatpush.msra.mxu0 0.0
  %1877 = vmatpush.msra.mxu0 0.0
  %1878 = vmatpush.msra.mxu0 0.0
  %1879 = vmatpush.msra.mxu0 0.0
  %1880 = vmatpush.msra.mxu0 0.0
  %1881 = vmatpush.msra.mxu0 %v1570
  %1882 = vmatpush.msra.mxu0 %v1569
  %1883 = vmatmul.f32.gmra.mxu0 %v1856
  %v1884 = vpop.f32.mrf.mxu0
  %v1885 = vadd.f32 0.0, %v1884
  %1886 = vmatmul.f32.gmra.mxu0 %v1859
  %v1887 = vpop.f32.mrf.mxu0
  %v1888 = vadd.f32 0.0, %v1887
  %1889 = vmatmul.f32.gmra.mxu0 %v1862
  %v1890 = vpop.f32.mrf.mxu0
  %v1891 = vadd.f32 0.0, %v1890
  %1892 = vmatmul.f32.gmra.mxu0 %v1865
  %v1893 = vpop.f32.mrf.mxu0
  %v1894 = vadd.f32 0.0, %v1893
  %1895 = vdwg.mxu0
  %s1896 = scalar_lea.vmem %s15, 384
  %v1897 = vld [vmem:[%s1896] sm:$0xff]
  %v1898 = vld [vmem:[%s1896 + $0x8] sm:$0xff]
  %v1899 = vld [vmem:[%s1896 + $0x10] sm:$0xff]
  %v1900 = vld [vmem:[%s1896 + $0x18] sm:$0xff]
  %v1901 = vld [vmem:[%s1896 + $0x20] sm:$0xff]
  %v1902 = vld [vmem:[%s1896 + $0x28] sm:$0xff]
  %v1903 = vld [vmem:[%s1896 + $0x30] sm:$0xff]
  %v1904 = vld [vmem:[%s1896 + $0x38] sm:$0xff]
  %v1905 = vld [vmem:[%s1896 + $0x40] sm:$0xff]
  %v1906 = vld [vmem:[%s1896 + $0x48] sm:$0xff]
  %v1907 = vld [vmem:[%s1896 + $0x50] sm:$0xff]
  %v1908 = vld [vmem:[%s1896 + $0x58] sm:$0xff]
  %v1909 = vld [vmem:[%s1896 + $0x60] sm:$0xff]
  %v1910 = vld [vmem:[%s1896 + $0x68] sm:$0xff]
  %v1911 = vld [vmem:[%s1896 + $0x70] sm:$0xff]
  %v1912 = vld [vmem:[%s1896 + $0x78] sm:$0xff]
  %1913 = vmatpush.msra.mxu0 %v1912
  %1914 = vmatpush.msra.mxu0 %v1911
  %1915 = vmatpush.msra.mxu0 %v1910
  %1916 = vmatpush.msra.mxu0 %v1909
  %1917 = vmatpush.msra.mxu0 %v1908
  %1918 = vmatpush.msra.mxu0 %v1907
  %1919 = vmatpush.msra.mxu0 %v1906
  %1920 = vmatpush.msra.mxu0 %v1905
  %1921 = vmatpush.msra.mxu0 %v1904
  %1922 = vmatpush.msra.mxu0 %v1903
  %1923 = vmatpush.msra.mxu0 %v1902
  %1924 = vmatpush.msra.mxu0 %v1901
  %1925 = vmatpush.msra.mxu0 %v1900
  %1926 = vmatpush.msra.mxu0 %v1899
  %1927 = vmatpush.msra.mxu0 %v1898
  %1928 = vmatpush.msra.mxu0 %v1897
  %1929 = vmatmul.f32.gmra.mxu0 %v1885
  %v1930 = vpop.f32.mrf.mxu0
  %v1931 = vadd.f32 0.0, %v1930
  %1932 = vmatmul.f32.gmra.mxu0 %v1888
  %v1933 = vpop.f32.mrf.mxu0
  %v1934 = vadd.f32 0.0, %v1933
  %1935 = vmatmul.f32.gmra.mxu0 %v1891
  %v1936 = vpop.f32.mrf.mxu0
  %v1937 = vadd.f32 0.0, %v1936
  %1938 = vmatmul.f32.gmra.mxu0 %v1894
  %v1939 = vpop.f32.mrf.mxu0
  %v1940 = vadd.f32 0.0, %v1939
  %1941 = vdwg.mxu0
  %v1942 = vadd.f32 %v1846, %v1931
  %v1943 = vadd.f32 %v1847, %v1934
  %v1944 = vadd.f32 %v1848, %v1937
  %v1945 = vadd.f32 %v1849, %v1940
  %s1946 = scalar_lea.vmem %s14, 128
  %v1947 = vld [vmem:[%s1946] sm:$0xff]
  %v1948 = vld [vmem:[%s1946 + $0x8] sm:$0xff]
  %v1949 = vld [vmem:[%s1946 + $0x10] sm:$0xff]
  %v1950 = vld [vmem:[%s1946 + $0x18] sm:$0xff]
  %v1952 = vsel %vm1575, %v1947, 0
  %v1955 = vsel %vm1575, %v1948, 0
  %v1958 = vsel %vm1575, %v1949, 0
  %v1961 = vsel %vm1575, %v1950, 0
  %1963 = vmatpush.msra.mxu0 0.0
  %1964 = vmatpush.msra.mxu0 0.0
  %1965 = vmatpush.msra.mxu0 0.0
  %1966 = vmatpush.msra.mxu0 0.0
  %1967 = vmatpush.msra.mxu0 0.0
  %1968 = vmatpush.msra.mxu0 0.0
  %1969 = vmatpush.msra.mxu0 0.0
  %1970 = vmatpush.msra.mxu0 0.0
  %1971 = vmatpush.msra.mxu0 0.0
  %1972 = vmatpush.msra.mxu0 0.0
  %1973 = vmatpush.msra.mxu0 0.0
  %1974 = vmatpush.msra.mxu0 0.0
  %1975 = vmatpush.msra.mxu0 0.0
  %1976 = vmatpush.msra.mxu0 0.0
  %1977 = vmatpush.msra.mxu0 %v1570
  %1978 = vmatpush.msra.mxu0 %v1569
  %1979 = vmatmul.f32.gmra.mxu0 %v1952
  %v1980 = vpop.f32.mrf.mxu0
  %v1981 = vadd.f32 0.0, %v1980
  %1982 = vmatmul.f32.gmra.mxu0 %v1955
  %v1983 = vpop.f32.mrf.mxu0
  %v1984 = vadd.f32 0.0, %v1983
  %1985 = vmatmul.f32.gmra.mxu0 %v1958
  %v1986 = vpop.f32.mrf.mxu0
  %v1987 = vadd.f32 0.0, %v1986
  %1988 = vmatmul.f32.gmra.mxu0 %v1961
  %v1989 = vpop.f32.mrf.mxu0
  %v1990 = vadd.f32 0.0, %v1989
  %1991 = vdwg.mxu0
  %s1992 = scalar_lea.vmem %s15, 512
  %v1993 = vld [vmem:[%s1992] sm:$0xff]
  %v1994 = vld [vmem:[%s1992 + $0x8] sm:$0xff]
  %v1995 = vld [vmem:[%s1992 + $0x10] sm:$0xff]
  %v1996 = vld [vmem:[%s1992 + $0x18] sm:$0xff]
  %v1997 = vld [vmem:[%s1992 + $0x20] sm:$0xff]
  %v1998 = vld [vmem:[%s1992 + $0x28] sm:$0xff]
  %v1999 = vld [vmem:[%s1992 + $0x30] sm:$0xff]
  %v2000 = vld [vmem:[%s1992 + $0x38] sm:$0xff]
  %v2001 = vld [vmem:[%s1992 + $0x40] sm:$0xff]
  %v2002 = vld [vmem:[%s1992 + $0x48] sm:$0xff]
  %v2003 = vld [vmem:[%s1992 + $0x50] sm:$0xff]
  %v2004 = vld [vmem:[%s1992 + $0x58] sm:$0xff]
  %v2005 = vld [vmem:[%s1992 + $0x60] sm:$0xff]
  %v2006 = vld [vmem:[%s1992 + $0x68] sm:$0xff]
  %v2007 = vld [vmem:[%s1992 + $0x70] sm:$0xff]
  %v2008 = vld [vmem:[%s1992 + $0x78] sm:$0xff]
  %2009 = vmatpush.msra.mxu0 %v2008
  %2010 = vmatpush.msra.mxu0 %v2007
  %2011 = vmatpush.msra.mxu0 %v2006
  %2012 = vmatpush.msra.mxu0 %v2005
  %2013 = vmatpush.msra.mxu0 %v2004
  %2014 = vmatpush.msra.mxu0 %v2003
  %2015 = vmatpush.msra.mxu0 %v2002
  %2016 = vmatpush.msra.mxu0 %v2001
  %2017 = vmatpush.msra.mxu0 %v2000
  %2018 = vmatpush.msra.mxu0 %v1999
  %2019 = vmatpush.msra.mxu0 %v1998
  %2020 = vmatpush.msra.mxu0 %v1997
  %2021 = vmatpush.msra.mxu0 %v1996
  %2022 = vmatpush.msra.mxu0 %v1995
  %2023 = vmatpush.msra.mxu0 %v1994
  %2024 = vmatpush.msra.mxu0 %v1993
  %2025 = vmatmul.f32.gmra.mxu0 %v1981
  %v2026 = vpop.f32.mrf.mxu0
  %v2027 = vadd.f32 0.0, %v2026
  %2028 = vmatmul.f32.gmra.mxu0 %v1984
  %v2029 = vpop.f32.mrf.mxu0
  %v2030 = vadd.f32 0.0, %v2029
  %2031 = vmatmul.f32.gmra.mxu0 %v1987
  %v2032 = vpop.f32.mrf.mxu0
  %v2033 = vadd.f32 0.0, %v2032
  %2034 = vmatmul.f32.gmra.mxu0 %v1990
  %v2035 = vpop.f32.mrf.mxu0
  %v2036 = vadd.f32 0.0, %v2035
  %2037 = vdwg.mxu0
  %v2038 = vadd.f32 %v1942, %v2027
  %v2039 = vadd.f32 %v1943, %v2030
  %v2040 = vadd.f32 %v1944, %v2033
  %v2041 = vadd.f32 %v1945, %v2036
  %v2042 = vld [vmem:[%s16] sm:$0x1]
  %v2044 = vperm.slane %v2042, 0
  %v2046 = vadd.f32 %v2038, %v2044
  %v2047 = vadd.f32 %v2039, %v2044
  %v2048 = vadd.f32 %v2040, %v2044
  %v2049 = vadd.f32 %v2041, %v2044
  %v2050 = vmax.f32 %v2046, 0.0
  %v2051 = vmax.f32 %v2047, 0.0
  %v2052 = vmax.f32 %v2048, 0.0
  %v2053 = vmax.f32 %v2049, 0.0
  %v2054 = vld [vmem:[%s17] sm:$0xff]
  %v2055 = vld [vmem:[%s17 + $0x8] sm:$0xff]
  %v2056 = vld [vmem:[%s17 + $0x10] sm:$0xff]
  %v2057 = vld [vmem:[%s17 + $0x18] sm:$0xff]
  %v2058 = vld [vmem:[%s17 + $0x20] sm:$0xff]
  %v2059 = vld [vmem:[%s17 + $0x28] sm:$0xff]
  %v2060 = vld [vmem:[%s17 + $0x30] sm:$0xff]
  %v2061 = vld [vmem:[%s17 + $0x38] sm:$0xff]
  %v2063 = vsel %vm270, %v2054, 0
  %v2066 = vsel %vm270, %v2055, 0
  %v2069 = vsel %vm270, %v2056, 0
  %v2072 = vsel %vm270, %v2057, 0
  %v2075 = vsel %vm270, %v2058, 0
  %v2078 = vsel %vm270, %v2059, 0
  %v2081 = vsel %vm270, %v2060, 0
  %v2084 = vsel %vm270, %v2061, 0
  %2086 = vmatpush.msra.mxu0 0.0
  %2087 = vmatpush.msra.mxu0 0.0
  %2088 = vmatpush.msra.mxu0 0.0
  %2089 = vmatpush.msra.mxu0 0.0
  %2090 = vmatpush.msra.mxu0 0.0
  %2091 = vmatpush.msra.mxu0 0.0
  %2092 = vmatpush.msra.mxu0 0.0
  %2093 = vmatpush.msra.mxu0 0.0
  %2094 = vmatpush.msra.mxu0 0.0
  %2095 = vmatpush.msra.mxu0 0.0
  %2096 = vmatpush.msra.mxu0 0.0
  %2097 = vmatpush.msra.mxu0 0.0
  %2098 = vmatpush.msra.mxu0 %v2053
  %2099 = vmatpush.msra.mxu0 %v2052
  %2100 = vmatpush.msra.mxu0 %v2051
  %2101 = vmatpush.msra.mxu0 %v2050
  %2102 = vmatmul.f32.gmra.mxu0 %v2063
  %v2103 = vpop.f32.mrf.mxu0
  %v2104 = vadd.f32 0.0, %v2103
  %2105 = vmatmul.f32.gmra.mxu0 %v2066
  %v2106 = vpop.f32.mrf.mxu0
  %v2107 = vadd.f32 0.0, %v2106
  %2108 = vmatmul.f32.gmra.mxu0 %v2069
  %v2109 = vpop.f32.mrf.mxu0
  %v2110 = vadd.f32 0.0, %v2109
  %2111 = vmatmul.f32.gmra.mxu0 %v2072
  %v2112 = vpop.f32.mrf.mxu0
  %v2113 = vadd.f32 0.0, %v2112
  %2114 = vmatmul.f32.gmra.mxu0 %v2075
  %v2115 = vpop.f32.mrf.mxu0
  %v2116 = vadd.f32 0.0, %v2115
  %2117 = vmatmul.f32.gmra.mxu0 %v2078
  %v2118 = vpop.f32.mrf.mxu0
  %v2119 = vadd.f32 0.0, %v2118
  %2120 = vmatmul.f32.gmra.mxu0 %v2081
  %v2121 = vpop.f32.mrf.mxu0
  %v2122 = vadd.f32 0.0, %v2121
  %2123 = vmatmul.f32.gmra.mxu0 %v2084
  %v2124 = vpop.f32.mrf.mxu0
  %v2125 = vadd.f32 0.0, %v2124
  %2126 = vdwg.mxu0
  %v2127 = vld [vmem:[%s18] sm:$0xff]
  %v2128 = vld [vmem:[%s18 + $0x8] sm:$0xff]
  %v2129 = vld [vmem:[%s18 + $0x10] sm:$0xff]
  %v2130 = vld [vmem:[%s18 + $0x18] sm:$0xff]
  %v2131 = vld [vmem:[%s18 + $0x20] sm:$0xff]
  %v2132 = vld [vmem:[%s18 + $0x28] sm:$0xff]
  %v2133 = vld [vmem:[%s18 + $0x30] sm:$0xff]
  %v2134 = vld [vmem:[%s18 + $0x38] sm:$0xff]
  %s2135 = scalar_lea.vmem %s17, 64
  %v2136 = vld [vmem:[%s2135] sm:$0xff]
  %v2137 = vld [vmem:[%s2135 + $0x8] sm:$0xff]
  %v2138 = vld [vmem:[%s2135 + $0x10] sm:$0xff]
  %v2139 = vld [vmem:[%s2135 + $0x18] sm:$0xff]
  %v2140 = vld [vmem:[%s2135 + $0x20] sm:$0xff]
  %v2141 = vld [vmem:[%s2135 + $0x28] sm:$0xff]
  %v2142 = vld [vmem:[%s2135 + $0x30] sm:$0xff]
  %v2143 = vld [vmem:[%s2135 + $0x38] sm:$0xff]
  %v2145 = vsel %vm270, %v2136, 0
  %v2148 = vsel %vm270, %v2137, 0
  %v2151 = vsel %vm270, %v2138, 0
  %v2154 = vsel %vm270, %v2139, 0
  %v2157 = vsel %vm270, %v2140, 0
  %v2160 = vsel %vm270, %v2141, 0
  %v2163 = vsel %vm270, %v2142, 0
  %v2166 = vsel %vm270, %v2143, 0
  %2168 = vmatpush.msra.mxu0 0.0
  %2169 = vmatpush.msra.mxu0 0.0
  %2170 = vmatpush.msra.mxu0 0.0
  %2171 = vmatpush.msra.mxu0 0.0
  %2172 = vmatpush.msra.mxu0 0.0
  %2173 = vmatpush.msra.mxu0 0.0
  %2174 = vmatpush.msra.mxu0 0.0
  %2175 = vmatpush.msra.mxu0 0.0
  %2176 = vmatpush.msra.mxu0 0.0
  %2177 = vmatpush.msra.mxu0 0.0
  %2178 = vmatpush.msra.mxu0 0.0
  %2179 = vmatpush.msra.mxu0 0.0
  %2180 = vmatpush.msra.mxu0 %v2053
  %2181 = vmatpush.msra.mxu0 %v2052
  %2182 = vmatpush.msra.mxu0 %v2051
  %2183 = vmatpush.msra.mxu0 %v2050
  %2184 = vmatmul.f32.gmra.mxu0 %v2145
  %v2185 = vpop.f32.mrf.mxu0
  %v2186 = vadd.f32 0.0, %v2185
  %2187 = vmatmul.f32.gmra.mxu0 %v2148
  %v2188 = vpop.f32.mrf.mxu0
  %v2189 = vadd.f32 0.0, %v2188
  %2190 = vmatmul.f32.gmra.mxu0 %v2151
  %v2191 = vpop.f32.mrf.mxu0
  %v2192 = vadd.f32 0.0, %v2191
  %2193 = vmatmul.f32.gmra.mxu0 %v2154
  %v2194 = vpop.f32.mrf.mxu0
  %v2195 = vadd.f32 0.0, %v2194
  %2196 = vmatmul.f32.gmra.mxu0 %v2157
  %v2197 = vpop.f32.mrf.mxu0
  %v2198 = vadd.f32 0.0, %v2197
  %2199 = vmatmul.f32.gmra.mxu0 %v2160
  %v2200 = vpop.f32.mrf.mxu0
  %v2201 = vadd.f32 0.0, %v2200
  %2202 = vmatmul.f32.gmra.mxu0 %v2163
  %v2203 = vpop.f32.mrf.mxu0
  %v2204 = vadd.f32 0.0, %v2203
  %2205 = vmatmul.f32.gmra.mxu0 %v2166
  %v2206 = vpop.f32.mrf.mxu0
  %v2207 = vadd.f32 0.0, %v2206
  %2208 = vdwg.mxu0
  %s2209 = scalar_lea.vmem %s18, 64
  %v2210 = vld [vmem:[%s2209] sm:$0xff]
  %v2211 = vld [vmem:[%s2209 + $0x8] sm:$0xff]
  %v2212 = vld [vmem:[%s2209 + $0x10] sm:$0xff]
  %v2213 = vld [vmem:[%s2209 + $0x18] sm:$0xff]
  %v2214 = vld [vmem:[%s2209 + $0x20] sm:$0xff]
  %v2215 = vld [vmem:[%s2209 + $0x28] sm:$0xff]
  %v2216 = vld [vmem:[%s2209 + $0x30] sm:$0xff]
  %v2217 = vld [vmem:[%s2209 + $0x38] sm:$0xff]
  %v2219 = vsel %vm173, %v2186, 0
  %v2222 = vsel %vm173, %v2189, 0
  %v2225 = vsel %vm173, %v2192, 0
  %v2228 = vsel %vm173, %v2195, 0
  %v2231 = vsel %vm173, %v2198, 0
  %v2234 = vsel %vm173, %v2201, 0
  %v2237 = vsel %vm173, %v2204, 0
  %v2240 = vsel %vm173, %v2207, 0
  %2242 = vmatpush.msra.mxu0 0.0
  %2243 = vmatpush.msra.mxu0 0.0
  %2244 = vmatpush.msra.mxu0 0.0
  %2245 = vmatpush.msra.mxu0 0.0
  %2246 = vmatpush.msra.mxu0 0.0
  %2247 = vmatpush.msra.mxu0 0.0
  %2248 = vmatpush.msra.mxu0 0.0
  %2249 = vmatpush.msra.mxu0 0.0
  %2250 = vmatpush.msra.mxu0 %v2217
  %2251 = vmatpush.msra.mxu0 %v2216
  %2252 = vmatpush.msra.mxu0 %v2215
  %2253 = vmatpush.msra.mxu0 %v2214
  %2254 = vmatpush.msra.mxu0 %v2213
  %2255 = vmatpush.msra.mxu0 %v2212
  %2256 = vmatpush.msra.mxu0 %v2211
  %2257 = vmatpush.msra.mxu0 %v2210
  %2258 = vmatmul.f32.gmra.mxu0 %v2219
  %v2259 = vpop.f32.mrf.mxu0
  %v2260 = vadd.f32 0.0, %v2259
  %2261 = vmatmul.f32.gmra.mxu0 %v2222
  %v2262 = vpop.f32.mrf.mxu0
  %v2263 = vadd.f32 0.0, %v2262
  %2264 = vmatmul.f32.gmra.mxu0 %v2225
  %v2265 = vpop.f32.mrf.mxu0
  %v2266 = vadd.f32 0.0, %v2265
  %2267 = vmatmul.f32.gmra.mxu0 %v2228
  %v2268 = vpop.f32.mrf.mxu0
  %v2269 = vadd.f32 0.0, %v2268
  %2270 = vmatmul.f32.gmra.mxu0 %v2231
  %v2271 = vpop.f32.mrf.mxu0
  %v2272 = vadd.f32 0.0, %v2271
  %2273 = vmatmul.f32.gmra.mxu0 %v2234
  %v2274 = vpop.f32.mrf.mxu0
  %v2275 = vadd.f32 0.0, %v2274
  %2276 = vmatmul.f32.gmra.mxu0 %v2237
  %v2277 = vpop.f32.mrf.mxu0
  %v2278 = vadd.f32 0.0, %v2277
  %2279 = vmatmul.f32.gmra.mxu0 %v2240
  %v2280 = vpop.f32.mrf.mxu0
  %v2281 = vadd.f32 0.0, %v2280
  %2282 = vdwg.mxu0
  %v2284 = vsel %vm173, %v2104, 0
  %v2287 = vsel %vm173, %v2107, 0
  %v2290 = vsel %vm173, %v2110, 0
  %v2293 = vsel %vm173, %v2113, 0
  %v2296 = vsel %vm173, %v2116, 0
  %v2299 = vsel %vm173, %v2119, 0
  %v2302 = vsel %vm173, %v2122, 0
  %v2305 = vsel %vm173, %v2125, 0
  %2307 = vmatpush.msra.mxu0 0.0
  %2308 = vmatpush.msra.mxu0 0.0
  %2309 = vmatpush.msra.mxu0 0.0
  %2310 = vmatpush.msra.mxu0 0.0
  %2311 = vmatpush.msra.mxu0 0.0
  %2312 = vmatpush.msra.mxu0 0.0
  %2313 = vmatpush.msra.mxu0 0.0
  %2314 = vmatpush.msra.mxu0 0.0
  %2315 = vmatpush.msra.mxu0 %v2134
  %2316 = vmatpush.msra.mxu0 %v2133
  %2317 = vmatpush.msra.mxu0 %v2132
  %2318 = vmatpush.msra.mxu0 %v2131
  %2319 = vmatpush.msra.mxu0 %v2130
  %2320 = vmatpush.msra.mxu0 %v2129
  %2321 = vmatpush.msra.mxu0 %v2128
  %2322 = vmatpush.msra.mxu0 %v2127
  %2323 = vmatmul.f32.gmra.mxu0 %v2284
  %v2324 = vpop.f32.mrf.mxu0
  %v2325 = vadd.f32 %v2260, %v2324
  %2326 = vmatmul.f32.gmra.mxu0 %v2287
  %v2327 = vpop.f32.mrf.mxu0
  %v2328 = vadd.f32 %v2263, %v2327
  %2329 = vmatmul.f32.gmra.mxu0 %v2290
  %v2330 = vpop.f32.mrf.mxu0
  %v2331 = vadd.f32 %v2266, %v2330
  %2332 = vmatmul.f32.gmra.mxu0 %v2293
  %v2333 = vpop.f32.mrf.mxu0
  %v2334 = vadd.f32 %v2269, %v2333
  %2335 = vmatmul.f32.gmra.mxu0 %v2296
  %v2336 = vpop.f32.mrf.mxu0
  %v2337 = vadd.f32 %v2272, %v2336
  %2338 = vmatmul.f32.gmra.mxu0 %v2299
  %v2339 = vpop.f32.mrf.mxu0
  %v2340 = vadd.f32 %v2275, %v2339
  %2341 = vmatmul.f32.gmra.mxu0 %v2302
  %v2342 = vpop.f32.mrf.mxu0
  %v2343 = vadd.f32 %v2278, %v2342
  %2344 = vmatmul.f32.gmra.mxu0 %v2305
  %v2345 = vpop.f32.mrf.mxu0
  %v2346 = vadd.f32 %v2281, %v2345
  %2347 = vdwg.mxu0
  %s2348 = scalar_lea.vmem %s17, 128
  %v2349 = vld [vmem:[%s2348] sm:$0xff]
  %v2350 = vld [vmem:[%s2348 + $0x8] sm:$0xff]
  %v2351 = vld [vmem:[%s2348 + $0x10] sm:$0xff]
  %v2352 = vld [vmem:[%s2348 + $0x18] sm:$0xff]
  %v2353 = vld [vmem:[%s2348 + $0x20] sm:$0xff]
  %v2354 = vld [vmem:[%s2348 + $0x28] sm:$0xff]
  %v2355 = vld [vmem:[%s2348 + $0x30] sm:$0xff]
  %v2356 = vld [vmem:[%s2348 + $0x38] sm:$0xff]
  %v2358 = vsel %vm270, %v2349, 0
  %v2361 = vsel %vm270, %v2350, 0
  %v2364 = vsel %vm270, %v2351, 0
  %v2367 = vsel %vm270, %v2352, 0
  %v2370 = vsel %vm270, %v2353, 0
  %v2373 = vsel %vm270, %v2354, 0
  %v2376 = vsel %vm270, %v2355, 0
  %v2379 = vsel %vm270, %v2356, 0
  %2381 = vmatpush.msra.mxu0 0.0
  %2382 = vmatpush.msra.mxu0 0.0
  %2383 = vmatpush.msra.mxu0 0.0
  %2384 = vmatpush.msra.mxu0 0.0
  %2385 = vmatpush.msra.mxu0 0.0
  %2386 = vmatpush.msra.mxu0 0.0
  %2387 = vmatpush.msra.mxu0 0.0
  %2388 = vmatpush.msra.mxu0 0.0
  %2389 = vmatpush.msra.mxu0 0.0
  %2390 = vmatpush.msra.mxu0 0.0
  %2391 = vmatpush.msra.mxu0 0.0
  %2392 = vmatpush.msra.mxu0 0.0
  %2393 = vmatpush.msra.mxu0 %v2053
  %2394 = vmatpush.msra.mxu0 %v2052
  %2395 = vmatpush.msra.mxu0 %v2051
  %2396 = vmatpush.msra.mxu0 %v2050
  %2397 = vmatmul.f32.gmra.mxu0 %v2358
  %v2398 = vpop.f32.mrf.mxu0
  %v2399 = vadd.f32 0.0, %v2398
  %2400 = vmatmul.f32.gmra.mxu0 %v2361
  %v2401 = vpop.f32.mrf.mxu0
  %v2402 = vadd.f32 0.0, %v2401
  %2403 = vmatmul.f32.gmra.mxu0 %v2364
  %v2404 = vpop.f32.mrf.mxu0
  %v2405 = vadd.f32 0.0, %v2404
  %2406 = vmatmul.f32.gmra.mxu0 %v2367
  %v2407 = vpop.f32.mrf.mxu0
  %v2408 = vadd.f32 0.0, %v2407
  %2409 = vmatmul.f32.gmra.mxu0 %v2370
  %v2410 = vpop.f32.mrf.mxu0
  %v2411 = vadd.f32 0.0, %v2410
  %2412 = vmatmul.f32.gmra.mxu0 %v2373
  %v2413 = vpop.f32.mrf.mxu0
  %v2414 = vadd.f32 0.0, %v2413
  %2415 = vmatmul.f32.gmra.mxu0 %v2376
  %v2416 = vpop.f32.mrf.mxu0
  %v2417 = vadd.f32 0.0, %v2416
  %2418 = vmatmul.f32.gmra.mxu0 %v2379
  %v2419 = vpop.f32.mrf.mxu0
  %v2420 = vadd.f32 0.0, %v2419
  %2421 = vdwg.mxu0
  %s2422 = scalar_lea.vmem %s18, 128
  %v2423 = vld [vmem:[%s2422] sm:$0xff]
  %v2424 = vld [vmem:[%s2422 + $0x8] sm:$0xff]
  %v2425 = vld [vmem:[%s2422 + $0x10] sm:$0xff]
  %v2426 = vld [vmem:[%s2422 + $0x18] sm:$0xff]
  %v2427 = vld [vmem:[%s2422 + $0x20] sm:$0xff]
  %v2428 = vld [vmem:[%s2422 + $0x28] sm:$0xff]
  %v2429 = vld [vmem:[%s2422 + $0x30] sm:$0xff]
  %v2430 = vld [vmem:[%s2422 + $0x38] sm:$0xff]
  %v2432 = vsel %vm173, %v2399, 0
  %v2435 = vsel %vm173, %v2402, 0
  %v2438 = vsel %vm173, %v2405, 0
  %v2441 = vsel %vm173, %v2408, 0
  %v2444 = vsel %vm173, %v2411, 0
  %v2447 = vsel %vm173, %v2414, 0
  %v2450 = vsel %vm173, %v2417, 0
  %v2453 = vsel %vm173, %v2420, 0
  %2455 = vmatpush.msra.mxu0 0.0
  %2456 = vmatpush.msra.mxu0 0.0
  %2457 = vmatpush.msra.mxu0 0.0
  %2458 = vmatpush.msra.mxu0 0.0
  %2459 = vmatpush.msra.mxu0 0.0
  %2460 = vmatpush.msra.mxu0 0.0
  %2461 = vmatpush.msra.mxu0 0.0
  %2462 = vmatpush.msra.mxu0 0.0
  %2463 = vmatpush.msra.mxu0 %v2430
  %2464 = vmatpush.msra.mxu0 %v2429
  %2465 = vmatpush.msra.mxu0 %v2428
  %2466 = vmatpush.msra.mxu0 %v2427
  %2467 = vmatpush.msra.mxu0 %v2426
  %2468 = vmatpush.msra.mxu0 %v2425
  %2469 = vmatpush.msra.mxu0 %v2424
  %2470 = vmatpush.msra.mxu0 %v2423
  %2471 = vmatmul.f32.gmra.mxu0 %v2432
  %v2472 = vpop.f32.mrf.mxu0
  %v2473 = vadd.f32 0.0, %v2472
  %2474 = vmatmul.f32.gmra.mxu0 %v2435
  %v2475 = vpop.f32.mrf.mxu0
  %v2476 = vadd.f32 0.0, %v2475
  %2477 = vmatmul.f32.gmra.mxu0 %v2438
  %v2478 = vpop.f32.mrf.mxu0
  %v2479 = vadd.f32 0.0, %v2478
  %2480 = vmatmul.f32.gmra.mxu0 %v2441
  %v2481 = vpop.f32.mrf.mxu0
  %v2482 = vadd.f32 0.0, %v2481
  %2483 = vmatmul.f32.gmra.mxu0 %v2444
  %v2484 = vpop.f32.mrf.mxu0
  %v2485 = vadd.f32 0.0, %v2484
  %2486 = vmatmul.f32.gmra.mxu0 %v2447
  %v2487 = vpop.f32.mrf.mxu0
  %v2488 = vadd.f32 0.0, %v2487
  %2489 = vmatmul.f32.gmra.mxu0 %v2450
  %v2490 = vpop.f32.mrf.mxu0
  %v2491 = vadd.f32 0.0, %v2490
  %2492 = vmatmul.f32.gmra.mxu0 %v2453
  %v2493 = vpop.f32.mrf.mxu0
  %v2494 = vadd.f32 0.0, %v2493
  %2495 = vdwg.mxu0
  %v2496 = vadd.f32 %v2325, %v2473
  %v2497 = vadd.f32 %v2328, %v2476
  %v2498 = vadd.f32 %v2331, %v2479
  %v2499 = vadd.f32 %v2334, %v2482
  %v2500 = vadd.f32 %v2337, %v2485
  %v2501 = vadd.f32 %v2340, %v2488
  %v2502 = vadd.f32 %v2343, %v2491
  %v2503 = vadd.f32 %v2346, %v2494
  %s2504 = scalar_lea.vmem %s17, 192
  %v2505 = vld [vmem:[%s2504] sm:$0xff]
  %v2506 = vld [vmem:[%s2504 + $0x8] sm:$0xff]
  %v2507 = vld [vmem:[%s2504 + $0x10] sm:$0xff]
  %v2508 = vld [vmem:[%s2504 + $0x18] sm:$0xff]
  %v2509 = vld [vmem:[%s2504 + $0x20] sm:$0xff]
  %v2510 = vld [vmem:[%s2504 + $0x28] sm:$0xff]
  %v2511 = vld [vmem:[%s2504 + $0x30] sm:$0xff]
  %v2512 = vld [vmem:[%s2504 + $0x38] sm:$0xff]
  %v2514 = vsel %vm270, %v2505, 0
  %v2517 = vsel %vm270, %v2506, 0
  %v2520 = vsel %vm270, %v2507, 0
  %v2523 = vsel %vm270, %v2508, 0
  %v2526 = vsel %vm270, %v2509, 0
  %v2529 = vsel %vm270, %v2510, 0
  %v2532 = vsel %vm270, %v2511, 0
  %v2535 = vsel %vm270, %v2512, 0
  %2537 = vmatpush.msra.mxu0 0.0
  %2538 = vmatpush.msra.mxu0 0.0
  %2539 = vmatpush.msra.mxu0 0.0
  %2540 = vmatpush.msra.mxu0 0.0
  %2541 = vmatpush.msra.mxu0 0.0
  %2542 = vmatpush.msra.mxu0 0.0
  %2543 = vmatpush.msra.mxu0 0.0
  %2544 = vmatpush.msra.mxu0 0.0
  %2545 = vmatpush.msra.mxu0 0.0
  %2546 = vmatpush.msra.mxu0 0.0
  %2547 = vmatpush.msra.mxu0 0.0
  %2548 = vmatpush.msra.mxu0 0.0
  %2549 = vmatpush.msra.mxu0 %v2053
  %2550 = vmatpush.msra.mxu0 %v2052
  %2551 = vmatpush.msra.mxu0 %v2051
  %2552 = vmatpush.msra.mxu0 %v2050
  %2553 = vmatmul.f32.gmra.mxu0 %v2514
  %v2554 = vpop.f32.mrf.mxu0
  %v2555 = vadd.f32 0.0, %v2554
  %2556 = vmatmul.f32.gmra.mxu0 %v2517
  %v2557 = vpop.f32.mrf.mxu0
  %v2558 = vadd.f32 0.0, %v2557
  %2559 = vmatmul.f32.gmra.mxu0 %v2520
  %v2560 = vpop.f32.mrf.mxu0
  %v2561 = vadd.f32 0.0, %v2560
  %2562 = vmatmul.f32.gmra.mxu0 %v2523
  %v2563 = vpop.f32.mrf.mxu0
  %v2564 = vadd.f32 0.0, %v2563
  %2565 = vmatmul.f32.gmra.mxu0 %v2526
  %v2566 = vpop.f32.mrf.mxu0
  %v2567 = vadd.f32 0.0, %v2566
  %2568 = vmatmul.f32.gmra.mxu0 %v2529
  %v2569 = vpop.f32.mrf.mxu0
  %v2570 = vadd.f32 0.0, %v2569
  %2571 = vmatmul.f32.gmra.mxu0 %v2532
  %v2572 = vpop.f32.mrf.mxu0
  %v2573 = vadd.f32 0.0, %v2572
  %2574 = vmatmul.f32.gmra.mxu0 %v2535
  %v2575 = vpop.f32.mrf.mxu0
  %v2576 = vadd.f32 0.0, %v2575
  %2577 = vdwg.mxu0
  %s2578 = scalar_lea.vmem %s18, 192
  %v2579 = vld [vmem:[%s2578] sm:$0xff]
  %v2580 = vld [vmem:[%s2578 + $0x8] sm:$0xff]
  %v2581 = vld [vmem:[%s2578 + $0x10] sm:$0xff]
  %v2582 = vld [vmem:[%s2578 + $0x18] sm:$0xff]
  %v2583 = vld [vmem:[%s2578 + $0x20] sm:$0xff]
  %v2584 = vld [vmem:[%s2578 + $0x28] sm:$0xff]
  %v2585 = vld [vmem:[%s2578 + $0x30] sm:$0xff]
  %v2586 = vld [vmem:[%s2578 + $0x38] sm:$0xff]
  %v2588 = vsel %vm173, %v2555, 0
  %v2591 = vsel %vm173, %v2558, 0
  %v2594 = vsel %vm173, %v2561, 0
  %v2597 = vsel %vm173, %v2564, 0
  %v2600 = vsel %vm173, %v2567, 0
  %v2603 = vsel %vm173, %v2570, 0
  %v2606 = vsel %vm173, %v2573, 0
  %v2609 = vsel %vm173, %v2576, 0
  %2611 = vmatpush.msra.mxu0 0.0
  %2612 = vmatpush.msra.mxu0 0.0
  %2613 = vmatpush.msra.mxu0 0.0
  %2614 = vmatpush.msra.mxu0 0.0
  %2615 = vmatpush.msra.mxu0 0.0
  %2616 = vmatpush.msra.mxu0 0.0
  %2617 = vmatpush.msra.mxu0 0.0
  %2618 = vmatpush.msra.mxu0 0.0
  %2619 = vmatpush.msra.mxu0 %v2586
  %2620 = vmatpush.msra.mxu0 %v2585
  %2621 = vmatpush.msra.mxu0 %v2584
  %2622 = vmatpush.msra.mxu0 %v2583
  %2623 = vmatpush.msra.mxu0 %v2582
  %2624 = vmatpush.msra.mxu0 %v2581
  %2625 = vmatpush.msra.mxu0 %v2580
  %2626 = vmatpush.msra.mxu0 %v2579
  %2627 = vmatmul.f32.gmra.mxu0 %v2588
  %v2628 = vpop.f32.mrf.mxu0
  %v2629 = vadd.f32 0.0, %v2628
  %2630 = vmatmul.f32.gmra.mxu0 %v2591
  %v2631 = vpop.f32.mrf.mxu0
  %v2632 = vadd.f32 0.0, %v2631
  %2633 = vmatmul.f32.gmra.mxu0 %v2594
  %v2634 = vpop.f32.mrf.mxu0
  %v2635 = vadd.f32 0.0, %v2634
  %2636 = vmatmul.f32.gmra.mxu0 %v2597
  %v2637 = vpop.f32.mrf.mxu0
  %v2638 = vadd.f32 0.0, %v2637
  %2639 = vmatmul.f32.gmra.mxu0 %v2600
  %v2640 = vpop.f32.mrf.mxu0
  %v2641 = vadd.f32 0.0, %v2640
  %2642 = vmatmul.f32.gmra.mxu0 %v2603
  %v2643 = vpop.f32.mrf.mxu0
  %v2644 = vadd.f32 0.0, %v2643
  %2645 = vmatmul.f32.gmra.mxu0 %v2606
  %v2646 = vpop.f32.mrf.mxu0
  %v2647 = vadd.f32 0.0, %v2646
  %2648 = vmatmul.f32.gmra.mxu0 %v2609
  %v2649 = vpop.f32.mrf.mxu0
  %v2650 = vadd.f32 0.0, %v2649
  %2651 = vdwg.mxu0
  %v2652 = vadd.f32 %v2496, %v2629
  %v2653 = vadd.f32 %v2497, %v2632
  %v2654 = vadd.f32 %v2498, %v2635
  %v2655 = vadd.f32 %v2499, %v2638
  %v2656 = vadd.f32 %v2500, %v2641
  %v2657 = vadd.f32 %v2501, %v2644
  %v2658 = vadd.f32 %v2502, %v2647
  %v2659 = vadd.f32 %v2503, %v2650
  %s2660 = scalar_lea.vmem %s17, 256
  %v2661 = vld [vmem:[%s2660] sm:$0xff]
  %v2662 = vld [vmem:[%s2660 + $0x8] sm:$0xff]
  %v2663 = vld [vmem:[%s2660 + $0x10] sm:$0xff]
  %v2664 = vld [vmem:[%s2660 + $0x18] sm:$0xff]
  %v2665 = vld [vmem:[%s2660 + $0x20] sm:$0xff]
  %v2666 = vld [vmem:[%s2660 + $0x28] sm:$0xff]
  %v2667 = vld [vmem:[%s2660 + $0x30] sm:$0xff]
  %v2668 = vld [vmem:[%s2660 + $0x38] sm:$0xff]
  %v2670 = vsel %vm270, %v2661, 0
  %v2673 = vsel %vm270, %v2662, 0
  %v2676 = vsel %vm270, %v2663, 0
  %v2679 = vsel %vm270, %v2664, 0
  %v2682 = vsel %vm270, %v2665, 0
  %v2685 = vsel %vm270, %v2666, 0
  %v2688 = vsel %vm270, %v2667, 0
  %v2691 = vsel %vm270, %v2668, 0
  %2693 = vmatpush.msra.mxu0 0.0
  %2694 = vmatpush.msra.mxu0 0.0
  %2695 = vmatpush.msra.mxu0 0.0
  %2696 = vmatpush.msra.mxu0 0.0
  %2697 = vmatpush.msra.mxu0 0.0
  %2698 = vmatpush.msra.mxu0 0.0
  %2699 = vmatpush.msra.mxu0 0.0
  %2700 = vmatpush.msra.mxu0 0.0
  %2701 = vmatpush.msra.mxu0 0.0
  %2702 = vmatpush.msra.mxu0 0.0
  %2703 = vmatpush.msra.mxu0 0.0
  %2704 = vmatpush.msra.mxu0 0.0
  %2705 = vmatpush.msra.mxu0 %v2053
  %2706 = vmatpush.msra.mxu0 %v2052
  %2707 = vmatpush.msra.mxu0 %v2051
  %2708 = vmatpush.msra.mxu0 %v2050
  %2709 = vmatmul.f32.gmra.mxu0 %v2670
  %v2710 = vpop.f32.mrf.mxu0
  %v2711 = vadd.f32 0.0, %v2710
  %2712 = vmatmul.f32.gmra.mxu0 %v2673
  %v2713 = vpop.f32.mrf.mxu0
  %v2714 = vadd.f32 0.0, %v2713
  %2715 = vmatmul.f32.gmra.mxu0 %v2676
  %v2716 = vpop.f32.mrf.mxu0
  %v2717 = vadd.f32 0.0, %v2716
  %2718 = vmatmul.f32.gmra.mxu0 %v2679
  %v2719 = vpop.f32.mrf.mxu0
  %v2720 = vadd.f32 0.0, %v2719
  %2721 = vmatmul.f32.gmra.mxu0 %v2682
  %v2722 = vpop.f32.mrf.mxu0
  %v2723 = vadd.f32 0.0, %v2722
  %2724 = vmatmul.f32.gmra.mxu0 %v2685
  %v2725 = vpop.f32.mrf.mxu0
  %v2726 = vadd.f32 0.0, %v2725
  %2727 = vmatmul.f32.gmra.mxu0 %v2688
  %v2728 = vpop.f32.mrf.mxu0
  %v2729 = vadd.f32 0.0, %v2728
  %2730 = vmatmul.f32.gmra.mxu0 %v2691
  %v2731 = vpop.f32.mrf.mxu0
  %v2732 = vadd.f32 0.0, %v2731
  %2733 = vdwg.mxu0
  %s2734 = scalar_lea.vmem %s18, 256
  %v2735 = vld [vmem:[%s2734] sm:$0xff]
  %v2736 = vld [vmem:[%s2734 + $0x8] sm:$0xff]
  %v2737 = vld [vmem:[%s2734 + $0x10] sm:$0xff]
  %v2738 = vld [vmem:[%s2734 + $0x18] sm:$0xff]
  %v2739 = vld [vmem:[%s2734 + $0x20] sm:$0xff]
  %v2740 = vld [vmem:[%s2734 + $0x28] sm:$0xff]
  %v2741 = vld [vmem:[%s2734 + $0x30] sm:$0xff]
  %v2742 = vld [vmem:[%s2734 + $0x38] sm:$0xff]
  %v2744 = vsel %vm173, %v2711, 0
  %v2747 = vsel %vm173, %v2714, 0
  %v2750 = vsel %vm173, %v2717, 0
  %v2753 = vsel %vm173, %v2720, 0
  %v2756 = vsel %vm173, %v2723, 0
  %v2759 = vsel %vm173, %v2726, 0
  %v2762 = vsel %vm173, %v2729, 0
  %v2765 = vsel %vm173, %v2732, 0
  %2767 = vmatpush.msra.mxu0 0.0
  %2768 = vmatpush.msra.mxu0 0.0
  %2769 = vmatpush.msra.mxu0 0.0
  %2770 = vmatpush.msra.mxu0 0.0
  %2771 = vmatpush.msra.mxu0 0.0
  %2772 = vmatpush.msra.mxu0 0.0
  %2773 = vmatpush.msra.mxu0 0.0
  %2774 = vmatpush.msra.mxu0 0.0
  %2775 = vmatpush.msra.mxu0 %v2742
  %2776 = vmatpush.msra.mxu0 %v2741
  %2777 = vmatpush.msra.mxu0 %v2740
  %2778 = vmatpush.msra.mxu0 %v2739
  %2779 = vmatpush.msra.mxu0 %v2738
  %2780 = vmatpush.msra.mxu0 %v2737
  %2781 = vmatpush.msra.mxu0 %v2736
  %2782 = vmatpush.msra.mxu0 %v2735
  %2783 = vmatmul.f32.gmra.mxu0 %v2744
  %v2784 = vpop.f32.mrf.mxu0
  %v2785 = vadd.f32 0.0, %v2784
  %2786 = vmatmul.f32.gmra.mxu0 %v2747
  %v2787 = vpop.f32.mrf.mxu0
  %v2788 = vadd.f32 0.0, %v2787
  %2789 = vmatmul.f32.gmra.mxu0 %v2750
  %v2790 = vpop.f32.mrf.mxu0
  %v2791 = vadd.f32 0.0, %v2790
  %2792 = vmatmul.f32.gmra.mxu0 %v2753
  %v2793 = vpop.f32.mrf.mxu0
  %v2794 = vadd.f32 0.0, %v2793
  %2795 = vmatmul.f32.gmra.mxu0 %v2756
  %v2796 = vpop.f32.mrf.mxu0
  %v2797 = vadd.f32 0.0, %v2796
  %2798 = vmatmul.f32.gmra.mxu0 %v2759
  %v2799 = vpop.f32.mrf.mxu0
  %v2800 = vadd.f32 0.0, %v2799
  %2801 = vmatmul.f32.gmra.mxu0 %v2762
  %v2802 = vpop.f32.mrf.mxu0
  %v2803 = vadd.f32 0.0, %v2802
  %2804 = vmatmul.f32.gmra.mxu0 %v2765
  %v2805 = vpop.f32.mrf.mxu0
  %v2806 = vadd.f32 0.0, %v2805
  %2807 = vdwg.mxu0
  %v2808 = vadd.f32 %v2652, %v2785
  %v2809 = vadd.f32 %v2653, %v2788
  %v2810 = vadd.f32 %v2654, %v2791
  %v2811 = vadd.f32 %v2655, %v2794
  %v2812 = vadd.f32 %v2656, %v2797
  %v2813 = vadd.f32 %v2657, %v2800
  %v2814 = vadd.f32 %v2658, %v2803
  %v2815 = vadd.f32 %v2659, %v2806
  %v2816 = vld [vmem:[%s19] sm:$0x1]
  %v2818 = vperm.slane %v2816, 0
  %v2820 = vadd.f32 %v2808, %v2818
  %v2821 = vadd.f32 %v2809, %v2818
  %v2822 = vadd.f32 %v2810, %v2818
  %v2823 = vadd.f32 %v2811, %v2818
  %v2824 = vadd.f32 %v2812, %v2818
  %v2825 = vadd.f32 %v2813, %v2818
  %v2826 = vadd.f32 %v2814, %v2818
  %v2827 = vadd.f32 %v2815, %v2818
  %v2828 = vmax.f32 %v2820, 0.0
  %v2829 = vmax.f32 %v2821, 0.0
  %v2830 = vmax.f32 %v2822, 0.0
  %v2831 = vmax.f32 %v2823, 0.0
  %v2832 = vmax.f32 %v2824, 0.0
  %v2833 = vmax.f32 %v2825, 0.0
  %v2834 = vmax.f32 %v2826, 0.0
  %v2835 = vmax.f32 %v2827, 0.0
  %v2836 = vld [vmem:[%s20] sm:$0xff]
  %v2837 = vld [vmem:[%s20 + $0x8] sm:$0xff]
  %v2838 = vld [vmem:[%s20 + $0x10] sm:$0xff]
  %v2839 = vld [vmem:[%s20 + $0x18] sm:$0xff]
  %v2840 = vld [vmem:[%s20 + $0x20] sm:$0xff]
  %v2841 = vld [vmem:[%s20 + $0x28] sm:$0xff]
  %v2842 = vld [vmem:[%s20 + $0x30] sm:$0xff]
  %v2843 = vld [vmem:[%s20 + $0x38] sm:$0xff]
  %v2844 = vld [vmem:[%s20 + $0x40] sm:$0xff]
  %v2845 = vld [vmem:[%s20 + $0x48] sm:$0xff]
  %v2846 = vld [vmem:[%s20 + $0x50] sm:$0xff]
  %v2847 = vld [vmem:[%s20 + $0x58] sm:$0xff]
  %v2848 = vld [vmem:[%s20 + $0x60] sm:$0xff]
  %v2849 = vld [vmem:[%s20 + $0x68] sm:$0xff]
  %v2850 = vld [vmem:[%s20 + $0x70] sm:$0xff]
  %v2851 = vld [vmem:[%s20 + $0x78] sm:$0xff]
  %v2853 = vsel %vm173, %v2836, 0
  %v2856 = vsel %vm173, %v2837, 0
  %v2859 = vsel %vm173, %v2838, 0
  %v2862 = vsel %vm173, %v2839, 0
  %v2865 = vsel %vm173, %v2840, 0
  %v2868 = vsel %vm173, %v2841, 0
  %v2871 = vsel %vm173, %v2842, 0
  %v2874 = vsel %vm173, %v2843, 0
  %v2877 = vsel %vm173, %v2844, 0
  %v2880 = vsel %vm173, %v2845, 0
  %v2883 = vsel %vm173, %v2846, 0
  %v2886 = vsel %vm173, %v2847, 0
  %v2889 = vsel %vm173, %v2848, 0
  %v2892 = vsel %vm173, %v2849, 0
  %v2895 = vsel %vm173, %v2850, 0
  %v2898 = vsel %vm173, %v2851, 0
  %2900 = vmatpush.msra.mxu0 0.0
  %2901 = vmatpush.msra.mxu0 0.0
  %2902 = vmatpush.msra.mxu0 0.0
  %2903 = vmatpush.msra.mxu0 0.0
  %2904 = vmatpush.msra.mxu0 0.0
  %2905 = vmatpush.msra.mxu0 0.0
  %2906 = vmatpush.msra.mxu0 0.0
  %2907 = vmatpush.msra.mxu0 0.0
  %2908 = vmatpush.msra.mxu0 %v2835
  %2909 = vmatpush.msra.mxu0 %v2834
  %2910 = vmatpush.msra.mxu0 %v2833
  %2911 = vmatpush.msra.mxu0 %v2832
  %2912 = vmatpush.msra.mxu0 %v2831
  %2913 = vmatpush.msra.mxu0 %v2830
  %2914 = vmatpush.msra.mxu0 %v2829
  %2915 = vmatpush.msra.mxu0 %v2828
  %2916 = vmatmul.f32.gmra.mxu0 %v2853
  %v2917 = vpop.f32.mrf.mxu0
  %v2918 = vadd.f32 0.0, %v2917
  %2919 = vmatmul.f32.gmra.mxu0 %v2856
  %v2920 = vpop.f32.mrf.mxu0
  %v2921 = vadd.f32 0.0, %v2920
  %2922 = vmatmul.f32.gmra.mxu0 %v2859
  %v2923 = vpop.f32.mrf.mxu0
  %v2924 = vadd.f32 0.0, %v2923
  %2925 = vmatmul.f32.gmra.mxu0 %v2862
  %v2926 = vpop.f32.mrf.mxu0
  %v2927 = vadd.f32 0.0, %v2926
  %2928 = vmatmul.f32.gmra.mxu0 %v2865
  %v2929 = vpop.f32.mrf.mxu0
  %v2930 = vadd.f32 0.0, %v2929
  %2931 = vmatmul.f32.gmra.mxu0 %v2868
  %v2932 = vpop.f32.mrf.mxu0
  %v2933 = vadd.f32 0.0, %v2932
  %2934 = vmatmul.f32.gmra.mxu0 %v2871
  %v2935 = vpop.f32.mrf.mxu0
  %v2936 = vadd.f32 0.0, %v2935
  %2937 = vmatmul.f32.gmra.mxu0 %v2874
  %v2938 = vpop.f32.mrf.mxu0
  %v2939 = vadd.f32 0.0, %v2938
  %2940 = vmatmul.f32.gmra.mxu0 %v2877
  %v2941 = vpop.f32.mrf.mxu0
  %v2942 = vadd.f32 0.0, %v2941
  %2943 = vmatmul.f32.gmra.mxu0 %v2880
  %v2944 = vpop.f32.mrf.mxu0
  %v2945 = vadd.f32 0.0, %v2944
  %2946 = vmatmul.f32.gmra.mxu0 %v2883
  %v2947 = vpop.f32.mrf.mxu0
  %v2948 = vadd.f32 0.0, %v2947
  %2949 = vmatmul.f32.gmra.mxu0 %v2886
  %v2950 = vpop.f32.mrf.mxu0
  %v2951 = vadd.f32 0.0, %v2950
  %2952 = vmatmul.f32.gmra.mxu0 %v2889
  %v2953 = vpop.f32.mrf.mxu0
  %v2954 = vadd.f32 0.0, %v2953
  %2955 = vmatmul.f32.gmra.mxu0 %v2892
  %v2956 = vpop.f32.mrf.mxu0
  %v2957 = vadd.f32 0.0, %v2956
  %2958 = vmatmul.f32.gmra.mxu0 %v2895
  %v2959 = vpop.f32.mrf.mxu0
  %v2960 = vadd.f32 0.0, %v2959
  %2961 = vmatmul.f32.gmra.mxu0 %v2898
  %v2962 = vpop.f32.mrf.mxu0
  %v2963 = vadd.f32 0.0, %v2962
  %2964 = vdwg.mxu0
  %v2965 = vld [vmem:[%s21] sm:$0xff]
  %v2966 = vld [vmem:[%s21 + $0x8] sm:$0xff]
  %v2967 = vld [vmem:[%s21 + $0x10] sm:$0xff]
  %v2968 = vld [vmem:[%s21 + $0x18] sm:$0xff]
  %s2969 = scalar_lea.vmem %s20, 128
  %v2970 = vld [vmem:[%s2969] sm:$0xff]
  %v2971 = vld [vmem:[%s2969 + $0x8] sm:$0xff]
  %v2972 = vld [vmem:[%s2969 + $0x10] sm:$0xff]
  %v2973 = vld [vmem:[%s2969 + $0x18] sm:$0xff]
  %v2974 = vld [vmem:[%s2969 + $0x20] sm:$0xff]
  %v2975 = vld [vmem:[%s2969 + $0x28] sm:$0xff]
  %v2976 = vld [vmem:[%s2969 + $0x30] sm:$0xff]
  %v2977 = vld [vmem:[%s2969 + $0x38] sm:$0xff]
  %v2978 = vld [vmem:[%s2969 + $0x40] sm:$0xff]
  %v2979 = vld [vmem:[%s2969 + $0x48] sm:$0xff]
  %v2980 = vld [vmem:[%s2969 + $0x50] sm:$0xff]
  %v2981 = vld [vmem:[%s2969 + $0x58] sm:$0xff]
  %v2982 = vld [vmem:[%s2969 + $0x60] sm:$0xff]
  %v2983 = vld [vmem:[%s2969 + $0x68] sm:$0xff]
  %v2984 = vld [vmem:[%s2969 + $0x70] sm:$0xff]
  %v2985 = vld [vmem:[%s2969 + $0x78] sm:$0xff]
  %v2987 = vsel %vm173, %v2970, 0
  %v2990 = vsel %vm173, %v2971, 0
  %v2993 = vsel %vm173, %v2972, 0
  %v2996 = vsel %vm173, %v2973, 0
  %v2999 = vsel %vm173, %v2974, 0
  %v3002 = vsel %vm173, %v2975, 0
  %v3005 = vsel %vm173, %v2976, 0
  %v3008 = vsel %vm173, %v2977, 0
  %v3011 = vsel %vm173, %v2978, 0
  %v3014 = vsel %vm173, %v2979, 0
  %v3017 = vsel %vm173, %v2980, 0
  %v3020 = vsel %vm173, %v2981, 0
  %v3023 = vsel %vm173, %v2982, 0
  %v3026 = vsel %vm173, %v2983, 0
  %v3029 = vsel %vm173, %v2984, 0
  %v3032 = vsel %vm173, %v2985, 0
  %3034 = vmatpush.msra.mxu0 0.0
  %3035 = vmatpush.msra.mxu0 0.0
  %3036 = vmatpush.msra.mxu0 0.0
  %3037 = vmatpush.msra.mxu0 0.0
  %3038 = vmatpush.msra.mxu0 0.0
  %3039 = vmatpush.msra.mxu0 0.0
  %3040 = vmatpush.msra.mxu0 0.0
  %3041 = vmatpush.msra.mxu0 0.0
  %3042 = vmatpush.msra.mxu0 %v2835
  %3043 = vmatpush.msra.mxu0 %v2834
  %3044 = vmatpush.msra.mxu0 %v2833
  %3045 = vmatpush.msra.mxu0 %v2832
  %3046 = vmatpush.msra.mxu0 %v2831
  %3047 = vmatpush.msra.mxu0 %v2830
  %3048 = vmatpush.msra.mxu0 %v2829
  %3049 = vmatpush.msra.mxu0 %v2828
  %3050 = vmatmul.f32.gmra.mxu0 %v2987
  %v3051 = vpop.f32.mrf.mxu0
  %v3052 = vadd.f32 0.0, %v3051
  %3053 = vmatmul.f32.gmra.mxu0 %v2990
  %v3054 = vpop.f32.mrf.mxu0
  %v3055 = vadd.f32 0.0, %v3054
  %3056 = vmatmul.f32.gmra.mxu0 %v2993
  %v3057 = vpop.f32.mrf.mxu0
  %v3058 = vadd.f32 0.0, %v3057
  %3059 = vmatmul.f32.gmra.mxu0 %v2996
  %v3060 = vpop.f32.mrf.mxu0
  %v3061 = vadd.f32 0.0, %v3060
  %3062 = vmatmul.f32.gmra.mxu0 %v2999
  %v3063 = vpop.f32.mrf.mxu0
  %v3064 = vadd.f32 0.0, %v3063
  %3065 = vmatmul.f32.gmra.mxu0 %v3002
  %v3066 = vpop.f32.mrf.mxu0
  %v3067 = vadd.f32 0.0, %v3066
  %3068 = vmatmul.f32.gmra.mxu0 %v3005
  %v3069 = vpop.f32.mrf.mxu0
  %v3070 = vadd.f32 0.0, %v3069
  %3071 = vmatmul.f32.gmra.mxu0 %v3008
  %v3072 = vpop.f32.mrf.mxu0
  %v3073 = vadd.f32 0.0, %v3072
  %3074 = vmatmul.f32.gmra.mxu0 %v3011
  %v3075 = vpop.f32.mrf.mxu0
  %v3076 = vadd.f32 0.0, %v3075
  %3077 = vmatmul.f32.gmra.mxu0 %v3014
  %v3078 = vpop.f32.mrf.mxu0
  %v3079 = vadd.f32 0.0, %v3078
  %3080 = vmatmul.f32.gmra.mxu0 %v3017
  %v3081 = vpop.f32.mrf.mxu0
  %v3082 = vadd.f32 0.0, %v3081
  %3083 = vmatmul.f32.gmra.mxu0 %v3020
  %v3084 = vpop.f32.mrf.mxu0
  %v3085 = vadd.f32 0.0, %v3084
  %3086 = vmatmul.f32.gmra.mxu0 %v3023
  %v3087 = vpop.f32.mrf.mxu0
  %v3088 = vadd.f32 0.0, %v3087
  %3089 = vmatmul.f32.gmra.mxu0 %v3026
  %v3090 = vpop.f32.mrf.mxu0
  %v3091 = vadd.f32 0.0, %v3090
  %3092 = vmatmul.f32.gmra.mxu0 %v3029
  %v3093 = vpop.f32.mrf.mxu0
  %v3094 = vadd.f32 0.0, %v3093
  %3095 = vmatmul.f32.gmra.mxu0 %v3032
  %v3096 = vpop.f32.mrf.mxu0
  %v3097 = vadd.f32 0.0, %v3096
  %3098 = vdwg.mxu0
  %s3099 = scalar_lea.vmem %s21, 32
  %v3100 = vld [vmem:[%s3099] sm:$0xff]
  %v3101 = vld [vmem:[%s3099 + $0x8] sm:$0xff]
  %v3102 = vld [vmem:[%s3099 + $0x10] sm:$0xff]
  %v3103 = vld [vmem:[%s3099 + $0x18] sm:$0xff]
  %v3105 = vsel %vm270, %v3052, 0
  %v3108 = vsel %vm270, %v3055, 0
  %v3111 = vsel %vm270, %v3058, 0
  %v3114 = vsel %vm270, %v3061, 0
  %v3117 = vsel %vm270, %v3064, 0
  %v3120 = vsel %vm270, %v3067, 0
  %v3123 = vsel %vm270, %v3070, 0
  %v3126 = vsel %vm270, %v3073, 0
  %v3129 = vsel %vm270, %v3076, 0
  %v3132 = vsel %vm270, %v3079, 0
  %v3135 = vsel %vm270, %v3082, 0
  %v3138 = vsel %vm270, %v3085, 0
  %v3141 = vsel %vm270, %v3088, 0
  %v3144 = vsel %vm270, %v3091, 0
  %v3147 = vsel %vm270, %v3094, 0
  %v3150 = vsel %vm270, %v3097, 0
  %3152 = vmatpush.msra.mxu0 0.0
  %3153 = vmatpush.msra.mxu0 0.0
  %3154 = vmatpush.msra.mxu0 0.0
  %3155 = vmatpush.msra.mxu0 0.0
  %3156 = vmatpush.msra.mxu0 0.0
  %3157 = vmatpush.msra.mxu0 0.0
  %3158 = vmatpush.msra.mxu0 0.0
  %3159 = vmatpush.msra.mxu0 0.0
  %3160 = vmatpush.msra.mxu0 0.0
  %3161 = vmatpush.msra.mxu0 0.0
  %3162 = vmatpush.msra.mxu0 0.0
  %3163 = vmatpush.msra.mxu0 0.0
  %3164 = vmatpush.msra.mxu0 %v3103
  %3165 = vmatpush.msra.mxu0 %v3102
  %3166 = vmatpush.msra.mxu0 %v3101
  %3167 = vmatpush.msra.mxu0 %v3100
  %3168 = vmatmul.f32.gmra.mxu0 %v3105
  %v3169 = vpop.f32.mrf.mxu0
  %v3170 = vadd.f32 0.0, %v3169
  %3171 = vmatmul.f32.gmra.mxu0 %v3108
  %v3172 = vpop.f32.mrf.mxu0
  %v3173 = vadd.f32 0.0, %v3172
  %3174 = vmatmul.f32.gmra.mxu0 %v3111
  %v3175 = vpop.f32.mrf.mxu0
  %v3176 = vadd.f32 0.0, %v3175
  %3177 = vmatmul.f32.gmra.mxu0 %v3114
  %v3178 = vpop.f32.mrf.mxu0
  %v3179 = vadd.f32 0.0, %v3178
  %3180 = vmatmul.f32.gmra.mxu0 %v3117
  %v3181 = vpop.f32.mrf.mxu0
  %v3182 = vadd.f32 0.0, %v3181
  %3183 = vmatmul.f32.gmra.mxu0 %v3120
  %v3184 = vpop.f32.mrf.mxu0
  %v3185 = vadd.f32 0.0, %v3184
  %3186 = vmatmul.f32.gmra.mxu0 %v3123
  %v3187 = vpop.f32.mrf.mxu0
  %v3188 = vadd.f32 0.0, %v3187
  %3189 = vmatmul.f32.gmra.mxu0 %v3126
  %v3190 = vpop.f32.mrf.mxu0
  %v3191 = vadd.f32 0.0, %v3190
  %3192 = vmatmul.f32.gmra.mxu0 %v3129
  %v3193 = vpop.f32.mrf.mxu0
  %v3194 = vadd.f32 0.0, %v3193
  %3195 = vmatmul.f32.gmra.mxu0 %v3132
  %v3196 = vpop.f32.mrf.mxu0
  %v3197 = vadd.f32 0.0, %v3196
  %3198 = vmatmul.f32.gmra.mxu0 %v3135
  %v3199 = vpop.f32.mrf.mxu0
  %v3200 = vadd.f32 0.0, %v3199
  %3201 = vmatmul.f32.gmra.mxu0 %v3138
  %v3202 = vpop.f32.mrf.mxu0
  %v3203 = vadd.f32 0.0, %v3202
  %3204 = vmatmul.f32.gmra.mxu0 %v3141
  %v3205 = vpop.f32.mrf.mxu0
  %v3206 = vadd.f32 0.0, %v3205
  %3207 = vmatmul.f32.gmra.mxu0 %v3144
  %v3208 = vpop.f32.mrf.mxu0
  %v3209 = vadd.f32 0.0, %v3208
  %3210 = vmatmul.f32.gmra.mxu0 %v3147
  %v3211 = vpop.f32.mrf.mxu0
  %v3212 = vadd.f32 0.0, %v3211
  %3213 = vmatmul.f32.gmra.mxu0 %v3150
  %v3214 = vpop.f32.mrf.mxu0
  %v3215 = vadd.f32 0.0, %v3214
  %3216 = vdwg.mxu0
  %v3218 = vsel %vm270, %v2918, 0
  %v3221 = vsel %vm270, %v2921, 0
  %v3224 = vsel %vm270, %v2924, 0
  %v3227 = vsel %vm270, %v2927, 0
  %v3230 = vsel %vm270, %v2930, 0
  %v3233 = vsel %vm270, %v2933, 0
  %v3236 = vsel %vm270, %v2936, 0
  %v3239 = vsel %vm270, %v2939, 0
  %v3242 = vsel %vm270, %v2942, 0
  %v3245 = vsel %vm270, %v2945, 0
  %v3248 = vsel %vm270, %v2948, 0
  %v3251 = vsel %vm270, %v2951, 0
  %v3254 = vsel %vm270, %v2954, 0
  %v3257 = vsel %vm270, %v2957, 0
  %v3260 = vsel %vm270, %v2960, 0
  %v3263 = vsel %vm270, %v2963, 0
  %3265 = vmatpush.msra.mxu0 0.0
  %3266 = vmatpush.msra.mxu0 0.0
  %3267 = vmatpush.msra.mxu0 0.0
  %3268 = vmatpush.msra.mxu0 0.0
  %3269 = vmatpush.msra.mxu0 0.0
  %3270 = vmatpush.msra.mxu0 0.0
  %3271 = vmatpush.msra.mxu0 0.0
  %3272 = vmatpush.msra.mxu0 0.0
  %3273 = vmatpush.msra.mxu0 0.0
  %3274 = vmatpush.msra.mxu0 0.0
  %3275 = vmatpush.msra.mxu0 0.0
  %3276 = vmatpush.msra.mxu0 0.0
  %3277 = vmatpush.msra.mxu0 %v2968
  %3278 = vmatpush.msra.mxu0 %v2967
  %3279 = vmatpush.msra.mxu0 %v2966
  %3280 = vmatpush.msra.mxu0 %v2965
  %3281 = vmatmul.f32.gmra.mxu0 %v3218
  %v3282 = vpop.f32.mrf.mxu0
  %v3283 = vadd.f32 %v3170, %v3282
  %3284 = vmatmul.f32.gmra.mxu0 %v3221
  %v3285 = vpop.f32.mrf.mxu0
  %v3286 = vadd.f32 %v3173, %v3285
  %3287 = vmatmul.f32.gmra.mxu0 %v3224
  %v3288 = vpop.f32.mrf.mxu0
  %v3289 = vadd.f32 %v3176, %v3288
  %3290 = vmatmul.f32.gmra.mxu0 %v3227
  %v3291 = vpop.f32.mrf.mxu0
  %v3292 = vadd.f32 %v3179, %v3291
  %3293 = vmatmul.f32.gmra.mxu0 %v3230
  %v3294 = vpop.f32.mrf.mxu0
  %v3295 = vadd.f32 %v3182, %v3294
  %3296 = vmatmul.f32.gmra.mxu0 %v3233
  %v3297 = vpop.f32.mrf.mxu0
  %v3298 = vadd.f32 %v3185, %v3297
  %3299 = vmatmul.f32.gmra.mxu0 %v3236
  %v3300 = vpop.f32.mrf.mxu0
  %v3301 = vadd.f32 %v3188, %v3300
  %3302 = vmatmul.f32.gmra.mxu0 %v3239
  %v3303 = vpop.f32.mrf.mxu0
  %v3304 = vadd.f32 %v3191, %v3303
  %3305 = vmatmul.f32.gmra.mxu0 %v3242
  %v3306 = vpop.f32.mrf.mxu0
  %v3307 = vadd.f32 %v3194, %v3306
  %3308 = vmatmul.f32.gmra.mxu0 %v3245
  %v3309 = vpop.f32.mrf.mxu0
  %v3310 = vadd.f32 %v3197, %v3309
  %3311 = vmatmul.f32.gmra.mxu0 %v3248
  %v3312 = vpop.f32.mrf.mxu0
  %v3313 = vadd.f32 %v3200, %v3312
  %3314 = vmatmul.f32.gmra.mxu0 %v3251
  %v3315 = vpop.f32.mrf.mxu0
  %v3316 = vadd.f32 %v3203, %v3315
  %3317 = vmatmul.f32.gmra.mxu0 %v3254
  %v3318 = vpop.f32.mrf.mxu0
  %v3319 = vadd.f32 %v3206, %v3318
  %3320 = vmatmul.f32.gmra.mxu0 %v3257
  %v3321 = vpop.f32.mrf.mxu0
  %v3322 = vadd.f32 %v3209, %v3321
  %3323 = vmatmul.f32.gmra.mxu0 %v3260
  %v3324 = vpop.f32.mrf.mxu0
  %v3325 = vadd.f32 %v3212, %v3324
  %3326 = vmatmul.f32.gmra.mxu0 %v3263
  %v3327 = vpop.f32.mrf.mxu0
  %v3328 = vadd.f32 %v3215, %v3327
  %3329 = vdwg.mxu0
  %s3330 = scalar_lea.vmem %s20, 256
  %v3331 = vld [vmem:[%s3330] sm:$0xff]
  %v3332 = vld [vmem:[%s3330 + $0x8] sm:$0xff]
  %v3333 = vld [vmem:[%s3330 + $0x10] sm:$0xff]
  %v3334 = vld [vmem:[%s3330 + $0x18] sm:$0xff]
  %v3335 = vld [vmem:[%s3330 + $0x20] sm:$0xff]
  %v3336 = vld [vmem:[%s3330 + $0x28] sm:$0xff]
  %v3337 = vld [vmem:[%s3330 + $0x30] sm:$0xff]
  %v3338 = vld [vmem:[%s3330 + $0x38] sm:$0xff]
  %v3339 = vld [vmem:[%s3330 + $0x40] sm:$0xff]
  %v3340 = vld [vmem:[%s3330 + $0x48] sm:$0xff]
  %v3341 = vld [vmem:[%s3330 + $0x50] sm:$0xff]
  %v3342 = vld [vmem:[%s3330 + $0x58] sm:$0xff]
  %v3343 = vld [vmem:[%s3330 + $0x60] sm:$0xff]
  %v3344 = vld [vmem:[%s3330 + $0x68] sm:$0xff]
  %v3345 = vld [vmem:[%s3330 + $0x70] sm:$0xff]
  %v3346 = vld [vmem:[%s3330 + $0x78] sm:$0xff]
  %v3348 = vsel %vm173, %v3331, 0
  %v3351 = vsel %vm173, %v3332, 0
  %v3354 = vsel %vm173, %v3333, 0
  %v3357 = vsel %vm173, %v3334, 0
  %v3360 = vsel %vm173, %v3335, 0
  %v3363 = vsel %vm173, %v3336, 0
  %v3366 = vsel %vm173, %v3337, 0
  %v3369 = vsel %vm173, %v3338, 0
  %v3372 = vsel %vm173, %v3339, 0
  %v3375 = vsel %vm173, %v3340, 0
  %v3378 = vsel %vm173, %v3341, 0
  %v3381 = vsel %vm173, %v3342, 0
  %v3384 = vsel %vm173, %v3343, 0
  %v3387 = vsel %vm173, %v3344, 0
  %v3390 = vsel %vm173, %v3345, 0
  %v3393 = vsel %vm173, %v3346, 0
  %3395 = vmatpush.msra.mxu0 0.0
  %3396 = vmatpush.msra.mxu0 0.0
  %3397 = vmatpush.msra.mxu0 0.0
  %3398 = vmatpush.msra.mxu0 0.0
  %3399 = vmatpush.msra.mxu0 0.0
  %3400 = vmatpush.msra.mxu0 0.0
  %3401 = vmatpush.msra.mxu0 0.0
  %3402 = vmatpush.msra.mxu0 0.0
  %3403 = vmatpush.msra.mxu0 %v2835
  %3404 = vmatpush.msra.mxu0 %v2834
  %3405 = vmatpush.msra.mxu0 %v2833
  %3406 = vmatpush.msra.mxu0 %v2832
  %3407 = vmatpush.msra.mxu0 %v2831
  %3408 = vmatpush.msra.mxu0 %v2830
  %3409 = vmatpush.msra.mxu0 %v2829
  %3410 = vmatpush.msra.mxu0 %v2828
  %3411 = vmatmul.f32.gmra.mxu0 %v3348
  %v3412 = vpop.f32.mrf.mxu0
  %v3413 = vadd.f32 0.0, %v3412
  %3414 = vmatmul.f32.gmra.mxu0 %v3351
  %v3415 = vpop.f32.mrf.mxu0
  %v3416 = vadd.f32 0.0, %v3415
  %3417 = vmatmul.f32.gmra.mxu0 %v3354
  %v3418 = vpop.f32.mrf.mxu0
  %v3419 = vadd.f32 0.0, %v3418
  %3420 = vmatmul.f32.gmra.mxu0 %v3357
  %v3421 = vpop.f32.mrf.mxu0
  %v3422 = vadd.f32 0.0, %v3421
  %3423 = vmatmul.f32.gmra.mxu0 %v3360
  %v3424 = vpop.f32.mrf.mxu0
  %v3425 = vadd.f32 0.0, %v3424
  %3426 = vmatmul.f32.gmra.mxu0 %v3363
  %v3427 = vpop.f32.mrf.mxu0
  %v3428 = vadd.f32 0.0, %v3427
  %3429 = vmatmul.f32.gmra.mxu0 %v3366
  %v3430 = vpop.f32.mrf.mxu0
  %v3431 = vadd.f32 0.0, %v3430
  %3432 = vmatmul.f32.gmra.mxu0 %v3369
  %v3433 = vpop.f32.mrf.mxu0
  %v3434 = vadd.f32 0.0, %v3433
  %3435 = vmatmul.f32.gmra.mxu0 %v3372
  %v3436 = vpop.f32.mrf.mxu0
  %v3437 = vadd.f32 0.0, %v3436
  %3438 = vmatmul.f32.gmra.mxu0 %v3375
  %v3439 = vpop.f32.mrf.mxu0
  %v3440 = vadd.f32 0.0, %v3439
  %3441 = vmatmul.f32.gmra.mxu0 %v3378
  %v3442 = vpop.f32.mrf.mxu0
  %v3443 = vadd.f32 0.0, %v3442
  %3444 = vmatmul.f32.gmra.mxu0 %v3381
  %v3445 = vpop.f32.mrf.mxu0
  %v3446 = vadd.f32 0.0, %v3445
  %3447 = vmatmul.f32.gmra.mxu0 %v3384
  %v3448 = vpop.f32.mrf.mxu0
  %v3449 = vadd.f32 0.0, %v3448
  %3450 = vmatmul.f32.gmra.mxu0 %v3387
  %v3451 = vpop.f32.mrf.mxu0
  %v3452 = vadd.f32 0.0, %v3451
  %3453 = vmatmul.f32.gmra.mxu0 %v3390
  %v3454 = vpop.f32.mrf.mxu0
  %v3455 = vadd.f32 0.0, %v3454
  %3456 = vmatmul.f32.gmra.mxu0 %v3393
  %v3457 = vpop.f32.mrf.mxu0
  %v3458 = vadd.f32 0.0, %v3457
  %3459 = vdwg.mxu0
  %s3460 = scalar_lea.vmem %s21, 64
  %v3461 = vld [vmem:[%s3460] sm:$0xff]
  %v3462 = vld [vmem:[%s3460 + $0x8] sm:$0xff]
  %v3463 = vld [vmem:[%s3460 + $0x10] sm:$0xff]
  %v3464 = vld [vmem:[%s3460 + $0x18] sm:$0xff]
  %v3466 = vsel %vm270, %v3413, 0
  %v3469 = vsel %vm270, %v3416, 0
  %v3472 = vsel %vm270, %v3419, 0
  %v3475 = vsel %vm270, %v3422, 0
  %v3478 = vsel %vm270, %v3425, 0
  %v3481 = vsel %vm270, %v3428, 0
  %v3484 = vsel %vm270, %v3431, 0
  %v3487 = vsel %vm270, %v3434, 0
  %v3490 = vsel %vm270, %v3437, 0
  %v3493 = vsel %vm270, %v3440, 0
  %v3496 = vsel %vm270, %v3443, 0
  %v3499 = vsel %vm270, %v3446, 0
  %v3502 = vsel %vm270, %v3449, 0
  %v3505 = vsel %vm270, %v3452, 0
  %v3508 = vsel %vm270, %v3455, 0
  %v3511 = vsel %vm270, %v3458, 0
  %3513 = vmatpush.msra.mxu0 0.0
  %3514 = vmatpush.msra.mxu0 0.0
  %3515 = vmatpush.msra.mxu0 0.0
  %3516 = vmatpush.msra.mxu0 0.0
  %3517 = vmatpush.msra.mxu0 0.0
  %3518 = vmatpush.msra.mxu0 0.0
  %3519 = vmatpush.msra.mxu0 0.0
  %3520 = vmatpush.msra.mxu0 0.0
  %3521 = vmatpush.msra.mxu0 0.0
  %3522 = vmatpush.msra.mxu0 0.0
  %3523 = vmatpush.msra.mxu0 0.0
  %3524 = vmatpush.msra.mxu0 0.0
  %3525 = vmatpush.msra.mxu0 %v3464
  %3526 = vmatpush.msra.mxu0 %v3463
  %3527 = vmatpush.msra.mxu0 %v3462
  %3528 = vmatpush.msra.mxu0 %v3461
  %3529 = vmatmul.f32.gmra.mxu0 %v3466
  %v3530 = vpop.f32.mrf.mxu0
  %v3531 = vadd.f32 0.0, %v3530
  %3532 = vmatmul.f32.gmra.mxu0 %v3469
  %v3533 = vpop.f32.mrf.mxu0
  %v3534 = vadd.f32 0.0, %v3533
  %3535 = vmatmul.f32.gmra.mxu0 %v3472
  %v3536 = vpop.f32.mrf.mxu0
  %v3537 = vadd.f32 0.0, %v3536
  %3538 = vmatmul.f32.gmra.mxu0 %v3475
  %v3539 = vpop.f32.mrf.mxu0
  %v3540 = vadd.f32 0.0, %v3539
  %3541 = vmatmul.f32.gmra.mxu0 %v3478
  %v3542 = vpop.f32.mrf.mxu0
  %v3543 = vadd.f32 0.0, %v3542
  %3544 = vmatmul.f32.gmra.mxu0 %v3481
  %v3545 = vpop.f32.mrf.mxu0
  %v3546 = vadd.f32 0.0, %v3545
  %3547 = vmatmul.f32.gmra.mxu0 %v3484
  %v3548 = vpop.f32.mrf.mxu0
  %v3549 = vadd.f32 0.0, %v3548
  %3550 = vmatmul.f32.gmra.mxu0 %v3487
  %v3551 = vpop.f32.mrf.mxu0
  %v3552 = vadd.f32 0.0, %v3551
  %3553 = vmatmul.f32.gmra.mxu0 %v3490
  %v3554 = vpop.f32.mrf.mxu0
  %v3555 = vadd.f32 0.0, %v3554
  %3556 = vmatmul.f32.gmra.mxu0 %v3493
  %v3557 = vpop.f32.mrf.mxu0
  %v3558 = vadd.f32 0.0, %v3557
  %3559 = vmatmul.f32.gmra.mxu0 %v3496
  %v3560 = vpop.f32.mrf.mxu0
  %v3561 = vadd.f32 0.0, %v3560
  %3562 = vmatmul.f32.gmra.mxu0 %v3499
  %v3563 = vpop.f32.mrf.mxu0
  %v3564 = vadd.f32 0.0, %v3563
  %3565 = vmatmul.f32.gmra.mxu0 %v3502
  %v3566 = vpop.f32.mrf.mxu0
  %v3567 = vadd.f32 0.0, %v3566
  %3568 = vmatmul.f32.gmra.mxu0 %v3505
  %v3569 = vpop.f32.mrf.mxu0
  %v3570 = vadd.f32 0.0, %v3569
  %3571 = vmatmul.f32.gmra.mxu0 %v3508
  %v3572 = vpop.f32.mrf.mxu0
  %v3573 = vadd.f32 0.0, %v3572
  %3574 = vmatmul.f32.gmra.mxu0 %v3511
  %v3575 = vpop.f32.mrf.mxu0
  %v3576 = vadd.f32 0.0, %v3575
  %3577 = vdwg.mxu0
  %v3578 = vadd.f32 %v3283, %v3531
  %v3579 = vadd.f32 %v3286, %v3534
  %v3580 = vadd.f32 %v3289, %v3537
  %v3581 = vadd.f32 %v3292, %v3540
  %v3582 = vadd.f32 %v3295, %v3543
  %v3583 = vadd.f32 %v3298, %v3546
  %v3584 = vadd.f32 %v3301, %v3549
  %v3585 = vadd.f32 %v3304, %v3552
  %v3586 = vadd.f32 %v3307, %v3555
  %v3587 = vadd.f32 %v3310, %v3558
  %v3588 = vadd.f32 %v3313, %v3561
  %v3589 = vadd.f32 %v3316, %v3564
  %v3590 = vadd.f32 %v3319, %v3567
  %v3591 = vadd.f32 %v3322, %v3570
  %v3592 = vadd.f32 %v3325, %v3573
  %v3593 = vadd.f32 %v3328, %v3576
  %s3594 = scalar_lea.vmem %s20, 384
  %v3595 = vld [vmem:[%s3594] sm:$0xff]
  %v3596 = vld [vmem:[%s3594 + $0x8] sm:$0xff]
  %v3597 = vld [vmem:[%s3594 + $0x10] sm:$0xff]
  %v3598 = vld [vmem:[%s3594 + $0x18] sm:$0xff]
  %v3599 = vld [vmem:[%s3594 + $0x20] sm:$0xff]
  %v3600 = vld [vmem:[%s3594 + $0x28] sm:$0xff]
  %v3601 = vld [vmem:[%s3594 + $0x30] sm:$0xff]
  %v3602 = vld [vmem:[%s3594 + $0x38] sm:$0xff]
  %v3603 = vld [vmem:[%s3594 + $0x40] sm:$0xff]
  %v3604 = vld [vmem:[%s3594 + $0x48] sm:$0xff]
  %v3605 = vld [vmem:[%s3594 + $0x50] sm:$0xff]
  %v3606 = vld [vmem:[%s3594 + $0x58] sm:$0xff]
  %v3607 = vld [vmem:[%s3594 + $0x60] sm:$0xff]
  %v3608 = vld [vmem:[%s3594 + $0x68] sm:$0xff]
  %v3609 = vld [vmem:[%s3594 + $0x70] sm:$0xff]
  %v3610 = vld [vmem:[%s3594 + $0x78] sm:$0xff]
  %v3612 = vsel %vm173, %v3595, 0
  %v3615 = vsel %vm173, %v3596, 0
  %v3618 = vsel %vm173, %v3597, 0
  %v3621 = vsel %vm173, %v3598, 0
  %v3624 = vsel %vm173, %v3599, 0
  %v3627 = vsel %vm173, %v3600, 0
  %v3630 = vsel %vm173, %v3601, 0
  %v3633 = vsel %vm173, %v3602, 0
  %v3636 = vsel %vm173, %v3603, 0
  %v3639 = vsel %vm173, %v3604, 0
  %v3642 = vsel %vm173, %v3605, 0
  %v3645 = vsel %vm173, %v3606, 0
  %v3648 = vsel %vm173, %v3607, 0
  %v3651 = vsel %vm173, %v3608, 0
  %v3654 = vsel %vm173, %v3609, 0
  %v3657 = vsel %vm173, %v3610, 0
  %3659 = vmatpush.msra.mxu0 0.0
  %3660 = vmatpush.msra.mxu0 0.0
  %3661 = vmatpush.msra.mxu0 0.0
  %3662 = vmatpush.msra.mxu0 0.0
  %3663 = vmatpush.msra.mxu0 0.0
  %3664 = vmatpush.msra.mxu0 0.0
  %3665 = vmatpush.msra.mxu0 0.0
  %3666 = vmatpush.msra.mxu0 0.0
  %3667 = vmatpush.msra.mxu0 %v2835
  %3668 = vmatpush.msra.mxu0 %v2834
  %3669 = vmatpush.msra.mxu0 %v2833
  %3670 = vmatpush.msra.mxu0 %v2832
  %3671 = vmatpush.msra.mxu0 %v2831
  %3672 = vmatpush.msra.mxu0 %v2830
  %3673 = vmatpush.msra.mxu0 %v2829
  %3674 = vmatpush.msra.mxu0 %v2828
  %3675 = vmatmul.f32.gmra.mxu0 %v3612
  %v3676 = vpop.f32.mrf.mxu0
  %v3677 = vadd.f32 0.0, %v3676
  %3678 = vmatmul.f32.gmra.mxu0 %v3615
  %v3679 = vpop.f32.mrf.mxu0
  %v3680 = vadd.f32 0.0, %v3679
  %3681 = vmatmul.f32.gmra.mxu0 %v3618
  %v3682 = vpop.f32.mrf.mxu0
  %v3683 = vadd.f32 0.0, %v3682
  %3684 = vmatmul.f32.gmra.mxu0 %v3621
  %v3685 = vpop.f32.mrf.mxu0
  %v3686 = vadd.f32 0.0, %v3685
  %3687 = vmatmul.f32.gmra.mxu0 %v3624
  %v3688 = vpop.f32.mrf.mxu0
  %v3689 = vadd.f32 0.0, %v3688
  %3690 = vmatmul.f32.gmra.mxu0 %v3627
  %v3691 = vpop.f32.mrf.mxu0
  %v3692 = vadd.f32 0.0, %v3691
  %3693 = vmatmul.f32.gmra.mxu0 %v3630
  %v3694 = vpop.f32.mrf.mxu0
  %v3695 = vadd.f32 0.0, %v3694
  %3696 = vmatmul.f32.gmra.mxu0 %v3633
  %v3697 = vpop.f32.mrf.mxu0
  %v3698 = vadd.f32 0.0, %v3697
  %3699 = vmatmul.f32.gmra.mxu0 %v3636
  %v3700 = vpop.f32.mrf.mxu0
  %v3701 = vadd.f32 0.0, %v3700
  %3702 = vmatmul.f32.gmra.mxu0 %v3639
  %v3703 = vpop.f32.mrf.mxu0
  %v3704 = vadd.f32 0.0, %v3703
  %3705 = vmatmul.f32.gmra.mxu0 %v3642
  %v3706 = vpop.f32.mrf.mxu0
  %v3707 = vadd.f32 0.0, %v3706
  %3708 = vmatmul.f32.gmra.mxu0 %v3645
  %v3709 = vpop.f32.mrf.mxu0
  %v3710 = vadd.f32 0.0, %v3709
  %3711 = vmatmul.f32.gmra.mxu0 %v3648
  %v3712 = vpop.f32.mrf.mxu0
  %v3713 = vadd.f32 0.0, %v3712
  %3714 = vmatmul.f32.gmra.mxu0 %v3651
  %v3715 = vpop.f32.mrf.mxu0
  %v3716 = vadd.f32 0.0, %v3715
  %3717 = vmatmul.f32.gmra.mxu0 %v3654
  %v3718 = vpop.f32.mrf.mxu0
  %v3719 = vadd.f32 0.0, %v3718
  %3720 = vmatmul.f32.gmra.mxu0 %v3657
  %v3721 = vpop.f32.mrf.mxu0
  %v3722 = vadd.f32 0.0, %v3721
  %3723 = vdwg.mxu0
  %s3724 = scalar_lea.vmem %s21, 96
  %v3725 = vld [vmem:[%s3724] sm:$0xff]
  %v3726 = vld [vmem:[%s3724 + $0x8] sm:$0xff]
  %v3727 = vld [vmem:[%s3724 + $0x10] sm:$0xff]
  %v3728 = vld [vmem:[%s3724 + $0x18] sm:$0xff]
  %v3730 = vsel %vm270, %v3677, 0
  %v3733 = vsel %vm270, %v3680, 0
  %v3736 = vsel %vm270, %v3683, 0
  %v3739 = vsel %vm270, %v3686, 0
  %v3742 = vsel %vm270, %v3689, 0
  %v3745 = vsel %vm270, %v3692, 0
  %v3748 = vsel %vm270, %v3695, 0
  %v3751 = vsel %vm270, %v3698, 0
  %v3754 = vsel %vm270, %v3701, 0
  %v3757 = vsel %vm270, %v3704, 0
  %v3760 = vsel %vm270, %v3707, 0
  %v3763 = vsel %vm270, %v3710, 0
  %v3766 = vsel %vm270, %v3713, 0
  %v3769 = vsel %vm270, %v3716, 0
  %v3772 = vsel %vm270, %v3719, 0
  %v3775 = vsel %vm270, %v3722, 0
  %3777 = vmatpush.msra.mxu0 0.0
  %3778 = vmatpush.msra.mxu0 0.0
  %3779 = vmatpush.msra.mxu0 0.0
  %3780 = vmatpush.msra.mxu0 0.0
  %3781 = vmatpush.msra.mxu0 0.0
  %3782 = vmatpush.msra.mxu0 0.0
  %3783 = vmatpush.msra.mxu0 0.0
  %3784 = vmatpush.msra.mxu0 0.0
  %3785 = vmatpush.msra.mxu0 0.0
  %3786 = vmatpush.msra.mxu0 0.0
  %3787 = vmatpush.msra.mxu0 0.0
  %3788 = vmatpush.msra.mxu0 0.0
  %3789 = vmatpush.msra.mxu0 %v3728
  %3790 = vmatpush.msra.mxu0 %v3727
  %3791 = vmatpush.msra.mxu0 %v3726
  %3792 = vmatpush.msra.mxu0 %v3725
  %3793 = vmatmul.f32.gmra.mxu0 %v3730
  %v3794 = vpop.f32.mrf.mxu0
  %v3795 = vadd.f32 0.0, %v3794
  %3796 = vmatmul.f32.gmra.mxu0 %v3733
  %v3797 = vpop.f32.mrf.mxu0
  %v3798 = vadd.f32 0.0, %v3797
  %3799 = vmatmul.f32.gmra.mxu0 %v3736
  %v3800 = vpop.f32.mrf.mxu0
  %v3801 = vadd.f32 0.0, %v3800
  %3802 = vmatmul.f32.gmra.mxu0 %v3739
  %v3803 = vpop.f32.mrf.mxu0
  %v3804 = vadd.f32 0.0, %v3803
  %3805 = vmatmul.f32.gmra.mxu0 %v3742
  %v3806 = vpop.f32.mrf.mxu0
  %v3807 = vadd.f32 0.0, %v3806
  %3808 = vmatmul.f32.gmra.mxu0 %v3745
  %v3809 = vpop.f32.mrf.mxu0
  %v3810 = vadd.f32 0.0, %v3809
  %3811 = vmatmul.f32.gmra.mxu0 %v3748
  %v3812 = vpop.f32.mrf.mxu0
  %v3813 = vadd.f32 0.0, %v3812
  %3814 = vmatmul.f32.gmra.mxu0 %v3751
  %v3815 = vpop.f32.mrf.mxu0
  %v3816 = vadd.f32 0.0, %v3815
  %3817 = vmatmul.f32.gmra.mxu0 %v3754
  %v3818 = vpop.f32.mrf.mxu0
  %v3819 = vadd.f32 0.0, %v3818
  %3820 = vmatmul.f32.gmra.mxu0 %v3757
  %v3821 = vpop.f32.mrf.mxu0
  %v3822 = vadd.f32 0.0, %v3821
  %3823 = vmatmul.f32.gmra.mxu0 %v3760
  %v3824 = vpop.f32.mrf.mxu0
  %v3825 = vadd.f32 0.0, %v3824
  %3826 = vmatmul.f32.gmra.mxu0 %v3763
  %v3827 = vpop.f32.mrf.mxu0
  %v3828 = vadd.f32 0.0, %v3827
  %3829 = vmatmul.f32.gmra.mxu0 %v3766
  %v3830 = vpop.f32.mrf.mxu0
  %v3831 = vadd.f32 0.0, %v3830
  %3832 = vmatmul.f32.gmra.mxu0 %v3769
  %v3833 = vpop.f32.mrf.mxu0
  %v3834 = vadd.f32 0.0, %v3833
  %3835 = vmatmul.f32.gmra.mxu0 %v3772
  %v3836 = vpop.f32.mrf.mxu0
  %v3837 = vadd.f32 0.0, %v3836
  %3838 = vmatmul.f32.gmra.mxu0 %v3775
  %v3839 = vpop.f32.mrf.mxu0
  %v3840 = vadd.f32 0.0, %v3839
  %3841 = vdwg.mxu0
  %v3842 = vadd.f32 %v3578, %v3795
  %v3843 = vadd.f32 %v3579, %v3798
  %v3844 = vadd.f32 %v3580, %v3801
  %v3845 = vadd.f32 %v3581, %v3804
  %v3846 = vadd.f32 %v3582, %v3807
  %v3847 = vadd.f32 %v3583, %v3810
  %v3848 = vadd.f32 %v3584, %v3813
  %v3849 = vadd.f32 %v3585, %v3816
  %v3850 = vadd.f32 %v3586, %v3819
  %v3851 = vadd.f32 %v3587, %v3822
  %v3852 = vadd.f32 %v3588, %v3825
  %v3853 = vadd.f32 %v3589, %v3828
  %v3854 = vadd.f32 %v3590, %v3831
  %v3855 = vadd.f32 %v3591, %v3834
  %v3856 = vadd.f32 %v3592, %v3837
  %v3857 = vadd.f32 %v3593, %v3840
  %s3858 = scalar_lea.vmem %s20, 512
  %v3859 = vld [vmem:[%s3858] sm:$0xff]
  %v3860 = vld [vmem:[%s3858 + $0x8] sm:$0xff]
  %v3861 = vld [vmem:[%s3858 + $0x10] sm:$0xff]
  %v3862 = vld [vmem:[%s3858 + $0x18] sm:$0xff]
  %v3863 = vld [vmem:[%s3858 + $0x20] sm:$0xff]
  %v3864 = vld [vmem:[%s3858 + $0x28] sm:$0xff]
  %v3865 = vld [vmem:[%s3858 + $0x30] sm:$0xff]
  %v3866 = vld [vmem:[%s3858 + $0x38] sm:$0xff]
  %v3867 = vld [vmem:[%s3858 + $0x40] sm:$0xff]
  %v3868 = vld [vmem:[%s3858 + $0x48] sm:$0xff]
  %v3869 = vld [vmem:[%s3858 + $0x50] sm:$0xff]
  %v3870 = vld [vmem:[%s3858 + $0x58] sm:$0xff]
  %v3871 = vld [vmem:[%s3858 + $0x60] sm:$0xff]
  %v3872 = vld [vmem:[%s3858 + $0x68] sm:$0xff]
  %v3873 = vld [vmem:[%s3858 + $0x70] sm:$0xff]
  %v3874 = vld [vmem:[%s3858 + $0x78] sm:$0xff]
  %v3876 = vsel %vm173, %v3859, 0
  %v3879 = vsel %vm173, %v3860, 0
  %v3882 = vsel %vm173, %v3861, 0
  %v3885 = vsel %vm173, %v3862, 0
  %v3888 = vsel %vm173, %v3863, 0
  %v3891 = vsel %vm173, %v3864, 0
  %v3894 = vsel %vm173, %v3865, 0
  %v3897 = vsel %vm173, %v3866, 0
  %v3900 = vsel %vm173, %v3867, 0
  %v3903 = vsel %vm173, %v3868, 0
  %v3906 = vsel %vm173, %v3869, 0
  %v3909 = vsel %vm173, %v3870, 0
  %v3912 = vsel %vm173, %v3871, 0
  %v3915 = vsel %vm173, %v3872, 0
  %v3918 = vsel %vm173, %v3873, 0
  %v3921 = vsel %vm173, %v3874, 0
  %3923 = vmatpush.msra.mxu0 0.0
  %3924 = vmatpush.msra.mxu0 0.0
  %3925 = vmatpush.msra.mxu0 0.0
  %3926 = vmatpush.msra.mxu0 0.0
  %3927 = vmatpush.msra.mxu0 0.0
  %3928 = vmatpush.msra.mxu0 0.0
  %3929 = vmatpush.msra.mxu0 0.0
  %3930 = vmatpush.msra.mxu0 0.0
  %3931 = vmatpush.msra.mxu0 %v2835
  %3932 = vmatpush.msra.mxu0 %v2834
  %3933 = vmatpush.msra.mxu0 %v2833
  %3934 = vmatpush.msra.mxu0 %v2832
  %3935 = vmatpush.msra.mxu0 %v2831
  %3936 = vmatpush.msra.mxu0 %v2830
  %3937 = vmatpush.msra.mxu0 %v2829
  %3938 = vmatpush.msra.mxu0 %v2828
  %3939 = vmatmul.f32.gmra.mxu0 %v3876
  %v3940 = vpop.f32.mrf.mxu0
  %v3941 = vadd.f32 0.0, %v3940
  %3942 = vmatmul.f32.gmra.mxu0 %v3879
  %v3943 = vpop.f32.mrf.mxu0
  %v3944 = vadd.f32 0.0, %v3943
  %3945 = vmatmul.f32.gmra.mxu0 %v3882
  %v3946 = vpop.f32.mrf.mxu0
  %v3947 = vadd.f32 0.0, %v3946
  %3948 = vmatmul.f32.gmra.mxu0 %v3885
  %v3949 = vpop.f32.mrf.mxu0
  %v3950 = vadd.f32 0.0, %v3949
  %3951 = vmatmul.f32.gmra.mxu0 %v3888
  %v3952 = vpop.f32.mrf.mxu0
  %v3953 = vadd.f32 0.0, %v3952
  %3954 = vmatmul.f32.gmra.mxu0 %v3891
  %v3955 = vpop.f32.mrf.mxu0
  %v3956 = vadd.f32 0.0, %v3955
  %3957 = vmatmul.f32.gmra.mxu0 %v3894
  %v3958 = vpop.f32.mrf.mxu0
  %v3959 = vadd.f32 0.0, %v3958
  %3960 = vmatmul.f32.gmra.mxu0 %v3897
  %v3961 = vpop.f32.mrf.mxu0
  %v3962 = vadd.f32 0.0, %v3961
  %3963 = vmatmul.f32.gmra.mxu0 %v3900
  %v3964 = vpop.f32.mrf.mxu0
  %v3965 = vadd.f32 0.0, %v3964
  %3966 = vmatmul.f32.gmra.mxu0 %v3903
  %v3967 = vpop.f32.mrf.mxu0
  %v3968 = vadd.f32 0.0, %v3967
  %3969 = vmatmul.f32.gmra.mxu0 %v3906
  %v3970 = vpop.f32.mrf.mxu0
  %v3971 = vadd.f32 0.0, %v3970
  %3972 = vmatmul.f32.gmra.mxu0 %v3909
  %v3973 = vpop.f32.mrf.mxu0
  %v3974 = vadd.f32 0.0, %v3973
  %3975 = vmatmul.f32.gmra.mxu0 %v3912
  %v3976 = vpop.f32.mrf.mxu0
  %v3977 = vadd.f32 0.0, %v3976
  %3978 = vmatmul.f32.gmra.mxu0 %v3915
  %v3979 = vpop.f32.mrf.mxu0
  %v3980 = vadd.f32 0.0, %v3979
  %3981 = vmatmul.f32.gmra.mxu0 %v3918
  %v3982 = vpop.f32.mrf.mxu0
  %v3983 = vadd.f32 0.0, %v3982
  %3984 = vmatmul.f32.gmra.mxu0 %v3921
  %v3985 = vpop.f32.mrf.mxu0
  %v3986 = vadd.f32 0.0, %v3985
  %3987 = vdwg.mxu0
  %s3988 = scalar_lea.vmem %s21, 128
  %v3989 = vld [vmem:[%s3988] sm:$0xff]
  %v3990 = vld [vmem:[%s3988 + $0x8] sm:$0xff]
  %v3991 = vld [vmem:[%s3988 + $0x10] sm:$0xff]
  %v3992 = vld [vmem:[%s3988 + $0x18] sm:$0xff]
  %v3994 = vsel %vm270, %v3941, 0
  %v3997 = vsel %vm270, %v3944, 0
  %v4000 = vsel %vm270, %v3947, 0
  %v4003 = vsel %vm270, %v3950, 0
  %v4006 = vsel %vm270, %v3953, 0
  %v4009 = vsel %vm270, %v3956, 0
  %v4012 = vsel %vm270, %v3959, 0
  %v4015 = vsel %vm270, %v3962, 0
  %v4018 = vsel %vm270, %v3965, 0
  %v4021 = vsel %vm270, %v3968, 0
  %v4024 = vsel %vm270, %v3971, 0
  %v4027 = vsel %vm270, %v3974, 0
  %v4030 = vsel %vm270, %v3977, 0
  %v4033 = vsel %vm270, %v3980, 0
  %v4036 = vsel %vm270, %v3983, 0
  %v4039 = vsel %vm270, %v3986, 0
  %4041 = vmatpush.msra.mxu0 0.0
  %4042 = vmatpush.msra.mxu0 0.0
  %4043 = vmatpush.msra.mxu0 0.0
  %4044 = vmatpush.msra.mxu0 0.0
  %4045 = vmatpush.msra.mxu0 0.0
  %4046 = vmatpush.msra.mxu0 0.0
  %4047 = vmatpush.msra.mxu0 0.0
  %4048 = vmatpush.msra.mxu0 0.0
  %4049 = vmatpush.msra.mxu0 0.0
  %4050 = vmatpush.msra.mxu0 0.0
  %4051 = vmatpush.msra.mxu0 0.0
  %4052 = vmatpush.msra.mxu0 0.0
  %4053 = vmatpush.msra.mxu0 %v3992
  %4054 = vmatpush.msra.mxu0 %v3991
  %4055 = vmatpush.msra.mxu0 %v3990
  %4056 = vmatpush.msra.mxu0 %v3989
  %4057 = vmatmul.f32.gmra.mxu0 %v3994
  %v4058 = vpop.f32.mrf.mxu0
  %v4059 = vadd.f32 0.0, %v4058
  %4060 = vmatmul.f32.gmra.mxu0 %v3997
  %v4061 = vpop.f32.mrf.mxu0
  %v4062 = vadd.f32 0.0, %v4061
  %4063 = vmatmul.f32.gmra.mxu0 %v4000
  %v4064 = vpop.f32.mrf.mxu0
  %v4065 = vadd.f32 0.0, %v4064
  %4066 = vmatmul.f32.gmra.mxu0 %v4003
  %v4067 = vpop.f32.mrf.mxu0
  %v4068 = vadd.f32 0.0, %v4067
  %4069 = vmatmul.f32.gmra.mxu0 %v4006
  %v4070 = vpop.f32.mrf.mxu0
  %v4071 = vadd.f32 0.0, %v4070
  %4072 = vmatmul.f32.gmra.mxu0 %v4009
  %v4073 = vpop.f32.mrf.mxu0
  %v4074 = vadd.f32 0.0, %v4073
  %4075 = vmatmul.f32.gmra.mxu0 %v4012
  %v4076 = vpop.f32.mrf.mxu0
  %v4077 = vadd.f32 0.0, %v4076
  %4078 = vmatmul.f32.gmra.mxu0 %v4015
  %v4079 = vpop.f32.mrf.mxu0
  %v4080 = vadd.f32 0.0, %v4079
  %4081 = vmatmul.f32.gmra.mxu0 %v4018
  %v4082 = vpop.f32.mrf.mxu0
  %v4083 = vadd.f32 0.0, %v4082
  %4084 = vmatmul.f32.gmra.mxu0 %v4021
  %v4085 = vpop.f32.mrf.mxu0
  %v4086 = vadd.f32 0.0, %v4085
  %4087 = vmatmul.f32.gmra.mxu0 %v4024
  %v4088 = vpop.f32.mrf.mxu0
  %v4089 = vadd.f32 0.0, %v4088
  %4090 = vmatmul.f32.gmra.mxu0 %v4027
  %v4091 = vpop.f32.mrf.mxu0
  %v4092 = vadd.f32 0.0, %v4091
  %4093 = vmatmul.f32.gmra.mxu0 %v4030
  %v4094 = vpop.f32.mrf.mxu0
  %v4095 = vadd.f32 0.0, %v4094
  %4096 = vmatmul.f32.gmra.mxu0 %v4033
  %v4097 = vpop.f32.mrf.mxu0
  %v4098 = vadd.f32 0.0, %v4097
  %4099 = vmatmul.f32.gmra.mxu0 %v4036
  %v4100 = vpop.f32.mrf.mxu0
  %v4101 = vadd.f32 0.0, %v4100
  %4102 = vmatmul.f32.gmra.mxu0 %v4039
  %v4103 = vpop.f32.mrf.mxu0
  %v4104 = vadd.f32 0.0, %v4103
  %4105 = vdwg.mxu0
  %v4106 = vadd.f32 %v3842, %v4059
  %v4107 = vadd.f32 %v3843, %v4062
  %v4108 = vadd.f32 %v3844, %v4065
  %v4109 = vadd.f32 %v3845, %v4068
  %v4110 = vadd.f32 %v3846, %v4071
  %v4111 = vadd.f32 %v3847, %v4074
  %v4112 = vadd.f32 %v3848, %v4077
  %v4113 = vadd.f32 %v3849, %v4080
  %v4114 = vadd.f32 %v3850, %v4083
  %v4115 = vadd.f32 %v3851, %v4086
  %v4116 = vadd.f32 %v3852, %v4089
  %v4117 = vadd.f32 %v3853, %v4092
  %v4118 = vadd.f32 %v3854, %v4095
  %v4119 = vadd.f32 %v3855, %v4098
  %v4120 = vadd.f32 %v3856, %v4101
  %v4121 = vadd.f32 %v3857, %v4104
  %v4122 = vld [vmem:[#allocation4] sm:$0x1]
  %v4124 = vperm.slane %v4122, 0
  %v4126 = vadd.f32 %v4106, %v4124
  %v4127 = vadd.f32 %v4107, %v4124
  %v4128 = vadd.f32 %v4108, %v4124
  %v4129 = vadd.f32 %v4109, %v4124
  %v4130 = vadd.f32 %v4110, %v4124
  %v4131 = vadd.f32 %v4111, %v4124
  %v4132 = vadd.f32 %v4112, %v4124
  %v4133 = vadd.f32 %v4113, %v4124
  %v4134 = vadd.f32 %v4114, %v4124
  %v4135 = vadd.f32 %v4115, %v4124
  %v4136 = vadd.f32 %v4116, %v4124
  %v4137 = vadd.f32 %v4117, %v4124
  %v4138 = vadd.f32 %v4118, %v4124
  %v4139 = vadd.f32 %v4119, %v4124
  %v4140 = vadd.f32 %v4120, %v4124
  %v4141 = vadd.f32 %v4121, %v4124
  %v4142 = vtanh.pop %v4126
  %v4143 = vtanh.pop %v4127
  %v4144 = vtanh.pop %v4128
  %v4145 = vtanh.pop %v4129
  %v4146 = vtanh.pop %v4130
  %v4147 = vtanh.pop %v4131
  %v4148 = vtanh.pop %v4132
  %v4149 = vtanh.pop %v4133
  %v4150 = vtanh.pop %v4134
  %v4151 = vtanh.pop %v4135
  %v4152 = vtanh.pop %v4136
  %v4153 = vtanh.pop %v4137
  %v4154 = vtanh.pop %v4138
  %v4155 = vtanh.pop %v4139
  %v4156 = vtanh.pop %v4140
  %v4157 = vtanh.pop %v4141
  %vm4158 = vcmask 7168
  %4159 = vst.msk [vmem:[%s23] sm:$0xff] %vm4158, %v4142
  %4160 = vst.msk [vmem:[%s23 + $0x8] sm:$0xff] %vm4158, %v4143
  %4161 = vst.msk [vmem:[%s23 + $0x10] sm:$0xff] %vm4158, %v4144
  %4162 = vst.msk [vmem:[%s23 + $0x18] sm:$0xff] %vm4158, %v4145
  %4163 = vst.msk [vmem:[%s23 + $0x20] sm:$0xff] %vm4158, %v4146
  %4164 = vst.msk [vmem:[%s23 + $0x28] sm:$0xff] %vm4158, %v4147
  %4165 = vst.msk [vmem:[%s23 + $0x30] sm:$0xff] %vm4158, %v4148
  %4166 = vst.msk [vmem:[%s23 + $0x38] sm:$0xff] %vm4158, %v4149
  %4167 = vst.msk [vmem:[%s23 + $0x40] sm:$0xff] %vm4158, %v4150
  %4168 = vst.msk [vmem:[%s23 + $0x48] sm:$0xff] %vm4158, %v4151
  %4169 = vst.msk [vmem:[%s23 + $0x50] sm:$0xff] %vm4158, %v4152
  %4170 = vst.msk [vmem:[%s23 + $0x58] sm:$0xff] %vm4158, %v4153
  %4171 = vst.msk [vmem:[%s23 + $0x60] sm:$0xff] %vm4158, %v4154
  %4172 = vst.msk [vmem:[%s23 + $0x68] sm:$0xff] %vm4158, %v4155
  %4173 = vst.msk [vmem:[%s23 + $0x70] sm:$0xff] %vm4158, %v4156
  %4174 = vst.msk [vmem:[%s23 + $0x78] sm:$0xff] %vm4158, %v4157
  // Predicated region
  $region94: #{vae_forward.1} parent=0 // pred_check
    _
  $region95: #{vae_forward.1} parent=0 // pred_check_branch
    %4176 = sbr.rel (0) target = $region97
  $region96: #{vae_forward.1} parent=0 // pred_region
    _
  $region97: #{vae_forward.1} parent=0 // pred_fallthru
    _
  // Predicated region
  $region98: #{vae_forward.1} parent=0 // pred_check
    _
  $region99: #{vae_forward.1} parent=0 // pred_check_branch
    %4178 = sbr.rel (0) target = $region101
  $region100: #{vae_forward.1} parent=0 // pred_region
    _
  $region101: #{vae_forward.1} parent=0 // pred_fallthru
    _
  // Predicated region
  $region102: #{vae_forward.1} parent=0 // pred_check
    _
  $region103: #{vae_forward.1} parent=0 // pred_check_branch
    %4180 = sbr.rel (0) target = $region105
  $region104: #{vae_forward.1} parent=0 // pred_region
    _
  $region105: #{vae_forward.1} parent=0 // pred_fallthru
    _
  // Predicated region
  $region106: #{vae_forward.1} parent=0 // pred_check
    _
  $region107: #{vae_forward.1} parent=0 // pred_check_branch
    %4182 = sbr.rel (0) target = $region109
  $region108: #{vae_forward.1} parent=0 // pred_region
    _
  $region109: #{vae_forward.1} parent=0 // pred_fallthru
    _

</llo_original>
